<compile_context>
chip_gen: v5e
topology: v5e:2x2
jax: 0.10.0
libtpu: 0.0.40
codegen_flags: <defaults>
</compile_context>

<pallas_src>
import functools

import jax
import jax.numpy as jnp
from jax.experimental import pallas as pl
from jax.experimental.pallas import tpu as pltpu

MAX_TILE_N = 1024                 # max point-rows per grid step
VMEM_LIMIT = 32 * 1024 * 1024     # fits v5e/v6e (128 MiB) and v7x (64 MiB) physical


def _round_up(x, m):
    return ((x + m - 1) // m) * m


def _tile_for(npad):
    # npad is either <= MAX_TILE_N (a multiple of 16) or a multiple of MAX_TILE_N.
    return MAX_TILE_N if npad > MAX_TILE_N else npad


# ----------------------------------------------------------------------------
# Fused per-point encoder (6 -> 64 -> 128 -> 1024) + max-over-points.
# Used for both the STN3d path (shared W1, ReLU before the max) and the
# PointNetfeat path (per-batch W1 = trans @ W_conv1, no ReLU before the max).
# ----------------------------------------------------------------------------
def _enc_max_kernel(last_relu, n_valid, tile_n, has_pad,
                    x_ref, w1_ref, b1_ref, w2_ref, b2_ref, w3_ref, b3_ref,
                    o_ref, max_sc):
    n_idx = pl.program_id(1)
    last = pl.num_programs(1) - 1

    @pl.when(n_idx == 0)
    def _():
        max_sc[...] = jnp.full(max_sc.shape, -jnp.inf, jnp.float32)

    x = x_ref[0]                                                 # (tile_n, 6) bf16
    h = jnp.dot(x, w1_ref[0], preferred_element_type=jnp.float32)
    h = jnp.maximum(h + b1_ref[0], 0.0).astype(jnp.bfloat16)     # (tile_n, 64)
    h = jnp.dot(h, w2_ref[0], preferred_element_type=jnp.float32)
    h = jnp.maximum(h + b2_ref[0], 0.0).astype(jnp.bfloat16)     # (tile_n, 128)
    y = jnp.dot(h, w3_ref[0], preferred_element_type=jnp.float32)
    y = y + b3_ref[0]                                            # (tile_n, 1024) f32
    if last_relu:
        y = jnp.maximum(y, 0.0)

    cout = y.shape[-1]

    def update(v):
        # Partial max on the VPU: fold 8-row groups elementwise into an
        # (8, cout) running max; the single 8->1 sublane (XLU) reduce happens
        # only once per batch, on the last tile.
        g = v.reshape(tile_n // 8, 8, cout)
        max_sc[...] = jnp.maximum(max_sc[...], jnp.max(g, axis=0))

    if has_pad:
        # Only the last point-tile contains padded rows; mask them to -inf
        # (after the activation) so they can never win the max.
        @pl.when(n_idx != last)
        def _():
            update(y)

        @pl.when(n_idx == last)
        def _():
            row = n_idx * tile_n + jax.lax.broadcasted_iota(
                jnp.int32, (tile_n, 1), 0)
            update(jnp.where(row < n_valid, y, -jnp.inf))
    else:
        update(y)

    @pl.when(n_idx == last)
    def _():
        o_ref[0] = jnp.max(max_sc[...], axis=0, keepdims=True)   # (1, cout)


def encoder_max(x, w1, b1, w2, b2, w3, b3, *, last_relu, n_valid):
    """Fused per-point MLP + max over points: (B, Np, 6) bf16 -> (B, 1024) f32.

    w1: (6, 64) shared, or (B, 6, 64) per-batch (composed with `trans`).
    """
    B, Np, Cin = x.shape
    per_batch = w1.ndim == 3
    C1 = w1.shape[-1]
    C2 = w2.shape[-1]
    C3 = w3.shape[-1]
    w1_3 = w1 if per_batch else w1.reshape(1, Cin, C1)
    w1_map = (lambda b, n: (b, 0, 0)) if per_batch else (lambda b, n: (0, 0, 0))

    tile_n = _tile_for(Np)
    grid = (B, Np // tile_n)
    has_pad = Np != n_valid

    out = pl.pallas_call(
        functools.partial(_enc_max_kernel, last_relu, n_valid, tile_n, has_pad),
        out_shape=jax.ShapeDtypeStruct((B, 1, C3), jnp.float32),
        grid=grid,
        in_specs=[
            pl.BlockSpec((1, tile_n, Cin), lambda b, n: (b, n, 0)),
            pl.BlockSpec((1, Cin, C1), w1_map),
            pl.BlockSpec((1, 1, C1), lambda b, n: (0, 0, 0)),
            pl.BlockSpec((1, C1, C2), lambda b, n: (0, 0, 0)),
            pl.BlockSpec((1, 1, C2), lambda b, n: (0, 0, 0)),
            pl.BlockSpec((1, C2, C3), lambda b, n: (0, 0, 0)),
            pl.BlockSpec((1, 1, C3), lambda b, n: (0, 0, 0)),
        ],
        out_specs=pl.BlockSpec((1, 1, C3), lambda b, n: (b, 0, 0)),
        scratch_shapes=[pltpu.VMEM((8, C3), jnp.float32)],
        compiler_params=pltpu.CompilerParams(
            dimension_semantics=("parallel", "arbitrary"),
            vmem_limit_bytes=VMEM_LIMIT),
    )(x, w1_3,
      b1.reshape(1, 1, C1).astype(jnp.float32),
      w2.reshape(1, C1, C2),
      b2.reshape(1, 1, C2).astype(jnp.float32),
      w3.reshape(1, C2, C3),
      b3.reshape(1, 1, C3).astype(jnp.float32))
    return out[:, 0, :]


# ----------------------------------------------------------------------------
# Fully fused segmentation head: recompute pointfeat from the 6-ch input, then
# c1_pt(64->512) + c2(512->256) + c3(256->128) + c4(128->k) + final ReLU, all
# intermediates VMEM-resident, lane-dense (k, tile_n) output stores.
# ----------------------------------------------------------------------------
def _head_kernel(x_ref, wb_ref, bf_ref, w1_ref, a1_ref, w2_ref, b2_ref,
                 w3_ref, b3_ref, w4t_ref, b4_ref, o_ref):
    x = x_ref[0]                                                 # (tile_n, 6) bf16
    # Recompute pointfeat = relu(bmm(x, trans) @ W_c1 + b) in VMEM (trivial
    # FLOPs) instead of reading a materialized (B, Np, 64) activation.
    h = jnp.dot(x, wb_ref[0], preferred_element_type=jnp.float32)
    h = jnp.maximum(h + bf_ref[0], 0.0).astype(jnp.bfloat16)     # (tile_n, 64)
    # Head conv1 on the never-materialized [global(1024) | pointfeat(64)]
    # concat: per-point 64->512 matmul + per-batch additive term a1.
    h = jnp.dot(h, w1_ref[0], preferred_element_type=jnp.float32)
    h = jnp.maximum(h + a1_ref[0], 0.0).astype(jnp.bfloat16)     # (tile_n, 512)
    h = jnp.dot(h, w2_ref[0], preferred_element_type=jnp.float32)
    h = jnp.maximum(h + b2_ref[0], 0.0).astype(jnp.bfloat16)     # (tile_n, 256)
    h = jnp.dot(h, w3_ref[0], preferred_element_type=jnp.float32)
    h = jnp.maximum(h + b3_ref[0], 0.0).astype(jnp.bfloat16)     # (tile_n, 128)
    # Lane-dense epilogue: y_T = W4^T h^T -> (k, tile_n) so the k=2 channel
    # dim sits on sublanes and the point dim on lanes (unmasked vst); the
    # wrapper then needs no transpose at all.
    y = jax.lax.dot_general(w4t_ref[0], h, (((1,), (1,)), ((), ())),
                            preferred_element_type=jnp.float32)  # (k, tile_n)
    o_ref[0] = jnp.maximum(y + b4_ref[0], 0.0)                   # final F.relu


def head_forward(x, w_b, b_feat, w1pt, add1, w2, b2, w3, b3, w4t, b4):
    """Fused segmentation head: (B, Np, 6) bf16 -> (B, k, Np) f32."""
    B, Np, Cin = x.shape
    C0 = w_b.shape[-1]          # 64
    C1 = w1pt.shape[-1]         # 512
    C2 = w2.shape[-1]           # 256
    C3 = w3.shape[-1]           # 128
    k = w4t.shape[0]            # 2

    tile_n = _tile_for(Np)
    grid = (B, Np // tile_n)

    return pl.pallas_call(
        _head_kernel,
        out_shape=jax.ShapeDtypeStruct((B, k, Np), jnp.float32),
        grid=grid,
        in_specs=[
            pl.BlockSpec((1, tile_n, Cin), lambda b, n: (b, n, 0)),
            pl.BlockSpec((1, Cin, C0), lambda b, n: (b, 0, 0)),
            pl.BlockSpec((1, 1, C0), lambda b, n: (0, 0, 0)),
            pl.BlockSpec((1, C0, C1), lambda b, n: (0, 0, 0)),
            pl.BlockSpec((1, 1, C1), lambda b, n: (b, 0, 0)),
            pl.BlockSpec((1, C1, C2), lambda b, n: (0, 0, 0)),
            pl.BlockSpec((1, 1, C2), lambda b, n: (0, 0, 0)),
            pl.BlockSpec((1, C2, C3), lambda b, n: (0, 0, 0)),
            pl.BlockSpec((1, 1, C3), lambda b, n: (0, 0, 0)),
            pl.BlockSpec((1, k, C3), lambda b, n: (0, 0, 0)),
            pl.BlockSpec((1, k, 1), lambda b, n: (0, 0, 0)),
        ],
        out_specs=pl.BlockSpec((1, k, tile_n), lambda b, n: (b, 0, n)),
        compiler_params=pltpu.CompilerParams(
            dimension_semantics=("parallel", "parallel"),
            vmem_limit_bytes=VMEM_LIMIT),
    )(x, w_b,
      b_feat.reshape(1, 1, C0).astype(jnp.float32),
      w1pt.reshape(1, C0, C1),
      add1.reshape(B, 1, C1).astype(jnp.float32),
      w2.reshape(1, C1, C2),
      b2.reshape(1, 1, C2).astype(jnp.float32),
      w3.reshape(1, C2, C3),
      b3.reshape(1, 1, C3).astype(jnp.float32),
      w4t.reshape(1, k, C3),
      b4.reshape(1, k, 1).astype(jnp.float32))


# ----------------------------------------------------------------------------
# Deterministic parameter initialization + BN folding / dtype prep
# ----------------------------------------------------------------------------
def _linear(key, cin, cout):
    k1, k2 = jax.random.split(key)
    # PyTorch y = x @ W.T + b; stored here directly as (cin, cout).
    w = 0.1 * jax.random.normal(k1, (cin, cout), jnp.float32)
    b = 0.05 * jax.random.normal(k2, (cout,), jnp.float32)
    return w, b


def _bn_affine(key, c, eps=1e-5):
    k1, k2, k3, k4 = jax.random.split(key, 4)
    gamma = 1.0 + 0.1 * jax.random.normal(k1, (c,), jnp.float32)
    beta = 0.05 * jax.random.normal(k2, (c,), jnp.float32)
    mean = 0.1 * jax.random.normal(k3, (c,), jnp.float32)
    var = 1.0 + 0.1 * jnp.abs(jax.random.normal(k4, (c,), jnp.float32))
    scale = gamma / jnp.sqrt(var + eps)
    shift = beta - mean * scale
    return scale, shift


def init_params(key):
    keys = jax.random.split(key, 24)
    p = {}
    # STN3d
    p["stn_c1"] = _linear(keys[0], 6, 64);       p["stn_bn1"] = _bn_affine(keys[1], 64)
    p["stn_c2"] = _linear(keys[2], 64, 128);     p["stn_bn2"] = _bn_affine(keys[3], 128)
    p["stn_c3"] = _linear(keys[4], 128, 1024);   p["stn_bn3"] = _bn_affine(keys[5], 1024)
    p["stn_fc1"] = _linear(keys[6], 1024, 512);  p["stn_bn4"] = _bn_affine(keys[7], 512)
    p["stn_fc2"] = _linear(keys[8], 512, 256);   p["stn_bn5"] = _bn_affine(keys[9], 256)
    p["stn_fc3"] = _linear(keys[10], 256, 36)
    # PointNetfeat
    p["feat_c1"] = _linear(keys[11], 6, 64);     p["feat_bn1"] = _bn_affine(keys[12], 64)
    p["feat_c2"] = _linear(keys[13], 64, 128);   p["feat_bn2"] = _bn_affine(keys[14], 128)
    p["feat_c3"] = _linear(keys[15], 128, 1024); p["feat_bn3"] = _bn_affine(keys[16], 1024)
    # PointNet_IID head
    p["c1"] = _linear(keys[17], 1088, 512);      p["bn1"] = _bn_affine(keys[18], 512)
    p["c2"] = _linear(keys[19], 512, 256);       p["bn2"] = _bn_affine(keys[20], 256)
    p["c3"] = _linear(keys[21], 256, 128);       p["bn3"] = _bn_affine(keys[22], 128)
    p["c4"] = _linear(keys[23], 128, 2)
    return p


def _fold_bn(wb, bn):
    (w, b), (scale, shift) = wb, bn
    return w * scale[None, :], b * scale + shift


def prepare_params(p):
    """Fold eval-mode BN into weights; cast per-point kernel weights to bf16."""
    def fold_bf16(wb, bn):
        w, b = _fold_bn(p[wb], p[bn])
        return w.astype(jnp.bfloat16), b

    q = {}
    # STN3d per-point layers (Pallas) + tiny per-batch FCs (plain jnp, f32).
    q["stn_c1"] = fold_bf16("stn_c1", "stn_bn1")
    q["stn_c2"] = fold_bf16("stn_c2", "stn_bn2")
    q["stn_c3"] = fold_bf16("stn_c3", "stn_bn3")
    q["stn_fc1"] = _fold_bn(p["stn_fc1"], p["stn_bn4"])
    q["stn_fc2"] = _fold_bn(p["stn_fc2"], p["stn_bn5"])
    q["stn_fc3"] = p["stn_fc3"]
    # PointNetfeat: conv1 stays f32 (composed with trans per batch at runtime).
    q["feat_c1"] = _fold_bn(p["feat_c1"], p["feat_bn1"])
    q["feat_c2"] = fold_bf16("feat_c2", "feat_bn2")
    q["feat_c3"] = fold_bf16("feat_c3", "feat_bn3")
    # Head conv1 split: rows 0..1023 multiply the repeated global feature
    # (handled as a per-batch additive term), rows 1024..1087 the point feature.
    w1, b1 = _fold_bn(p["c1"], p["bn1"])
    q["c1_glob"] = (w1[:1024], b1)                     # f32, plain jnp (B rows)
    q["c1_pt"] = w1[1024:].astype(jnp.bfloat16)        # (64, 512) bf16
    q["c2"] = fold_bf16("c2", "bn2")
    q["c3"] = fold_bf16("c3", "bn3")
    w4, b4 = p["c4"]
    q["c4"] = (w4.T.astype(jnp.bfloat16), b4)          # stored (k, 128) for lane-dense epilogue
    return q


# ----------------------------------------------------------------------------
# Forward pass (glue in JAX, hot per-point path in the 3 fused Pallas kernels)
# ----------------------------------------------------------------------------
def _dense(x, w, b, relu=False):
    # Tiny per-batch (M = B rows) layers: plain jnp beats a padded pallas_call.
    y = x @ w + b
    return jnp.maximum(y, 0.0) if relu else y


def pointnet_iid_forward(q, x_bcn, k=2):
    # x_bcn: PyTorch NCW layout (B, C=6, n_pts)
    B, _, N = x_bcn.shape
    # Cast to bf16 ONCE, transpose to channels-last, pad the point axis ONCE.
    x_bnc = jnp.transpose(x_bcn.astype(jnp.bfloat16), (0, 2, 1))  # (B, N, 6)
    tile_n = MAX_TILE_N if N > MAX_TILE_N else _round_up(N, 16)
    Np = _round_up(N, tile_n)
    if Np != N:
        x_bnc = jnp.pad(x_bnc, ((0, 0), (0, Np - N), (0, 0)))

    # ---- STN3d (one fused per-point launch + tiny FCs) --------------------
    g = encoder_max(x_bnc, *q["stn_c1"], *q["stn_c2"], *q["stn_c3"],
                    last_relu=True, n_valid=N)                    # (B, 1024)
    g = _dense(g, *q["stn_fc1"], relu=True)
    g = _dense(g, *q["stn_fc2"], relu=True)
    t = _dense(g, *q["stn_fc3"], relu=False)                      # (B, 36)
    iden = jnp.eye(6, dtype=jnp.float32).reshape(1, 36)
    trans = (t + iden).reshape(B, 6, 6)

    # ---- PointNetfeat (one fused per-point launch) -------------------------
    # bmm(x, trans) + conv1 fused: x @ (trans @ W_c1), per-batch weights.
    w_c1, b_c1 = q["feat_c1"]                                     # f32 (6,64), (64,)
    w_b = jnp.einsum("bij,jk->bik", trans, w_c1).astype(jnp.bfloat16)  # (B, 6, 64)
    gfeat = encoder_max(x_bnc, w_b, b_c1, *q["feat_c2"], *q["feat_c3"],
                        last_relu=False, n_valid=N)               # (B, 1024)

    # ---- Segmentation head (one fused per-point launch) --------------------
    # conv1 on the (never materialized) [global(1024) | pointfeat(64)] concat:
    # per-batch additive term from the global feature + per-point matmuls;
    # pointfeat is recomputed from x inside the head kernel.
    wg, b1 = q["c1_glob"]
    add1 = gfeat @ wg + b1                                        # (B, 512)
    out = head_forward(x_bnc, w_b, b_c1, q["c1_pt"], add1,
                       *q["c2"], *q["c3"], *q["c4"])              # (B, k, Np) f32

    out = out[:, :, :N]                                           # (B, k, N)
    return out, trans, None


# ----------------------------------------------------------------------------
if __name__ == "__main__":
    key = jax.random.PRNGKey(0)
    pkey, xkey = jax.random.split(key)
    params = init_params(pkey)
    prepared = prepare_params(params)

    B, N = 2, 20  # N=20 -> padded to 32: exercises the padded-row mask path
    x = jax.random.normal(xkey, (B, 6, N), jnp.float32)  # PyTorch NCW input

    fwd = jax.jit(pointnet_iid_forward)
    out, trans, trans_feat = fwd(prepared, x)
    out = jax.block_until_ready(out)
    trans = jax.block_until_ready(trans)

    assert out.shape == (B, 2, N), out.shape
    assert trans.shape == (B, 6, 6), trans.shape
    assert trans_feat is None
    assert bool(jnp.all(jnp.isfinite(out)))
    assert bool(jnp.all(out >= 0.0))  # final F.relu (per the PyTorch module)

    print("KERNEL_OK")
</pallas_src>

<mosaic_0001>
module attributes {stable_mosaic.version = 11 : i64} {
  func.func @_enc_max_kernel(%arg0: i32, %arg1: i32, %arg2: memref<1x32x6xbf16, #tpu.memory_space<vmem>>, %arg3: memref<1x6x64xbf16, #tpu.memory_space<vmem>>, %arg4: memref<1x1x64xf32, #tpu.memory_space<vmem>>, %arg5: memref<1x64x128xbf16, #tpu.memory_space<vmem>>, %arg6: memref<1x1x128xf32, #tpu.memory_space<vmem>>, %arg7: memref<1x128x1024xbf16, #tpu.memory_space<vmem>>, %arg8: memref<1x1x1024xf32, #tpu.memory_space<vmem>>, %arg9: memref<1x1x1024xf32, #tpu.memory_space<vmem>>, %arg10: memref<8x1024xf32, #tpu.memory_space<vmem>>) attributes {dimension_semantics = [#tpu.dimension_semantics<parallel>, #tpu.dimension_semantics<arbitrary>], iteration_bounds = array<i64: 2, 1>, scalar_prefetch = 0 : i64, scratch_operands = 1 : i64, tpu.core_type = #tpu.core_type<tc>, window_params = [{transform_indices = @transform_0, window_bounds = array<i64: 1, 32, 6>}, {pipeline_mode = #tpu.pipeline_mode<synchronous>, transform_indices = @transform_1, window_bounds = array<i64: 1, 6, 64>}, {pipeline_mode = #tpu.pipeline_mode<synchronous>, transform_indices = @transform_2, window_bounds = array<i64: 1, 1, 64>}, {pipeline_mode = #tpu.pipeline_mode<synchronous>, transform_indices = @transform_3, window_bounds = array<i64: 1, 64, 128>}, {pipeline_mode = #tpu.pipeline_mode<synchronous>, transform_indices = @transform_4, window_bounds = array<i64: 1, 1, 128>}, {pipeline_mode = #tpu.pipeline_mode<synchronous>, transform_indices = @transform_5, window_bounds = array<i64: 1, 128, 1024>}, {pipeline_mode = #tpu.pipeline_mode<synchronous>, transform_indices = @transform_6, window_bounds = array<i64: 1, 1, 1024>}, {transform_indices = @transform_7, window_bounds = array<i64: 1, 1, 1024>}]} {
    %c0_i32 = arith.constant 0 : i32
    %0 = arith.cmpi eq, %arg1, %c0_i32 : i32
    %1 = arith.extui %0 : i1 to i32
    %c0_i32_0 = arith.constant 0 : i32
    %2 = arith.cmpi ne, %1, %c0_i32_0 : i32
    scf.if %2 {
      %cst_32 = arith.constant 0xFF800000 : f32
      %43 = vector.broadcast %cst_32 : f32 to vector<8x1024xf32>
      %c0_33 = arith.constant 0 : index
      %c0_34 = arith.constant 0 : index
      %44 = vector.load %arg10[%c0_33, %c0_34] : memref<8x1024xf32, #tpu.memory_space<vmem>>, vector<8x1024xf32>
      tpu.vector_store %arg10[%c0_33, %c0_34], %43 {strides = array<i32>} : memref<8x1024xf32, #tpu.memory_space<vmem>>, vector<8x1024xf32>,
    } else {
    }
    %c0 = arith.constant 0 : index
    %c0_1 = arith.constant 0 : index
    %c0_2 = arith.constant 0 : index
    %3 = vector.load %arg2[%c0, %c0_1, %c0_2] : memref<1x32x6xbf16, #tpu.memory_space<vmem>>, vector<1x32x6xbf16>
    %4 = vector.shape_cast %3 : vector<1x32x6xbf16> to vector<32x6xbf16>
    %c0_3 = arith.constant 0 : index
    %c0_4 = arith.constant 0 : index
    %c0_5 = arith.constant 0 : index
    %5 = vector.load %arg3[%c0_3, %c0_4, %c0_5] : memref<1x6x64xbf16, #tpu.memory_space<vmem>>, vector<1x6x64xbf16>
    %6 = vector.shape_cast %5 : vector<1x6x64xbf16> to vector<6x64xbf16>
    %cst = arith.constant dense<0.000000e+00> : vector<32x64xf32>
    %7 = tpu.matmul %4, %6, %cst {dimension_numbers = #tpu.dot_dimension_numbers<[1], [0], [0], [1], [0, 0, 1, 1], [], []>} : vector<32x6xbf16>, vector<6x64xbf16>, vector<32x64xf32> -> vector<32x64xf32>
    %c0_6 = arith.constant 0 : index
    %c0_7 = arith.constant 0 : index
    %c0_8 = arith.constant 0 : index
    %8 = vector.load %arg4[%c0_6, %c0_7, %c0_8] : memref<1x1x64xf32, #tpu.memory_space<vmem>>, vector<1x1x64xf32>
    %9 = vector.shape_cast %8 : vector<1x1x64xf32> to vector<1x64xf32>
    %10 = vector.broadcast %9 : vector<1x64xf32> to vector<32x64xf32>
    %11 = arith.addf %7, %10 : vector<32x64xf32>
    %cst_9 = arith.constant 0.000000e+00 : f32
    %12 = vector.broadcast %cst_9 : f32 to vector<32x64xf32>
    %13 = arith.maximumf %11, %12 : vector<32x64xf32>
    %14 = arith.truncf %13 : vector<32x64xf32> to vector<32x64xbf16>
    %c0_10 = arith.constant 0 : index
    %c0_11 = arith.constant 0 : index
    %c0_12 = arith.constant 0 : index
    %15 = vector.load %arg5[%c0_10, %c0_11, %c0_12] : memref<1x64x128xbf16, #tpu.memory_space<vmem>>, vector<1x64x128xbf16>
    %16 = vector.shape_cast %15 : vector<1x64x128xbf16> to vector<64x128xbf16>
    %cst_13 = arith.constant dense<0.000000e+00> : vector<32x128xf32>
    %17 = tpu.matmul %14, %16, %cst_13 {dimension_numbers = #tpu.dot_dimension_numbers<[1], [0], [0], [1], [0, 0, 1, 1], [], []>} : vector<32x64xbf16>, vector<64x128xbf16>, vector<32x128xf32> -> vector<32x128xf32>
    %c0_14 = arith.constant 0 : index
    %c0_15 = arith.constant 0 : index
    %c0_16 = arith.constant 0 : index
    %18 = vector.load %arg6[%c0_14, %c0_15, %c0_16] : memref<1x1x128xf32, #tpu.memory_space<vmem>>, vector<1x1x128xf32>
    %19 = vector.shape_cast %18 : vector<1x1x128xf32> to vector<1x128xf32>
    %20 = vector.broadcast %19 : vector<1x128xf32> to vector<32x128xf32>
    %21 = arith.addf %17, %20 : vector<32x128xf32>
    %cst_17 = arith.constant 0.000000e+00 : f32
    %22 = vector.broadcast %cst_17 : f32 to vector<32x128xf32>
    %23 = arith.maximumf %21, %22 : vector<32x128xf32>
    %24 = arith.truncf %23 : vector<32x128xf32> to vector<32x128xbf16>
    %c0_18 = arith.constant 0 : index
    %c0_19 = arith.constant 0 : index
    %c0_20 = arith.constant 0 : index
    %25 = vector.load %arg7[%c0_18, %c0_19, %c0_20] : memref<1x128x1024xbf16, #tpu.memory_space<vmem>>, vector<1x128x1024xbf16>
    %26 = vector.shape_cast %25 : vector<1x128x1024xbf16> to vector<128x1024xbf16>
    %cst_21 = arith.constant dense<0.000000e+00> : vector<32x1024xf32>
    %27 = tpu.matmul %24, %26, %cst_21 {dimension_numbers = #tpu.dot_dimension_numbers<[1], [0], [0], [1], [0, 0, 1, 1], [], []>} : vector<32x128xbf16>, vector<128x1024xbf16>, vector<32x1024xf32> -> vector<32x1024xf32>
    %c0_22 = arith.constant 0 : index
    %c0_23 = arith.constant 0 : index
    %c0_24 = arith.constant 0 : index
    %28 = vector.load %arg8[%c0_22, %c0_23, %c0_24] : memref<1x1x1024xf32, #tpu.memory_space<vmem>>, vector<1x1x1024xf32>
    %29 = vector.shape_cast %28 : vector<1x1x1024xf32> to vector<1x1024xf32>
    %30 = vector.broadcast %29 : vector<1x1024xf32> to vector<32x1024xf32>
    %31 = arith.addf %27, %30 : vector<32x1024xf32>
    %cst_25 = arith.constant 0.000000e+00 : f32
    %32 = vector.broadcast %cst_25 : f32 to vector<32x1024xf32>
    %33 = arith.maximumf %31, %32 : vector<32x1024xf32>
    %c0_i32_26 = arith.constant 0 : i32
    %34 = arith.cmpi ne, %arg1, %c0_i32_26 : i32
    %35 = arith.extui %34 : i1 to i32
    %c0_i32_27 = arith.constant 0 : i32
    %36 = arith.cmpi ne, %35, %c0_i32_27 : i32
    scf.if %36 {
      %43 = vector.shape_cast %33 : vector<32x1024xf32> to vector<4x8x1024xf32>
      %c0_32 = arith.constant 0 : index
      %c0_33 = arith.constant 0 : index
      %44 = vector.load %arg10[%c0_32, %c0_33] : memref<8x1024xf32, #tpu.memory_space<vmem>>, vector<8x1024xf32>
      %cst_34 = arith.constant dense<0xFF800000> : vector<8x1024xf32>
      %45 = vector.multi_reduction <maximumf>, %43, %cst_34 [0] : vector<4x8x1024xf32> to vector<8x1024xf32>
      %46 = arith.maximumf %44, %45 : vector<8x1024xf32>
      %c0_35 = arith.constant 0 : index
      %c0_36 = arith.constant 0 : index
      %47 = vector.load %arg10[%c0_35, %c0_36] : memref<8x1024xf32, #tpu.memory_space<vmem>>, vector<8x1024xf32>
      tpu.vector_store %arg10[%c0_35, %c0_36], %46 {strides = array<i32>} : memref<8x1024xf32, #tpu.memory_space<vmem>>, vector<8x1024xf32>,
    } else {
    }
    %c0_i32_28 = arith.constant 0 : i32
    %37 = arith.cmpi eq, %arg1, %c0_i32_28 : i32
    %38 = arith.extui %37 : i1 to i32
    %c0_i32_29 = arith.constant 0 : i32
    %39 = arith.cmpi ne, %38, %c0_i32_29 : i32
    scf.if %39 {
      %c32_i32 = arith.constant 32 : i32
      %43 = arith.muli %arg1, %c32_i32 : i32
      %44 = tpu.iota {dimensions = array<i32: 0>} : vector<32x1xi32>
      %45 = vector.broadcast %43 : i32 to vector<32x1xi32>
      %46 = arith.addi %45, %44 : vector<32x1xi32>
      %c20_i32 = arith.constant 20 : i32
      %47 = vector.broadcast %c20_i32 : i32 to vector<32x1xi32>
      %48 = arith.cmpi slt, %46, %47 : vector<32x1xi32>
      %cst_32 = arith.constant 0xFF800000 : f32
      %49 = vector.shape_cast %48 : vector<32x1xi1> to vector<32x1xi1>
      %50 = vector.broadcast %49 : vector<32x1xi1> to vector<32x1024xi1>
      %51 = vector.broadcast %cst_32 : f32 to vector<32x1024xf32>
      %52 = arith.select %50, %33, %51 : vector<32x1024xi1>, vector<32x1024xf32>
      %53 = vector.shape_cast %52 : vector<32x1024xf32> to vector<4x8x1024xf32>
      %c0_33 = arith.constant 0 : index
      %c0_34 = arith.constant 0 : index
      %54 = vector.load %arg10[%c0_33, %c0_34] : memref<8x1024xf32, #tpu.memory_space<vmem>>, vector<8x1024xf32>
      %cst_35 = arith.constant dense<0xFF800000> : vector<8x1024xf32>
      %55 = vector.multi_reduction <maximumf>, %53, %cst_35 [0] : vector<4x8x1024xf32> to vector<8x1024xf32>
      %56 = arith.maximumf %54, %55 : vector<8x1024xf32>
      %c0_36 = arith.constant 0 : index
      %c0_37 = arith.constant 0 : index
      %57 = vector.load %arg10[%c0_36, %c0_37] : memref<8x1024xf32, #tpu.memory_space<vmem>>, vector<8x1024xf32>
      tpu.vector_store %arg10[%c0_36, %c0_37], %56 {strides = array<i32>} : memref<8x1024xf32, #tpu.memory_space<vmem>>, vector<8x1024xf32>,
    } else {
    }
    %c0_i32_30 = arith.constant 0 : i32
    %40 = arith.cmpi eq, %arg1, %c0_i32_30 : i32
    %41 = arith.extui %40 : i1 to i32
    %c0_i32_31 = arith.constant 0 : i32
    %42 = arith.cmpi ne, %41, %c0_i32_31 : i32
    scf.if %42 {
      %c0_32 = arith.constant 0 : index
      %c0_33 = arith.constant 0 : index
      %43 = vector.load %arg10[%c0_32, %c0_33] : memref<8x1024xf32, #tpu.memory_space<vmem>>, vector<8x1024xf32>
      %cst_34 = arith.constant dense<0xFF800000> : vector<1024xf32>
      %44 = vector.multi_reduction <maximumf>, %43, %cst_34 [0] : vector<8x1024xf32> to vector<1024xf32>
      %45 = vector.shape_cast %44 : vector<1024xf32> to vector<1x1024xf32>
      %c0_35 = arith.constant 0 : index
      %c0_36 = arith.constant 0 : index
      %c0_37 = arith.constant 0 : index
      %46 = vector.load %arg9[%c0_35, %c0_36, %c0_37] : memref<1x1x1024xf32, #tpu.memory_space<vmem>>, vector<1x1x1024xf32>
      %47 = vector.shape_cast %46 : vector<1x1x1024xf32> to vector<1x1024xf32>
      %48 = vector.shape_cast %45 : vector<1x1024xf32> to vector<1x1x1024xf32>
      tpu.vector_store %arg9[%c0_35, %c0_36, %c0_37], %48 {strides = array<i32>} : memref<1x1x1024xf32, #tpu.memory_space<vmem>>, vector<1x1x1024xf32>,
    } else {
    }
    return
  }
  func.func @transform_0(%arg0: i32, %arg1: i32) -> (i32, i32, i32) {
    %c0_i32 = arith.constant 0 : i32
    %c0_i32_0 = arith.constant 0 : i32
    return %arg0, %arg1, %c0_i32 : i32, i32, i32
  }
  func.func @transform_1(%arg0: i32, %arg1: i32) -> (i32, i32, i32) {
    %c0_i32 = arith.constant 0 : i32
    %c0_i32_0 = arith.constant 0 : i32
    %c0_i32_1 = arith.constant 0 : i32
    %c0_i32_2 = arith.constant 0 : i32
    return %c0_i32, %c0_i32_0, %c0_i32_1 : i32, i32, i32
  }
  func.func @transform_2(%arg0: i32, %arg1: i32) -> (i32, i32, i32) {
    %c0_i32 = arith.constant 0 : i32
    %c0_i32_0 = arith.constant 0 : i32
    %c0_i32_1 = arith.constant 0 : i32
    %c0_i32_2 = arith.constant 0 : i32
    return %c0_i32, %c0_i32_0, %c0_i32_1 : i32, i32, i32
  }
  func.func @transform_3(%arg0: i32, %arg1: i32) -> (i32, i32, i32) {
    %c0_i32 = arith.constant 0 : i32
    %c0_i32_0 = arith.constant 0 : i32
    %c0_i32_1 = arith.constant 0 : i32
    %c0_i32_2 = arith.constant 0 : i32
    return %c0_i32, %c0_i32_0, %c0_i32_1 : i32, i32, i32
  }
  func.func @transform_4(%arg0: i32, %arg1: i32) -> (i32, i32, i32) {
    %c0_i32 = arith.constant 0 : i32
    %c0_i32_0 = arith.constant 0 : i32
    %c0_i32_1 = arith.constant 0 : i32
    %c0_i32_2 = arith.constant 0 : i32
    return %c0_i32, %c0_i32_0, %c0_i32_1 : i32, i32, i32
  }
  func.func @transform_5(%arg0: i32, %arg1: i32) -> (i32, i32, i32) {
    %c0_i32 = arith.constant 0 : i32
    %c0_i32_0 = arith.constant 0 : i32
    %c0_i32_1 = arith.constant 0 : i32
    %c0_i32_2 = arith.constant 0 : i32
    return %c0_i32, %c0_i32_0, %c0_i32_1 : i32, i32, i32
  }
  func.func @transform_6(%arg0: i32, %arg1: i32) -> (i32, i32, i32) {
    %c0_i32 = arith.constant 0 : i32
    %c0_i32_0 = arith.constant 0 : i32
    %c0_i32_1 = arith.constant 0 : i32
    %c0_i32_2 = arith.constant 0 : i32
    return %c0_i32, %c0_i32_0, %c0_i32_1 : i32, i32, i32
  }
  func.func @transform_7(%arg0: i32, %arg1: i32) -> (i32, i32, i32) {
    %c0_i32 = arith.constant 0 : i32
    %c0_i32_0 = arith.constant 0 : i32
    %c0_i32_1 = arith.constant 0 : i32
    return %arg0, %c0_i32, %c0_i32_0 : i32, i32, i32
  }
}

module attributes {stable_mosaic.version = 11 : i64} {
  func.func @_enc_max_kernel(%arg0: i32, %arg1: i32, %arg2: memref<1x32x6xbf16, #tpu.memory_space<vmem>>, %arg3: memref<1x6x64xbf16, #tpu.memory_space<vmem>>, %arg4: memref<1x1x64xf32, #tpu.memory_space<vmem>>, %arg5: memref<1x64x128xbf16, #tpu.memory_space<vmem>>, %arg6: memref<1x1x128xf32, #tpu.memory_space<vmem>>, %arg7: memref<1x128x1024xbf16, #tpu.memory_space<vmem>>, %arg8: memref<1x1x1024xf32, #tpu.memory_space<vmem>>, %arg9: memref<1x1x1024xf32, #tpu.memory_space<vmem>>, %arg10: memref<8x1024xf32, #tpu.memory_space<vmem>>) attributes {dimension_semantics = [#tpu.dimension_semantics<parallel>, #tpu.dimension_semantics<arbitrary>], iteration_bounds = array<i64: 2, 1>, scalar_prefetch = 0 : i64, scratch_operands = 1 : i64, tpu.core_type = #tpu.core_type<tc>, window_params = [{transform_indices = @transform_0, window_bounds = array<i64: 1, 32, 6>}, {transform_indices = @transform_1, window_bounds = array<i64: 1, 6, 64>}, {pipeline_mode = #tpu.pipeline_mode<synchronous>, transform_indices = @transform_2, window_bounds = array<i64: 1, 1, 64>}, {pipeline_mode = #tpu.pipeline_mode<synchronous>, transform_indices = @transform_3, window_bounds = array<i64: 1, 64, 128>}, {pipeline_mode = #tpu.pipeline_mode<synchronous>, transform_indices = @transform_4, window_bounds = array<i64: 1, 1, 128>}, {pipeline_mode = #tpu.pipeline_mode<synchronous>, transform_indices = @transform_5, window_bounds = array<i64: 1, 128, 1024>}, {pipeline_mode = #tpu.pipeline_mode<synchronous>, transform_indices = @transform_6, window_bounds = array<i64: 1, 1, 1024>}, {transform_indices = @transform_7, window_bounds = array<i64: 1, 1, 1024>}]} {
    %c0_i32 = arith.constant 0 : i32
    %0 = arith.cmpi eq, %arg1, %c0_i32 : i32
    %1 = arith.extui %0 : i1 to i32
    %c0_i32_0 = arith.constant 0 : i32
    %2 = arith.cmpi ne, %1, %c0_i32_0 : i32
    scf.if %2 {
      %cst_31 = arith.constant 0xFF800000 : f32
      %41 = vector.broadcast %cst_31 : f32 to vector<8x1024xf32>
      %c0_32 = arith.constant 0 : index
      %c0_33 = arith.constant 0 : index
      %42 = vector.load %arg10[%c0_32, %c0_33] : memref<8x1024xf32, #tpu.memory_space<vmem>>, vector<8x1024xf32>
      tpu.vector_store %arg10[%c0_32, %c0_33], %41 {strides = array<i32>} : memref<8x1024xf32, #tpu.memory_space<vmem>>, vector<8x1024xf32>,
    } else {
    }
    %c0 = arith.constant 0 : index
    %c0_1 = arith.constant 0 : index
    %c0_2 = arith.constant 0 : index
    %3 = vector.load %arg2[%c0, %c0_1, %c0_2] : memref<1x32x6xbf16, #tpu.memory_space<vmem>>, vector<1x32x6xbf16>
    %4 = vector.shape_cast %3 : vector<1x32x6xbf16> to vector<32x6xbf16>
    %c0_3 = arith.constant 0 : index
    %c0_4 = arith.constant 0 : index
    %c0_5 = arith.constant 0 : index
    %5 = vector.load %arg3[%c0_3, %c0_4, %c0_5] : memref<1x6x64xbf16, #tpu.memory_space<vmem>>, vector<1x6x64xbf16>
    %6 = vector.shape_cast %5 : vector<1x6x64xbf16> to vector<6x64xbf16>
    %cst = arith.constant dense<0.000000e+00> : vector<32x64xf32>
    %7 = tpu.matmul %4, %6, %cst {dimension_numbers = #tpu.dot_dimension_numbers<[1], [0], [0], [1], [0, 0, 1, 1], [], []>} : vector<32x6xbf16>, vector<6x64xbf16>, vector<32x64xf32> -> vector<32x64xf32>
    %c0_6 = arith.constant 0 : index
    %c0_7 = arith.constant 0 : index
    %c0_8 = arith.constant 0 : index
    %8 = vector.load %arg4[%c0_6, %c0_7, %c0_8] : memref<1x1x64xf32, #tpu.memory_space<vmem>>, vector<1x1x64xf32>
    %9 = vector.shape_cast %8 : vector<1x1x64xf32> to vector<1x64xf32>
    %10 = vector.broadcast %9 : vector<1x64xf32> to vector<32x64xf32>
    %11 = arith.addf %7, %10 : vector<32x64xf32>
    %cst_9 = arith.constant 0.000000e+00 : f32
    %12 = vector.broadcast %cst_9 : f32 to vector<32x64xf32>
    %13 = arith.maximumf %11, %12 : vector<32x64xf32>
    %14 = arith.truncf %13 : vector<32x64xf32> to vector<32x64xbf16>
    %c0_10 = arith.constant 0 : index
    %c0_11 = arith.constant 0 : index
    %c0_12 = arith.constant 0 : index
    %15 = vector.load %arg5[%c0_10, %c0_11, %c0_12] : memref<1x64x128xbf16, #tpu.memory_space<vmem>>, vector<1x64x128xbf16>
    %16 = vector.shape_cast %15 : vector<1x64x128xbf16> to vector<64x128xbf16>
    %cst_13 = arith.constant dense<0.000000e+00> : vector<32x128xf32>
    %17 = tpu.matmul %14, %16, %cst_13 {dimension_numbers = #tpu.dot_dimension_numbers<[1], [0], [0], [1], [0, 0, 1, 1], [], []>} : vector<32x64xbf16>, vector<64x128xbf16>, vector<32x128xf32> -> vector<32x128xf32>
    %c0_14 = arith.constant 0 : index
    %c0_15 = arith.constant 0 : index
    %c0_16 = arith.constant 0 : index
    %18 = vector.load %arg6[%c0_14, %c0_15, %c0_16] : memref<1x1x128xf32, #tpu.memory_space<vmem>>, vector<1x1x128xf32>
    %19 = vector.shape_cast %18 : vector<1x1x128xf32> to vector<1x128xf32>
    %20 = vector.broadcast %19 : vector<1x128xf32> to vector<32x128xf32>
    %21 = arith.addf %17, %20 : vector<32x128xf32>
    %cst_17 = arith.constant 0.000000e+00 : f32
    %22 = vector.broadcast %cst_17 : f32 to vector<32x128xf32>
    %23 = arith.maximumf %21, %22 : vector<32x128xf32>
    %24 = arith.truncf %23 : vector<32x128xf32> to vector<32x128xbf16>
    %c0_18 = arith.constant 0 : index
    %c0_19 = arith.constant 0 : index
    %c0_20 = arith.constant 0 : index
    %25 = vector.load %arg7[%c0_18, %c0_19, %c0_20] : memref<1x128x1024xbf16, #tpu.memory_space<vmem>>, vector<1x128x1024xbf16>
    %26 = vector.shape_cast %25 : vector<1x128x1024xbf16> to vector<128x1024xbf16>
    %cst_21 = arith.constant dense<0.000000e+00> : vector<32x1024xf32>
    %27 = tpu.matmul %24, %26, %cst_21 {dimension_numbers = #tpu.dot_dimension_numbers<[1], [0], [0], [1], [0, 0, 1, 1], [], []>} : vector<32x128xbf16>, vector<128x1024xbf16>, vector<32x1024xf32> -> vector<32x1024xf32>
    %c0_22 = arith.constant 0 : index
    %c0_23 = arith.constant 0 : index
    %c0_24 = arith.constant 0 : index
    %28 = vector.load %arg8[%c0_22, %c0_23, %c0_24] : memref<1x1x1024xf32, #tpu.memory_space<vmem>>, vector<1x1x1024xf32>
    %29 = vector.shape_cast %28 : vector<1x1x1024xf32> to vector<1x1024xf32>
    %30 = vector.broadcast %29 : vector<1x1024xf32> to vector<32x1024xf32>
    %31 = arith.addf %27, %30 : vector<32x1024xf32>
    %c0_i32_25 = arith.constant 0 : i32
    %32 = arith.cmpi ne, %arg1, %c0_i32_25 : i32
    %33 = arith.extui %32 : i1 to i32
    %c0_i32_26 = arith.constant 0 : i32
    %34 = arith.cmpi ne, %33, %c0_i32_26 : i32
    scf.if %34 {
      %41 = vector.shape_cast %31 : vector<32x1024xf32> to vector<4x8x1024xf32>
      %c0_31 = arith.constant 0 : index
      %c0_32 = arith.constant 0 : index
      %42 = vector.load %arg10[%c0_31, %c0_32] : memref<8x1024xf32, #tpu.memory_space<vmem>>, vector<8x1024xf32>
      %cst_33 = arith.constant dense<0xFF800000> : vector<8x1024xf32>
      %43 = vector.multi_reduction <maximumf>, %41, %cst_33 [0] : vector<4x8x1024xf32> to vector<8x1024xf32>
      %44 = arith.maximumf %42, %43 : vector<8x1024xf32>
      %c0_34 = arith.constant 0 : index
      %c0_35 = arith.constant 0 : index
      %45 = vector.load %arg10[%c0_34, %c0_35] : memref<8x1024xf32, #tpu.memory_space<vmem>>, vector<8x1024xf32>
      tpu.vector_store %arg10[%c0_34, %c0_35], %44 {strides = array<i32>} : memref<8x1024xf32, #tpu.memory_space<vmem>>, vector<8x1024xf32>,
    } else {
    }
    %c0_i32_27 = arith.constant 0 : i32
    %35 = arith.cmpi eq, %arg1, %c0_i32_27 : i32
    %36 = arith.extui %35 : i1 to i32
    %c0_i32_28 = arith.constant 0 : i32
    %37 = arith.cmpi ne, %36, %c0_i32_28 : i32
    scf.if %37 {
      %c32_i32 = arith.constant 32 : i32
      %41 = arith.muli %arg1, %c32_i32 : i32
      %42 = tpu.iota {dimensions = array<i32: 0>} : vector<32x1xi32>
      %43 = vector.broadcast %41 : i32 to vector<32x1xi32>
      %44 = arith.addi %43, %42 : vector<32x1xi32>
      %c20_i32 = arith.constant 20 : i32
      %45 = vector.broadcast %c20_i32 : i32 to vector<32x1xi32>
      %46 = arith.cmpi slt, %44, %45 : vector<32x1xi32>
      %cst_31 = arith.constant 0xFF800000 : f32
      %47 = vector.shape_cast %46 : vector<32x1xi1> to vector<32x1xi1>
      %48 = vector.broadcast %47 : vector<32x1xi1> to vector<32x1024xi1>
      %49 = vector.broadcast %cst_31 : f32 to vector<32x1024xf32>
      %50 = arith.select %48, %31, %49 : vector<32x1024xi1>, vector<32x1024xf32>
      %51 = vector.shape_cast %50 : vector<32x1024xf32> to vector<4x8x1024xf32>
      %c0_32 = arith.constant 0 : index
      %c0_33 = arith.constant 0 : index
      %52 = vector.load %arg10[%c0_32, %c0_33] : memref<8x1024xf32, #tpu.memory_space<vmem>>, vector<8x1024xf32>
      %cst_34 = arith.constant dense<0xFF800000> : vector<8x1024xf32>
      %53 = vector.multi_reduction <maximumf>, %51, %cst_34 [0] : vector<4x8x1024xf32> to vector<8x1024xf32>
      %54 = arith.maximumf %52, %53 : vector<8x1024xf32>
      %c0_35 = arith.constant 0 : index
      %c0_36 = arith.constant 0 : index
      %55 = vector.load %arg10[%c0_35, %c0_36] : memref<8x1024xf32, #tpu.memory_space<vmem>>, vector<8x1024xf32>
      tpu.vector_store %arg10[%c0_35, %c0_36], %54 {strides = array<i32>} : memref<8x1024xf32, #tpu.memory_space<vmem>>, vector<8x1024xf32>,
    } else {
    }
    %c0_i32_29 = arith.constant 0 : i32
    %38 = arith.cmpi eq, %arg1, %c0_i32_29 : i32
    %39 = arith.extui %38 : i1 to i32
    %c0_i32_30 = arith.constant 0 : i32
    %40 = arith.cmpi ne, %39, %c0_i32_30 : i32
    scf.if %40 {
      %c0_31 = arith.constant 0 : index
      %c0_32 = arith.constant 0 : index
      %41 = vector.load %arg10[%c0_31, %c0_32] : memref<8x1024xf32, #tpu.memory_space<vmem>>, vector<8x1024xf32>
      %cst_33 = arith.constant dense<0xFF800000> : vector<1024xf32>
      %42 = vector.multi_reduction <maximumf>, %41, %cst_33 [0] : vector<8x1024xf32> to vector<1024xf32>
      %43 = vector.shape_cast %42 : vector<1024xf32> to vector<1x1024xf32>
      %c0_34 = arith.constant 0 : index
      %c0_35 = arith.constant 0 : index
      %c0_36 = arith.constant 0 : index
      %44 = vector.load %arg9[%c0_34, %c0_35, %c0_36] : memref<1x1x1024xf32, #tpu.memory_space<vmem>>, vector<1x1x1024xf32>
      %45 = vector.shape_cast %44 : vector<1x1x1024xf32> to vector<1x1024xf32>
      %46 = vector.shape_cast %43 : vector<1x1024xf32> to vector<1x1x1024xf32>
      tpu.vector_store %arg9[%c0_34, %c0_35, %c0_36], %46 {strides = array<i32>} : memref<1x1x1024xf32, #tpu.memory_space<vmem>>, vector<1x1x1024xf32>,
    } else {
    }
    return
  }
  func.func @transform_0(%arg0: i32, %arg1: i32) -> (i32, i32, i32) {
    %c0_i32 = arith.constant 0 : i32
    %c0_i32_0 = arith.constant 0 : i32
    return %arg0, %arg1, %c0_i32 : i32, i32, i32
  }
  func.func @transform_1(%arg0: i32, %arg1: i32) -> (i32, i32, i32) {
    %c0_i32 = arith.constant 0 : i32
    %c0_i32_0 = arith.constant 0 : i32
    %c0_i32_1 = arith.constant 0 : i32
    return %arg0, %c0_i32, %c0_i32_0 : i32, i32, i32
  }
  func.func @transform_2(%arg0: i32, %arg1: i32) -> (i32, i32, i32) {
    %c0_i32 = arith.constant 0 : i32
    %c0_i32_0 = arith.constant 0 : i32
    %c0_i32_1 = arith.constant 0 : i32
    %c0_i32_2 = arith.constant 0 : i32
    return %c0_i32, %c0_i32_0, %c0_i32_1 : i32, i32, i32
  }
  func.func @transform_3(%arg0: i32, %arg1: i32) -> (i32, i32, i32) {
    %c0_i32 = arith.constant 0 : i32
    %c0_i32_0 = arith.constant 0 : i32
    %c0_i32_1 = arith.constant 0 : i32
    %c0_i32_2 = arith.constant 0 : i32
    return %c0_i32, %c0_i32_0, %c0_i32_1 : i32, i32, i32
  }
  func.func @transform_4(%arg0: i32, %arg1: i32) -> (i32, i32, i32) {
    %c0_i32 = arith.constant 0 : i32
    %c0_i32_0 = arith.constant 0 : i32
    %c0_i32_1 = arith.constant 0 : i32
    %c0_i32_2 = arith.constant 0 : i32
    return %c0_i32, %c0_i32_0, %c0_i32_1 : i32, i32, i32
  }
  func.func @transform_5(%arg0: i32, %arg1: i32) -> (i32, i32, i32) {
    %c0_i32 = arith.constant 0 : i32
    %c0_i32_0 = arith.constant 0 : i32
    %c0_i32_1 = arith.constant 0 : i32
    %c0_i32_2 = arith.constant 0 : i32
    return %c0_i32, %c0_i32_0, %c0_i32_1 : i32, i32, i32
  }
  func.func @transform_6(%arg0: i32, %arg1: i32) -> (i32, i32, i32) {
    %c0_i32 = arith.constant 0 : i32
    %c0_i32_0 = arith.constant 0 : i32
    %c0_i32_1 = arith.constant 0 : i32
    %c0_i32_2 = arith.constant 0 : i32
    return %c0_i32, %c0_i32_0, %c0_i32_1 : i32, i32, i32
  }
  func.func @transform_7(%arg0: i32, %arg1: i32) -> (i32, i32, i32) {
    %c0_i32 = arith.constant 0 : i32
    %c0_i32_0 = arith.constant 0 : i32
    %c0_i32_1 = arith.constant 0 : i32
    return %arg0, %c0_i32, %c0_i32_0 : i32, i32, i32
  }
}

module attributes {stable_mosaic.version = 11 : i64} {
  func.func @_head_kernel(%arg0: i32, %arg1: i32, %arg2: memref<1x32x6xbf16, #tpu.memory_space<vmem>>, %arg3: memref<1x6x64xbf16, #tpu.memory_space<vmem>>, %arg4: memref<1x1x64xf32, #tpu.memory_space<vmem>>, %arg5: memref<1x64x512xbf16, #tpu.memory_space<vmem>>, %arg6: memref<1x1x512xf32, #tpu.memory_space<vmem>>, %arg7: memref<1x512x256xbf16, #tpu.memory_space<vmem>>, %arg8: memref<1x1x256xf32, #tpu.memory_space<vmem>>, %arg9: memref<1x256x128xbf16, #tpu.memory_space<vmem>>, %arg10: memref<1x1x128xf32, #tpu.memory_space<vmem>>, %arg11: memref<1x2x128xbf16, #tpu.memory_space<vmem>>, %arg12: memref<1x2x1xf32, #tpu.memory_space<vmem>>, %arg13: memref<1x2x32xf32, #tpu.memory_space<vmem>>) attributes {dimension_semantics = [#tpu.dimension_semantics<parallel>, #tpu.dimension_semantics<parallel>], iteration_bounds = array<i64: 2, 1>, scalar_prefetch = 0 : i64, scratch_operands = 0 : i64, tpu.core_type = #tpu.core_type<tc>, window_params = [{transform_indices = @transform_0, window_bounds = array<i64: 1, 32, 6>}, {transform_indices = @transform_1, window_bounds = array<i64: 1, 6, 64>}, {pipeline_mode = #tpu.pipeline_mode<synchronous>, transform_indices = @transform_2, window_bounds = array<i64: 1, 1, 64>}, {pipeline_mode = #tpu.pipeline_mode<synchronous>, transform_indices = @transform_3, window_bounds = array<i64: 1, 64, 512>}, {transform_indices = @transform_4, window_bounds = array<i64: 1, 1, 512>}, {pipeline_mode = #tpu.pipeline_mode<synchronous>, transform_indices = @transform_5, window_bounds = array<i64: 1, 512, 256>}, {pipeline_mode = #tpu.pipeline_mode<synchronous>, transform_indices = @transform_6, window_bounds = array<i64: 1, 1, 256>}, {pipeline_mode = #tpu.pipeline_mode<synchronous>, transform_indices = @transform_7, window_bounds = array<i64: 1, 256, 128>}, {pipeline_mode = #tpu.pipeline_mode<synchronous>, transform_indices = @transform_8, window_bounds = array<i64: 1, 1, 128>}, {pipeline_mode = #tpu.pipeline_mode<synchronous>, transform_indices = @transform_9, window_bounds = array<i64: 1, 2, 128>}, {pipeline_mode = #tpu.pipeline_mode<synchronous>, transform_indices = @transform_10, window_bounds = array<i64: 1, 2, 1>}, {transform_indices = @transform_11, window_bounds = array<i64: 1, 2, 32>}]} {
    %c0 = arith.constant 0 : index
    %c0_0 = arith.constant 0 : index
    %c0_1 = arith.constant 0 : index
    %0 = vector.load %arg2[%c0, %c0_0, %c0_1] : memref<1x32x6xbf16, #tpu.memory_space<vmem>>, vector<1x32x6xbf16>
    %1 = vector.shape_cast %0 : vector<1x32x6xbf16> to vector<32x6xbf16>
    %c0_2 = arith.constant 0 : index
    %c0_3 = arith.constant 0 : index
    %c0_4 = arith.constant 0 : index
    %2 = vector.load %arg3[%c0_2, %c0_3, %c0_4] : memref<1x6x64xbf16, #tpu.memory_space<vmem>>, vector<1x6x64xbf16>
    %3 = vector.shape_cast %2 : vector<1x6x64xbf16> to vector<6x64xbf16>
    %cst = arith.constant dense<0.000000e+00> : vector<32x64xf32>
    %4 = tpu.matmul %1, %3, %cst {dimension_numbers = #tpu.dot_dimension_numbers<[1], [0], [0], [1], [0, 0, 1, 1], [], []>} : vector<32x6xbf16>, vector<6x64xbf16>, vector<32x64xf32> -> vector<32x64xf32>
    %c0_5 = arith.constant 0 : index
    %c0_6 = arith.constant 0 : index
    %c0_7 = arith.constant 0 : index
    %5 = vector.load %arg4[%c0_5, %c0_6, %c0_7] : memref<1x1x64xf32, #tpu.memory_space<vmem>>, vector<1x1x64xf32>
    %6 = vector.shape_cast %5 : vector<1x1x64xf32> to vector<1x64xf32>
    %7 = vector.broadcast %6 : vector<1x64xf32> to vector<32x64xf32>
    %8 = arith.addf %4, %7 : vector<32x64xf32>
    %cst_8 = arith.constant 0.000000e+00 : f32
    %9 = vector.broadcast %cst_8 : f32 to vector<32x64xf32>
    %10 = arith.maximumf %8, %9 : vector<32x64xf32>
    %11 = arith.truncf %10 : vector<32x64xf32> to vector<32x64xbf16>
    %c0_9 = arith.constant 0 : index
    %c0_10 = arith.constant 0 : index
    %c0_11 = arith.constant 0 : index
    %12 = vector.load %arg5[%c0_9, %c0_10, %c0_11] : memref<1x64x512xbf16, #tpu.memory_space<vmem>>, vector<1x64x512xbf16>
    %13 = vector.shape_cast %12 : vector<1x64x512xbf16> to vector<64x512xbf16>
    %cst_12 = arith.constant dense<0.000000e+00> : vector<32x512xf32>
    %14 = tpu.matmul %11, %13, %cst_12 {dimension_numbers = #tpu.dot_dimension_numbers<[1], [0], [0], [1], [0, 0, 1, 1], [], []>} : vector<32x64xbf16>, vector<64x512xbf16>, vector<32x512xf32> -> vector<32x512xf32>
    %c0_13 = arith.constant 0 : index
    %c0_14 = arith.constant 0 : index
    %c0_15 = arith.constant 0 : index
    %15 = vector.load %arg6[%c0_13, %c0_14, %c0_15] : memref<1x1x512xf32, #tpu.memory_space<vmem>>, vector<1x1x512xf32>
    %16 = vector.shape_cast %15 : vector<1x1x512xf32> to vector<1x512xf32>
    %17 = vector.broadcast %16 : vector<1x512xf32> to vector<32x512xf32>
    %18 = arith.addf %14, %17 : vector<32x512xf32>
    %cst_16 = arith.constant 0.000000e+00 : f32
    %19 = vector.broadcast %cst_16 : f32 to vector<32x512xf32>
    %20 = arith.maximumf %18, %19 : vector<32x512xf32>
    %21 = arith.truncf %20 : vector<32x512xf32> to vector<32x512xbf16>
    %c0_17 = arith.constant 0 : index
    %c0_18 = arith.constant 0 : index
    %c0_19 = arith.constant 0 : index
    %22 = vector.load %arg7[%c0_17, %c0_18, %c0_19] : memref<1x512x256xbf16, #tpu.memory_space<vmem>>, vector<1x512x256xbf16>
    %23 = vector.shape_cast %22 : vector<1x512x256xbf16> to vector<512x256xbf16>
    %cst_20 = arith.constant dense<0.000000e+00> : vector<32x256xf32>
    %24 = tpu.matmul %21, %23, %cst_20 {dimension_numbers = #tpu.dot_dimension_numbers<[1], [0], [0], [1], [0, 0, 1, 1], [], []>} : vector<32x512xbf16>, vector<512x256xbf16>, vector<32x256xf32> -> vector<32x256xf32>
    %c0_21 = arith.constant 0 : index
    %c0_22 = arith.constant 0 : index
    %c0_23 = arith.constant 0 : index
    %25 = vector.load %arg8[%c0_21, %c0_22, %c0_23] : memref<1x1x256xf32, #tpu.memory_space<vmem>>, vector<1x1x256xf32>
    %26 = vector.shape_cast %25 : vector<1x1x256xf32> to vector<1x256xf32>
    %27 = vector.broadcast %26 : vector<1x256xf32> to vector<32x256xf32>
    %28 = arith.addf %24, %27 : vector<32x256xf32>
    %cst_24 = arith.constant 0.000000e+00 : f32
    %29 = vector.broadcast %cst_24 : f32 to vector<32x256xf32>
    %30 = arith.maximumf %28, %29 : vector<32x256xf32>
    %31 = arith.truncf %30 : vector<32x256xf32> to vector<32x256xbf16>
    %c0_25 = arith.constant 0 : index
    %c0_26 = arith.constant 0 : index
    %c0_27 = arith.constant 0 : index
    %32 = vector.load %arg9[%c0_25, %c0_26, %c0_27] : memref<1x256x128xbf16, #tpu.memory_space<vmem>>, vector<1x256x128xbf16>
    %33 = vector.shape_cast %32 : vector<1x256x128xbf16> to vector<256x128xbf16>
    %cst_28 = arith.constant dense<0.000000e+00> : vector<32x128xf32>
    %34 = tpu.matmul %31, %33, %cst_28 {dimension_numbers = #tpu.dot_dimension_numbers<[1], [0], [0], [1], [0, 0, 1, 1], [], []>} : vector<32x256xbf16>, vector<256x128xbf16>, vector<32x128xf32> -> vector<32x128xf32>
    %c0_29 = arith.constant 0 : index
    %c0_30 = arith.constant 0 : index
    %c0_31 = arith.constant 0 : index
    %35 = vector.load %arg10[%c0_29, %c0_30, %c0_31] : memref<1x1x128xf32, #tpu.memory_space<vmem>>, vector<1x1x128xf32>
    %36 = vector.shape_cast %35 : vector<1x1x128xf32> to vector<1x128xf32>
    %37 = vector.broadcast %36 : vector<1x128xf32> to vector<32x128xf32>
    %38 = arith.addf %34, %37 : vector<32x128xf32>
    %cst_32 = arith.constant 0.000000e+00 : f32
    %39 = vector.broadcast %cst_32 : f32 to vector<32x128xf32>
    %40 = arith.maximumf %38, %39 : vector<32x128xf32>
    %41 = arith.truncf %40 : vector<32x128xf32> to vector<32x128xbf16>
    %c0_33 = arith.constant 0 : index
    %c0_34 = arith.constant 0 : index
    %c0_35 = arith.constant 0 : index
    %42 = vector.load %arg11[%c0_33, %c0_34, %c0_35] : memref<1x2x128xbf16, #tpu.memory_space<vmem>>, vector<1x2x128xbf16>
    %43 = vector.shape_cast %42 : vector<1x2x128xbf16> to vector<2x128xbf16>
    %cst_36 = arith.constant dense<0.000000e+00> : vector<2x32xf32>
    %44 = tpu.matmul %43, %41, %cst_36 {dimension_numbers = #tpu.dot_dimension_numbers<[1], [1], [0], [0], [0, 0, 1, 0], [], []>} : vector<2x128xbf16>, vector<32x128xbf16>, vector<2x32xf32> -> vector<2x32xf32>
    %c0_37 = arith.constant 0 : index
    %c0_38 = arith.constant 0 : index
    %c0_39 = arith.constant 0 : index
    %45 = vector.load %arg12[%c0_37, %c0_38, %c0_39] : memref<1x2x1xf32, #tpu.memory_space<vmem>>, vector<1x2x1xf32>
    %46 = vector.shape_cast %45 : vector<1x2x1xf32> to vector<2x1xf32>
    %47 = vector.broadcast %46 : vector<2x1xf32> to vector<2x32xf32>
    %48 = arith.addf %44, %47 : vector<2x32xf32>
    %cst_40 = arith.constant 0.000000e+00 : f32
    %49 = vector.broadcast %cst_40 : f32 to vector<2x32xf32>
    %50 = arith.maximumf %48, %49 : vector<2x32xf32>
    %c0_41 = arith.constant 0 : index
    %c0_42 = arith.constant 0 : index
    %c0_43 = arith.constant 0 : index
    %51 = vector.load %arg13[%c0_41, %c0_42, %c0_43] : memref<1x2x32xf32, #tpu.memory_space<vmem>>, vector<1x2x32xf32>
    %52 = vector.shape_cast %51 : vector<1x2x32xf32> to vector<2x32xf32>
    %53 = vector.shape_cast %50 : vector<2x32xf32> to vector<1x2x32xf32>
    tpu.vector_store %arg13[%c0_41, %c0_42, %c0_43], %53 {strides = array<i32>} : memref<1x2x32xf32, #tpu.memory_space<vmem>>, vector<1x2x32xf32>,
    return
  }
  func.func @transform_0(%arg0: i32, %arg1: i32) -> (i32, i32, i32) {
    %c0_i32 = arith.constant 0 : i32
    %c0_i32_0 = arith.constant 0 : i32
    return %arg0, %arg1, %c0_i32 : i32, i32, i32
  }
  func.func @transform_1(%arg0: i32, %arg1: i32) -> (i32, i32, i32) {
    %c0_i32 = arith.constant 0 : i32
    %c0_i32_0 = arith.constant 0 : i32
    %c0_i32_1 = arith.constant 0 : i32
    return %arg0, %c0_i32, %c0_i32_0 : i32, i32, i32
  }
  func.func @transform_2(%arg0: i32, %arg1: i32) -> (i32, i32, i32) {
    %c0_i32 = arith.constant 0 : i32
    %c0_i32_0 = arith.constant 0 : i32
    %c0_i32_1 = arith.constant 0 : i32
    %c0_i32_2 = arith.constant 0 : i32
    return %c0_i32, %c0_i32_0, %c0_i32_1 : i32, i32, i32
  }
  func.func @transform_3(%arg0: i32, %arg1: i32) -> (i32, i32, i32) {
    %c0_i32 = arith.constant 0 : i32
    %c0_i32_0 = arith.constant 0 : i32
    %c0_i32_1 = arith.constant 0 : i32
    %c0_i32_2 = arith.constant 0 : i32
    return %c0_i32, %c0_i32_0, %c0_i32_1 : i32, i32, i32
  }
  func.func @transform_4(%arg0: i32, %arg1: i32) -> (i32, i32, i32) {
    %c0_i32 = arith.constant 0 : i32
    %c0_i32_0 = arith.constant 0 : i32
    %c0_i32_1 = arith.constant 0 : i32
    return %arg0, %c0_i32, %c0_i32_0 : i32, i32, i32
  }
  func.func @transform_5(%arg0: i32, %arg1: i32) -> (i32, i32, i32) {
    %c0_i32 = arith.constant 0 : i32
    %c0_i32_0 = arith.constant 0 : i32
    %c0_i32_1 = arith.constant 0 : i32
    %c0_i32_2 = arith.constant 0 : i32
    return %c0_i32, %c0_i32_0, %c0_i32_1 : i32, i32, i32
  }
  func.func @transform_6(%arg0: i32, %arg1: i32) -> (i32, i32, i32) {
    %c0_i32 = arith.constant 0 : i32
    %c0_i32_0 = arith.constant 0 : i32
    %c0_i32_1 = arith.constant 0 : i32
    %c0_i32_2 = arith.constant 0 : i32
    return %c0_i32, %c0_i32_0, %c0_i32_1 : i32, i32, i32
  }
  func.func @transform_7(%arg0: i32, %arg1: i32) -> (i32, i32, i32) {
    %c0_i32 = arith.constant 0 : i32
    %c0_i32_0 = arith.constant 0 : i32
    %c0_i32_1 = arith.constant 0 : i32
    %c0_i32_2 = arith.constant 0 : i32
    return %c0_i32, %c0_i32_0, %c0_i32_1 : i32, i32, i32
  }
  func.func @transform_8(%arg0: i32, %arg1: i32) -> (i32, i32, i32) {
    %c0_i32 = arith.constant 0 : i32
    %c0_i32_0 = arith.constant 0 : i32
    %c0_i32_1 = arith.constant 0 : i32
    %c0_i32_2 = arith.constant 0 : i32
    return %c0_i32, %c0_i32_0, %c0_i32_1 : i32, i32, i32
  }
  func.func @transform_9(%arg0: i32, %arg1: i32) -> (i32, i32, i32) {
    %c0_i32 = arith.constant 0 : i32
    %c0_i32_0 = arith.constant 0 : i32
    %c0_i32_1 = arith.constant 0 : i32
    %c0_i32_2 = arith.constant 0 : i32
    return %c0_i32, %c0_i32_0, %c0_i32_1 : i32, i32, i32
  }
  func.func @transform_10(%arg0: i32, %arg1: i32) -> (i32, i32, i32) {
    %c0_i32 = arith.constant 0 : i32
    %c0_i32_0 = arith.constant 0 : i32
    %c0_i32_1 = arith.constant 0 : i32
    %c0_i32_2 = arith.constant 0 : i32
    return %c0_i32, %c0_i32_0, %c0_i32_1 : i32, i32, i32
  }
  func.func @transform_11(%arg0: i32, %arg1: i32) -> (i32, i32, i32) {
    %c0_i32 = arith.constant 0 : i32
    %c0_i32_0 = arith.constant 0 : i32
    return %arg0, %c0_i32, %arg1 : i32, i32, i32
  }
}

</mosaic_0001>

<llo_original>
// kernel: pointnet_iid_forward.4
$region0: #{pointnet_iid_forward.4}
  #allocation0 [shape = 'u32[]', space=smem, size = 0x4, offset = 0x4, fixed_abs, tag = 'smem constant byte address 0x4 - core index']
  #allocation1 [shape = 'u32[72,128]{1,0:T(1,128)}', space=vmem, size = 0x9000, scoped, tag = 'internal scratch']
  #allocation2 [shape = 'f32[8,1024]{1,0:T(8,128)}', space=vmem, size = 0x8000, scoped, tag = 'scratch operand']
  %s0 = inlined_call_operand.vmem [shape: bf16[2,32,6], index: 0, kind: input, shape index: {}]
  %s1 = inlined_call_operand.vmem [shape: bf16[2,6,64], index: 1, kind: input, shape index: {}]
  %s2 = inlined_call_operand.vmem [shape: f32[1,1,64], index: 2, kind: input, shape index: {}]
  %s3 = inlined_call_operand.vmem [shape: bf16[1,64,128], index: 3, kind: input, shape index: {}]
  %s4 = inlined_call_operand.vmem [shape: f32[1,1,128], index: 4, kind: input, shape index: {}]
  %s5 = inlined_call_operand.hbm [shape: bf16[1,128,1024], index: 5, kind: input, shape index: {}]
  %s6 = inlined_call_operand.vmem [shape: f32[1,1,1024], index: 6, kind: input, shape index: {}]
  %s7 = inlined_call_operand.vmem [shape: f32[2,1,1024], index: 7, kind: output, shape index: {}]
  %s8 = sld [smem:[#allocation0]]
  $region77: #{pointnet_iid_forward.4} parent=0
    _
  %s10 = ssub.s32 1, %s8
  %s11 = scalar_select 0, %s10, %s8
  $region1: #{pointnet_iid_forward.4} parent=0
    #allocation3 [shape = 'u8[262144]{0}', space=vmem, size = 0x40000, scoped, tag = 'input window, operand 5, single buffered']
    #allocation4 [shape = 's32[2]{0}', space=sflag, size = 0x8, scoped, tag = 'scoped memory for pointnet_iid_forward.4']
    %12 = vsyncpa [#allocation4], 0
    loop: start=0, step=1, limit=4
    $region2: #{pointnet_iid_forward.4} parent=1 // loop_pre_header
      _
    $region3: #{pointnet_iid_forward.4} parent=1 // loop_header
      %s14 = sphi 0, %s18
      %p15 = scmp.ge.s32.totalorder %s14, 4
      %s21 = sphi 0, %s33
      %s22 = sphi 0, %s29
      %s23 = sphi 0, %s21
      %s24 = sphi 0, %s22
      %s25 = sphi 0, %s23
      %s26 = sphi 0, %s24
      %s38 = sphi 0, %s40
      %s41 = sphi 0, %s38
      %s42 = sphi 0, %s41
      %s58 = sphi 0, %s42
      %s64 = sphi 0, %s66
      %s67 = sphi 0, %s64
      %s68 = sphi 0, %s67
      %s84 = sphi 0, %s68
      %s88 = sphi 0, %s88
      %s90 = sphi 0, %s88
      %s91 = sphi 0, %s90
      %s105 = sphi 0, %s91
      %s109 = sphi 0, %s109
      %s111 = sphi 0, %s109
      %s112 = sphi 0, %s111
      %s126 = sphi 0, %s112
      %s130 = sphi 0, %s130
      %s132 = sphi 0, %s130
      %s133 = sphi 0, %s132
      %s147 = sphi 0, %s133
      %s151 = sphi 0, %s151
      %s153 = sphi 0, %s151
      %s154 = sphi 0, %s153
      %s168 = sphi 0, %s154
      %s172 = sphi 0, %s172
      %s174 = sphi 0, %s172
      %s175 = sphi 0, %s174
      %s189 = sphi 0, %s175
      %s195 = sphi 0, %s197
      %s198 = sphi 0, %s195
      %s199 = sphi 0, %s198
      %s215 = sphi 0, %s199
    $region4: #{pointnet_iid_forward.4} parent=1 // loop_header_branch
      %17 = sbr.rel (%p15) target = $region8
    $region5: #{pointnet_iid_forward.4} parent=1 // loop_body
      %s19 = ssub.s32 %s14, 1
      %s20 = ssub.s32 %s14, 2
      %s27 = sadd.s32 1, %s22
      %p28 = scmp.ge.s32.totalorder %s27, 1
      %s29 = scalar_select %p28, 0, %s27
      %s30 = sadd.s32 1, %s21
      %s31 = scalar_select %p28, %s30, %s21
      %p32 = scmp.ge.s32.totalorder %s31, 2
      %s33 = scalar_select %p32, 0, %s31
      %s34 = ssub.s32 %s21, %s33
      %s35 = ssub.s32 %s22, %s29
      %s36 = sor.u32 %s34, %s35
      %p37 = scmp.eq.s32.totalorder %s36, 0
      %s39 = sadd.s32 %s38, 1
      %s40 = scalar_select %p37, %s38, %s39
      %p43 = pneg %p37
      %p44 = scmp.eq.s32.totalorder %s14, 1
      %p45 = por %p43, %p44
      %p46 = scmp.ne.s32.totalorder %s38, %s41
      %p47 = scmp.eq.s32.totalorder %s14, 0
      %p48 = por %p46, %p47
      %p49 = scmp.ne.s32.totalorder %s38, %s41
      %p50 = scmp.eq.s32.totalorder %s19, 1
      %p51 = por %p49, %p50
      %p52 = scmp.ne.s32.totalorder %s41, %s42
      %p53 = scmp.eq.s32.totalorder %s19, 0
      %p54 = por %p52, %p53
      %p55 = scmp.ne.s32.totalorder %s41, %s42
      %p56 = scmp.eq.s32.totalorder %s20, 1
      %p57 = por %p55, %p56
      %p59 = scmp.ne.s32.totalorder %s42, %s58
      %p60 = scmp.eq.s32.totalorder %s20, 0
      %p61 = por %p59, %p60
      %s62 = ssub.s32 %s21, %s33
      %p63 = scmp.eq.s32.totalorder %s62, 0
      %s65 = sadd.s32 %s64, 1
      %s66 = scalar_select %p63, %s64, %s65
      %p69 = pneg %p63
      %p70 = scmp.eq.s32.totalorder %s14, 1
      %p71 = por %p69, %p70
      %p72 = scmp.ne.s32.totalorder %s64, %s67
      %p73 = scmp.eq.s32.totalorder %s14, 0
      %p74 = por %p72, %p73
      %p75 = scmp.ne.s32.totalorder %s64, %s67
      %p76 = scmp.eq.s32.totalorder %s19, 1
      %p77 = por %p75, %p76
      %p78 = scmp.ne.s32.totalorder %s67, %s68
      %p79 = scmp.eq.s32.totalorder %s19, 0
      %p80 = por %p78, %p79
      %p81 = scmp.ne.s32.totalorder %s67, %s68
      %p82 = scmp.eq.s32.totalorder %s20, 1
      %p83 = por %p81, %p82
      %p85 = scmp.ne.s32.totalorder %s68, %s84
      %p86 = scmp.eq.s32.totalorder %s20, 0
      %p87 = por %p85, %p86
      %s89 = sadd.s32 %s88, 1
      %p92 = scmp.eq.s32.totalorder %s14, 1
      %p93 = scmp.ne.s32.totalorder %s88, %s90
      %p94 = scmp.eq.s32.totalorder %s14, 0
      %p95 = por %p93, %p94
      %p96 = scmp.ne.s32.totalorder %s88, %s90
      %p97 = scmp.eq.s32.totalorder %s19, 1
      %p98 = por %p96, %p97
      %p99 = scmp.ne.s32.totalorder %s90, %s91
      %p100 = scmp.eq.s32.totalorder %s19, 0
      %p101 = por %p99, %p100
      %p102 = scmp.ne.s32.totalorder %s90, %s91
      %p103 = scmp.eq.s32.totalorder %s20, 1
      %p104 = por %p102, %p103
      %p106 = scmp.ne.s32.totalorder %s91, %s105
      %p107 = scmp.eq.s32.totalorder %s20, 0
      %p108 = por %p106, %p107
      %s110 = sadd.s32 %s109, 1
      %p113 = scmp.eq.s32.totalorder %s14, 1
      %p114 = scmp.ne.s32.totalorder %s109, %s111
      %p115 = scmp.eq.s32.totalorder %s14, 0
      %p116 = por %p114, %p115
      %p117 = scmp.ne.s32.totalorder %s109, %s111
      %p118 = scmp.eq.s32.totalorder %s19, 1
      %p119 = por %p117, %p118
      %p120 = scmp.ne.s32.totalorder %s111, %s112
      %p121 = scmp.eq.s32.totalorder %s19, 0
      %p122 = por %p120, %p121
      %p123 = scmp.ne.s32.totalorder %s111, %s112
      %p124 = scmp.eq.s32.totalorder %s20, 1
      %p125 = por %p123, %p124
      %p127 = scmp.ne.s32.totalorder %s112, %s126
      %p128 = scmp.eq.s32.totalorder %s20, 0
      %p129 = por %p127, %p128
      %s131 = sadd.s32 %s130, 1
      %p134 = scmp.eq.s32.totalorder %s14, 1
      %p135 = scmp.ne.s32.totalorder %s130, %s132
      %p136 = scmp.eq.s32.totalorder %s14, 0
      %p137 = por %p135, %p136
      %p138 = scmp.ne.s32.totalorder %s130, %s132
      %p139 = scmp.eq.s32.totalorder %s19, 1
      %p140 = por %p138, %p139
      %p141 = scmp.ne.s32.totalorder %s132, %s133
      %p142 = scmp.eq.s32.totalorder %s19, 0
      %p143 = por %p141, %p142
      %p144 = scmp.ne.s32.totalorder %s132, %s133
      %p145 = scmp.eq.s32.totalorder %s20, 1
      %p146 = por %p144, %p145
      %p148 = scmp.ne.s32.totalorder %s133, %s147
      %p149 = scmp.eq.s32.totalorder %s20, 0
      %p150 = por %p148, %p149
      %s152 = sadd.s32 %s151, 1
      %p155 = scmp.eq.s32.totalorder %s14, 1
      %p156 = scmp.ne.s32.totalorder %s151, %s153
      %p157 = scmp.eq.s32.totalorder %s14, 0
      %p158 = por %p156, %p157
      %p159 = scmp.ne.s32.totalorder %s151, %s153
      %p160 = scmp.eq.s32.totalorder %s19, 1
      %p161 = por %p159, %p160
      %p162 = scmp.ne.s32.totalorder %s153, %s154
      %p163 = scmp.eq.s32.totalorder %s19, 0
      %p164 = por %p162, %p163
      %p165 = scmp.ne.s32.totalorder %s153, %s154
      %p166 = scmp.eq.s32.totalorder %s20, 1
      %p167 = por %p165, %p166
      %p169 = scmp.ne.s32.totalorder %s154, %s168
      %p170 = scmp.eq.s32.totalorder %s20, 0
      %p171 = por %p169, %p170
      %s173 = sadd.s32 %s172, 1
      %p176 = scmp.eq.s32.totalorder %s14, 1
      %p177 = scmp.ne.s32.totalorder %s172, %s174
      %p178 = scmp.eq.s32.totalorder %s14, 0
      %p179 = por %p177, %p178
      %p180 = scmp.ne.s32.totalorder %s172, %s174
      %p181 = scmp.eq.s32.totalorder %s19, 1
      %p182 = por %p180, %p181
      %p183 = scmp.ne.s32.totalorder %s174, %s175
      %p184 = scmp.eq.s32.totalorder %s19, 0
      %p185 = por %p183, %p184
      %p186 = scmp.ne.s32.totalorder %s174, %s175
      %p187 = scmp.eq.s32.totalorder %s20, 1
      %p188 = por %p186, %p187
      %p190 = scmp.ne.s32.totalorder %s175, %s189
      %p191 = scmp.eq.s32.totalorder %s20, 0
      %p192 = por %p190, %p191
      %s193 = ssub.s32 %s21, %s33
      %p194 = scmp.eq.s32.totalorder %s193, 0
      %s196 = sadd.s32 %s195, 1
      %s197 = scalar_select %p194, %s195, %s196
      %p200 = pneg %p194
      %p201 = scmp.eq.s32.totalorder %s14, 1
      %p202 = por %p200, %p201
      %p203 = scmp.ne.s32.totalorder %s195, %s198
      %p204 = scmp.eq.s32.totalorder %s14, 0
      %p205 = por %p203, %p204
      %p206 = scmp.ne.s32.totalorder %s195, %s198
      %p207 = scmp.eq.s32.totalorder %s19, 1
      %p208 = por %p206, %p207
      %p209 = scmp.ne.s32.totalorder %s198, %s199
      %p210 = scmp.eq.s32.totalorder %s19, 0
      %p211 = por %p209, %p210
      %p212 = scmp.ne.s32.totalorder %s198, %s199
      %p213 = scmp.eq.s32.totalorder %s20, 1
      %p214 = por %p212, %p213
      %p216 = scmp.ne.s32.totalorder %s199, %s215
      %p217 = scmp.eq.s32.totalorder %s20, 0
      %p218 = por %p216, %p217
      %p219 = scmp.le.s32.totalorder 1, %s14
      %p220 = scmp.lt.s32.totalorder %s14, 3
      %p221 = pnand %p219, %p220
      %p222 = pneg %p221
      // Predicated region
      $region9: #{pointnet_iid_forward.4} parent=5 // pred_check
        _
      $region10: #{pointnet_iid_forward.4} parent=5 // pred_check_branch
        %224 = sbr.rel (%p221) target = $region12
      $region11: #{pointnet_iid_forward.4} parent=5 // pred_region
        %s225 = ssub.s32 %s14, 1
        // Predicated region
        $region13: #{pointnet_iid_forward.4} parent=11 // pred_check
          %p226 = pneg %p101
        $region14: #{pointnet_iid_forward.4} parent=11 // pred_check_branch
          %228 = sbr.rel (%p226) target = $region16
        $region15: #{pointnet_iid_forward.4} parent=11 // pred_region
          _
        $region16: #{pointnet_iid_forward.4} parent=11 // pred_fallthru
          _
        // Predicated region
        $region17: #{pointnet_iid_forward.4} parent=11 // pred_check
          %p229 = pneg %p122
        $region18: #{pointnet_iid_forward.4} parent=11 // pred_check_branch
          %231 = sbr.rel (%p229) target = $region20
        $region19: #{pointnet_iid_forward.4} parent=11 // pred_region
          _
        $region20: #{pointnet_iid_forward.4} parent=11 // pred_fallthru
          _
        // Predicated region
        $region21: #{pointnet_iid_forward.4} parent=11 // pred_check
          %p232 = pneg %p143
        $region22: #{pointnet_iid_forward.4} parent=11 // pred_check_branch
          %234 = sbr.rel (%p232) target = $region24
        $region23: #{pointnet_iid_forward.4} parent=11 // pred_region
          _
        $region24: #{pointnet_iid_forward.4} parent=11 // pred_fallthru
          _
        // Predicated region
        $region25: #{pointnet_iid_forward.4} parent=11 // pred_check
          %p235 = pneg %p164
        $region26: #{pointnet_iid_forward.4} parent=11 // pred_check_branch
          %237 = sbr.rel (%p235) target = $region28
        $region27: #{pointnet_iid_forward.4} parent=11 // pred_region
          %239 = vsyncadd [#allocation4], 0
          %s240 = sshll.u32 %s5, 4
          %s241 = int_to_ptr.hbm [resolvable:$true] %s240
          %s242 = sshll.u32 [#allocation3], 4
          %s243 = int_to_ptr.vmem [resolvable:$true] %s242
          %248 = dma.hbm_to_vmem [thread:$0]  %s241, 8192, %s243, [#allocation4], 512, 512, 32
        $region28: #{pointnet_iid_forward.4} parent=11 // pred_fallthru
          _
        // Predicated region
        $region29: #{pointnet_iid_forward.4} parent=11 // pred_check
          %p249 = pneg %p185
        $region30: #{pointnet_iid_forward.4} parent=11 // pred_check_branch
          %251 = sbr.rel (%p249) target = $region32
        $region31: #{pointnet_iid_forward.4} parent=11 // pred_region
          _
        $region32: #{pointnet_iid_forward.4} parent=11 // pred_fallthru
          _
      $region12: #{pointnet_iid_forward.4} parent=5 // pred_fallthru
        _
      %p252 = scmp.lt.s32.totalorder %s14, 2
      // Predicated region
      $region33: #{pointnet_iid_forward.4} parent=5 // pred_check
        %p253 = pneg %p252
      $region34: #{pointnet_iid_forward.4} parent=5 // pred_check_branch
        %255 = sbr.rel (%p253) target = $region36
      $region35: #{pointnet_iid_forward.4} parent=5 // pred_region
        // Predicated region
        $region37: #{pointnet_iid_forward.4} parent=35 // pred_check
          %p256 = pneg %p48
        $region38: #{pointnet_iid_forward.4} parent=35 // pred_check_branch
          %258 = sbr.rel (%p256) target = $region40
        $region39: #{pointnet_iid_forward.4} parent=35 // pred_region
          %s259 = smul.u32 4, %s22
          %p260 = scmp.lt.s32.totalorder %s21, 1
          %s261 = scalar_select %p260, %s21, 1
          %p262 = scmp.lt.s32.totalorder %s259, 3
          %s263 = scalar_select %p262, %s259, 3
          %s264 = smul.addr %s261, 4
          %s265 = sadd.s32 %s263, %s264
          %s266 = smul.addr %s265, 4
          %s267 = scalar_lea.vmem %s0, %s266
          %s268 = smul.u32 4, %s22
        $region40: #{pointnet_iid_forward.4} parent=35 // pred_fallthru
          _
        // Predicated region
        $region41: #{pointnet_iid_forward.4} parent=35 // pred_check
          %p269 = pneg %p74
        $region42: #{pointnet_iid_forward.4} parent=35 // pred_check_branch
          %271 = sbr.rel (%p269) target = $region44
        $region43: #{pointnet_iid_forward.4} parent=35 // pred_region
          %p272 = scmp.lt.s32.totalorder %s21, 1
          %s273 = scalar_select %p272, %s21, 1
          %s274 = smul.addr %s273, 4
          %s275 = scalar_lea.vmem %s1, %s274
        $region44: #{pointnet_iid_forward.4} parent=35 // pred_fallthru
          _
      $region36: #{pointnet_iid_forward.4} parent=5 // pred_fallthru
        _
      %p276 = scmp.le.s32.totalorder 1, %s14
      %p277 = scmp.lt.s32.totalorder %s14, 3
      %p278 = pnand %p276, %p277
      %p279 = pneg %p278
      // Predicated region
      $region45: #{pointnet_iid_forward.4} parent=5 // pred_check
        _
      $region46: #{pointnet_iid_forward.4} parent=5 // pred_check_branch
        %281 = sbr.rel (%p278) target = $region48
      $region47: #{pointnet_iid_forward.4} parent=5 // pred_region
        %s282 = ssub.s32 %s14, 1
        // Predicated region
        $region49: #{pointnet_iid_forward.4} parent=47 // pred_check
          %p283 = pneg %p164
        $region50: #{pointnet_iid_forward.4} parent=47 // pred_check_branch
          %285 = sbr.rel (%p283) target = $region52
        $region51: #{pointnet_iid_forward.4} parent=47 // pred_region
          %287 = dma.done [#allocation4], 8192
        $region52: #{pointnet_iid_forward.4} parent=47 // pred_fallthru
          _
        %s288 = smul.u32 4, %s24
        %p289 = scmp.lt.s32.totalorder %s23, 1
        %s290 = scalar_select %p289, %s23, 1
        %p291 = scmp.lt.s32.totalorder %s288, 3
        %s292 = scalar_select %p291, %s288, 3
        %s293 = smul.addr %s290, 4
        %s294 = sadd.s32 %s292, %s293
        %s295 = smul.addr %s294, 4
        %s296 = scalar_lea.vmem %s0, %s295
        %p297 = pneg %p54
        %p298 = pneg %p51
        %p299 = scmp.lt.s32.totalorder %s23, 1
        %s300 = scalar_select %p299, %s23, 1
        %s301 = smul.addr %s300, 4
        %s302 = scalar_lea.vmem %s1, %s301
        %p303 = pneg %p80
        %p304 = pneg %p77
        %p305 = pneg %p101
        %p306 = pneg %p98
        %p307 = pneg %p122
        %p308 = pneg %p119
        %p309 = pneg %p143
        %p310 = pneg %p140
        %p311 = pneg %p164
        %p312 = pneg %p161
        %p313 = pneg %p185
        %p314 = pneg %p182
        %p315 = pneg %p211
        %p316 = pneg %p208
        %p317 = scmp.lt.s32.totalorder %s23, 1
        %s318 = scalar_select %p317, %s23, 1
        %s319 = smul.addr %s318, 8
        %s320 = scalar_lea.vmem %s7, %s319
        %s321 = smul.u32 4, %s24
        %p322 = scmp.lt.s32.totalorder %s23, 1
        %s323 = scalar_select %p322, %s23, 1
        %p324 = scmp.lt.s32.totalorder %s321, 3
        %s325 = scalar_select %p324, %s321, 3
        %s326 = smul.addr %s323, 4
        %s327 = sadd.s32 %s325, %s326
        %s328 = smul.addr %s327, 4
        %s329 = scalar_lea.vmem %s0, %s328
        %s330 = smul.u32 4, %s24
        %p331 = scmp.lt.s32.totalorder %s23, 1
        %s332 = scalar_select %p331, %s23, 1
        %s333 = smul.addr %s332, 4
        %s334 = scalar_lea.vmem %s1, %s333
        %p335 = scmp.lt.s32.totalorder %s23, 1
        %s336 = scalar_select %p335, %s23, 1
        %s337 = smul.addr %s336, 8
        %s338 = scalar_lea.vmem %s7, %s337
        %p340 = scmp.eq.s32.totalorder %s24, 0
        // Predicated region
        $region53: #{pointnet_iid_forward.4} parent=47 // pred_check
          %p341 = pneg %p340
        $region54: #{pointnet_iid_forward.4} parent=47 // pred_check_branch
          %343 = sbr.rel (%p341) target = $region56
        $region55: #{pointnet_iid_forward.4} parent=47 // pred_region
          %344 = vst [vmem:[#allocation2] sm:$0xff] -inf
          %345 = vst [vmem:[#allocation2 + $0x8] sm:$0xff] -inf
          %346 = vst [vmem:[#allocation2 + $0x10] sm:$0xff] -inf
          %347 = vst [vmem:[#allocation2 + $0x18] sm:$0xff] -inf
          %348 = vst [vmem:[#allocation2 + $0x20] sm:$0xff] -inf
          %349 = vst [vmem:[#allocation2 + $0x28] sm:$0xff] -inf
          %350 = vst [vmem:[#allocation2 + $0x30] sm:$0xff] -inf
          %351 = vst [vmem:[#allocation2 + $0x38] sm:$0xff] -inf
        $region56: #{pointnet_iid_forward.4} parent=47 // pred_fallthru
          _
        %v352 = vld [vmem:[%s329] sm:$0xf]
        %v353 = vld [vmem:[%s329 + $0x4] sm:$0xf]
        %v354 = vld [vmem:[%s329 + $0x8] sm:$0xf]
        %v355 = vld [vmem:[%s329 + $0xc] sm:$0xf]
        %v356 = vld [vmem:[%s334] sm:$0x7]
        %v357 = vld [vmem:[%s2] sm:$0x1]
        %v359 = vperm.slane %v357, 0
        %v365 = vunpack.c.l.b16 %v352
        %v366 = vunpack.c.l.b16 %v353
        %v367 = vunpack.c.l.b16 %v354
        %v368 = vunpack.c.l.b16 %v355
        %v369 = vpack.c.b16 %v366, %v365
        %v370 = vpack.c.b16 %v368, %v367
        %vm371 = vcmask 48128
        %v373 = vsel %vm371, %v369, 0
        %v376 = vsel %vm371, %v370, 0
        %vm378 = vcmask 1042432
        %v380 = vsel %vm378, %v356, 0
        %382 = vmatpush.bf16.msra.mxu0 0
        %383 = vmatpush.bf16.msra.mxu0 0
        %384 = vmatpush.bf16.msra.mxu0 0
        %385 = vmatpush.bf16.msra.mxu0 0
        %386 = vmatpush.bf16.msra.mxu0 0
        %387 = vmatpush.bf16.msra.mxu0 0
        %388 = vmatpush.bf16.msra.mxu0 0
        %389 = vmatpush.bf16.msra.mxu0 %v380
        %390 = vmatmul.bf16.gmra.mxu0 %v373
        %v391 = vpop.f32.mrf.mxu0
        %v392 = vadd.f32 %v359, %v391
        %v393 = vpop.f32.mrf.mxu0
        %v394 = vadd.f32 %v359, %v393
        %395 = vmatmul.bf16.gmra.mxu0 %v376
        %v396 = vpop.f32.mrf.mxu0
        %v397 = vadd.f32 %v359, %v396
        %v398 = vpop.f32.mrf.mxu0
        %v399 = vadd.f32 %v359, %v398
        %400 = vdwg.mxu0
        %v401 = vmax.f32 %v392, 0.0
        %v402 = vmax.f32 %v394, 0.0
        %v403 = vmax.f32 %v397, 0.0
        %v404 = vmax.f32 %v399, 0.0
        %v405 = vpack.c.bf16 %v402, %v401
        %v406 = vpack.c.bf16 %v404, %v403
        %v407 = vld [vmem:[%s3] sm:$0xf]
        %v408 = vld [vmem:[%s3 + $0x4] sm:$0xf]
        %v409 = vld [vmem:[%s3 + $0x8] sm:$0xf]
        %v410 = vld [vmem:[%s3 + $0xc] sm:$0xf]
        %v411 = vld [vmem:[%s3 + $0x10] sm:$0xf]
        %v412 = vld [vmem:[%s3 + $0x14] sm:$0xf]
        %v413 = vld [vmem:[%s3 + $0x18] sm:$0xf]
        %v414 = vld [vmem:[%s3 + $0x1c] sm:$0xf]
        %v415 = vld [vmem:[%s4] sm:$0x1]
        %v417 = vperm.slane %v415, 0
        %v427 = vunpack.c.l.b16 %v407
        %v428 = vunpack.c.l.b16 %v408
        %v429 = vunpack.c.l.b16 %v409
        %v430 = vunpack.c.l.b16 %v410
        %v431 = vunpack.c.l.b16 %v411
        %v432 = vunpack.c.l.b16 %v412
        %v433 = vunpack.c.l.b16 %v413
        %v434 = vunpack.c.l.b16 %v414
        %v435 = vpack.c.b16 %v428, %v427
        %v436 = vpack.c.b16 %v430, %v429
        %v437 = vpack.c.b16 %v432, %v431
        %v438 = vpack.c.b16 %v434, %v433
        %vm443 = vcmask 523264
        %v445 = vsel %vm443, %v405, 0
        %v448 = vsel %vm443, %v406, 0
        %450 = vmatpush.bf16.msra.mxu0 0
        %451 = vmatpush.bf16.msra.mxu0 0
        %452 = vmatpush.bf16.msra.mxu0 0
        %453 = vmatpush.bf16.msra.mxu0 0
        %454 = vmatpush.bf16.msra.mxu0 %v438
        %455 = vmatpush.bf16.msra.mxu0 %v437
        %456 = vmatpush.bf16.msra.mxu0 %v436
        %457 = vmatpush.bf16.msra.mxu0 %v435
        %458 = vmatmul.bf16.gmra.mxu0 %v445
        %v459 = vpop.f32.mrf.mxu0
        %v460 = vadd.f32 %v417, %v459
        %v461 = vpop.f32.mrf.mxu0
        %v462 = vadd.f32 %v417, %v461
        %463 = vmatmul.bf16.gmra.mxu0 %v448
        %v464 = vpop.f32.mrf.mxu0
        %v465 = vadd.f32 %v417, %v464
        %v466 = vpop.f32.mrf.mxu0
        %v467 = vadd.f32 %v417, %v466
        %468 = vdwg.mxu0
        %v469 = vmax.f32 %v460, 0.0
        %v470 = vmax.f32 %v462, 0.0
        %v471 = vmax.f32 %v465, 0.0
        %v472 = vmax.f32 %v467, 0.0
        %v473 = vpack.c.bf16 %v470, %v469
        %v474 = vpack.c.bf16 %v472, %v471
        %v475 = vld [vmem:[#allocation3] sm:$0xff]
        %v476 = vld [vmem:[#allocation3 + $0x8] sm:$0xff]
        %v477 = vld [vmem:[#allocation3 + $0x10] sm:$0xff]
        %v478 = vld [vmem:[#allocation3 + $0x18] sm:$0xff]
        %v479 = vld [vmem:[#allocation3 + $0x20] sm:$0xff]
        %v480 = vld [vmem:[#allocation3 + $0x28] sm:$0xff]
        %v481 = vld [vmem:[#allocation3 + $0x30] sm:$0xff]
        %v482 = vld [vmem:[#allocation3 + $0x38] sm:$0xff]
        %v483 = vld [vmem:[#allocation3 + $0x40] sm:$0xff]
        %v484 = vld [vmem:[#allocation3 + $0x48] sm:$0xff]
        %v485 = vld [vmem:[#allocation3 + $0x50] sm:$0xff]
        %v486 = vld [vmem:[#allocation3 + $0x58] sm:$0xff]
        %v487 = vld [vmem:[#allocation3 + $0x60] sm:$0xff]
        %v488 = vld [vmem:[#allocation3 + $0x68] sm:$0xff]
        %v489 = vld [vmem:[#allocation3 + $0x70] sm:$0xff]
        %v490 = vld [vmem:[#allocation3 + $0x78] sm:$0xff]
        %v491 = vld [vmem:[#allocation3 + $0x80] sm:$0xff]
        %v492 = vld [vmem:[#allocation3 + $0x88] sm:$0xff]
        %v493 = vld [vmem:[#allocation3 + $0x90] sm:$0xff]
        %v494 = vld [vmem:[#allocation3 + $0x98] sm:$0xff]
        %v495 = vld [vmem:[#allocation3 + $0xa0] sm:$0xff]
        %v496 = vld [vmem:[#allocation3 + $0xa8] sm:$0xff]
        %v497 = vld [vmem:[#allocation3 + $0xb0] sm:$0xff]
        %v498 = vld [vmem:[#allocation3 + $0xb8] sm:$0xff]
        %v499 = vld [vmem:[#allocation3 + $0xc0] sm:$0xff]
        %v500 = vld [vmem:[#allocation3 + $0xc8] sm:$0xff]
        %v501 = vld [vmem:[#allocation3 + $0xd0] sm:$0xff]
        %v502 = vld [vmem:[#allocation3 + $0xd8] sm:$0xff]
        %v503 = vld [vmem:[#allocation3 + $0xe0] sm:$0xff]
        %v504 = vld [vmem:[#allocation3 + $0xe8] sm:$0xff]
        %v505 = vld [vmem:[#allocation3 + $0xf0] sm:$0xff]
        %v506 = vld [vmem:[#allocation3 + $0xf8] sm:$0xff]
        %v507 = vld [vmem:[#allocation3 + $0x100] sm:$0xff]
        %v508 = vld [vmem:[#allocation3 + $0x108] sm:$0xff]
        %v509 = vld [vmem:[#allocation3 + $0x110] sm:$0xff]
        %v510 = vld [vmem:[#allocation3 + $0x118] sm:$0xff]
        %v511 = vld [vmem:[#allocation3 + $0x120] sm:$0xff]
        %v512 = vld [vmem:[#allocation3 + $0x128] sm:$0xff]
        %v513 = vld [vmem:[#allocation3 + $0x130] sm:$0xff]
        %v514 = vld [vmem:[#allocation3 + $0x138] sm:$0xff]
        %v515 = vld [vmem:[#allocation3 + $0x140] sm:$0xff]
        %v516 = vld [vmem:[#allocation3 + $0x148] sm:$0xff]
        %v517 = vld [vmem:[#allocation3 + $0x150] sm:$0xff]
        %v518 = vld [vmem:[#allocation3 + $0x158] sm:$0xff]
        %v519 = vld [vmem:[#allocation3 + $0x160] sm:$0xff]
        %v520 = vld [vmem:[#allocation3 + $0x168] sm:$0xff]
        %v521 = vld [vmem:[#allocation3 + $0x170] sm:$0xff]
        %v522 = vld [vmem:[#allocation3 + $0x178] sm:$0xff]
        %v523 = vld [vmem:[#allocation3 + $0x180] sm:$0xff]
        %v524 = vld [vmem:[#allocation3 + $0x188] sm:$0xff]
        %v525 = vld [vmem:[#allocation3 + $0x190] sm:$0xff]
        %v526 = vld [vmem:[#allocation3 + $0x198] sm:$0xff]
        %v527 = vld [vmem:[#allocation3 + $0x1a0] sm:$0xff]
        %v528 = vld [vmem:[#allocation3 + $0x1a8] sm:$0xff]
        %v529 = vld [vmem:[#allocation3 + $0x1b0] sm:$0xff]
        %v530 = vld [vmem:[#allocation3 + $0x1b8] sm:$0xff]
        %v531 = vld [vmem:[#allocation3 + $0x1c0] sm:$0xff]
        %v532 = vld [vmem:[#allocation3 + $0x1c8] sm:$0xff]
        %v533 = vld [vmem:[#allocation3 + $0x1d0] sm:$0xff]
        %v534 = vld [vmem:[#allocation3 + $0x1d8] sm:$0xff]
        %v535 = vld [vmem:[#allocation3 + $0x1e0] sm:$0xff]
        %v536 = vld [vmem:[#allocation3 + $0x1e8] sm:$0xff]
        %v537 = vld [vmem:[#allocation3 + $0x1f0] sm:$0xff]
        %v538 = vld [vmem:[#allocation3 + $0x1f8] sm:$0xff]
        %v539 = vld [vmem:[%s6] sm:$0xff]
        %v541 = vperm.slane %v539, 0
        %v542 = vperm.slane %v539, 1
        %v543 = vperm.slane %v539, 2
        %v544 = vperm.slane %v539, 3
        %v545 = vperm.slane %v539, 4
        %v546 = vperm.slane %v539, 5
        %v547 = vperm.slane %v539, 6
        %v548 = vperm.slane %v539, 7
        %v621 = vunpack.c.l.b16 %v475
        %v622 = vunpack.c.h.b16 %v475
        %v623 = vunpack.c.l.b16 %v476
        %v624 = vunpack.c.h.b16 %v476
        %v625 = vunpack.c.l.b16 %v477
        %v626 = vunpack.c.h.b16 %v477
        %v627 = vunpack.c.l.b16 %v478
        %v628 = vunpack.c.h.b16 %v478
        %v629 = vunpack.c.l.b16 %v479
        %v630 = vunpack.c.h.b16 %v479
        %v631 = vunpack.c.l.b16 %v480
        %v632 = vunpack.c.h.b16 %v480
        %v633 = vunpack.c.l.b16 %v481
        %v634 = vunpack.c.h.b16 %v481
        %v635 = vunpack.c.l.b16 %v482
        %v636 = vunpack.c.h.b16 %v482
        %v637 = vunpack.c.l.b16 %v483
        %v638 = vunpack.c.h.b16 %v483
        %v639 = vunpack.c.l.b16 %v484
        %v640 = vunpack.c.h.b16 %v484
        %v641 = vunpack.c.l.b16 %v485
        %v642 = vunpack.c.h.b16 %v485
        %v643 = vunpack.c.l.b16 %v486
        %v644 = vunpack.c.h.b16 %v486
        %v645 = vunpack.c.l.b16 %v487
        %v646 = vunpack.c.h.b16 %v487
        %v647 = vunpack.c.l.b16 %v488
        %v648 = vunpack.c.h.b16 %v488
        %v649 = vunpack.c.l.b16 %v489
        %v650 = vunpack.c.h.b16 %v489
        %v651 = vunpack.c.l.b16 %v490
        %v652 = vunpack.c.h.b16 %v490
        %v653 = vunpack.c.l.b16 %v491
        %v654 = vunpack.c.h.b16 %v491
        %v655 = vunpack.c.l.b16 %v492
        %v656 = vunpack.c.h.b16 %v492
        %v657 = vunpack.c.l.b16 %v493
        %v658 = vunpack.c.h.b16 %v493
        %v659 = vunpack.c.l.b16 %v494
        %v660 = vunpack.c.h.b16 %v494
        %v661 = vunpack.c.l.b16 %v495
        %v662 = vunpack.c.h.b16 %v495
        %v663 = vunpack.c.l.b16 %v496
        %v664 = vunpack.c.h.b16 %v496
        %v665 = vunpack.c.l.b16 %v497
        %v666 = vunpack.c.h.b16 %v497
        %v667 = vunpack.c.l.b16 %v498
        %v668 = vunpack.c.h.b16 %v498
        %v669 = vunpack.c.l.b16 %v499
        %v670 = vunpack.c.h.b16 %v499
        %v671 = vunpack.c.l.b16 %v500
        %v672 = vunpack.c.h.b16 %v500
        %v673 = vunpack.c.l.b16 %v501
        %v674 = vunpack.c.h.b16 %v501
        %v675 = vunpack.c.l.b16 %v502
        %v676 = vunpack.c.h.b16 %v502
        %v677 = vunpack.c.l.b16 %v503
        %v678 = vunpack.c.h.b16 %v503
        %v679 = vunpack.c.l.b16 %v504
        %v680 = vunpack.c.h.b16 %v504
        %v681 = vunpack.c.l.b16 %v505
        %v682 = vunpack.c.h.b16 %v505
        %v683 = vunpack.c.l.b16 %v506
        %v684 = vunpack.c.h.b16 %v506
        %v685 = vunpack.c.l.b16 %v507
        %v686 = vunpack.c.h.b16 %v507
        %v687 = vunpack.c.l.b16 %v508
        %v688 = vunpack.c.h.b16 %v508
        %v689 = vunpack.c.l.b16 %v509
        %v690 = vunpack.c.h.b16 %v509
        %v691 = vunpack.c.l.b16 %v510
        %v692 = vunpack.c.h.b16 %v510
        %v693 = vunpack.c.l.b16 %v511
        %v694 = vunpack.c.h.b16 %v511
        %v695 = vunpack.c.l.b16 %v512
        %v696 = vunpack.c.h.b16 %v512
        %v697 = vunpack.c.l.b16 %v513
        %v698 = vunpack.c.h.b16 %v513
        %v699 = vunpack.c.l.b16 %v514
        %v700 = vunpack.c.h.b16 %v514
        %v701 = vunpack.c.l.b16 %v515
        %v702 = vunpack.c.h.b16 %v515
        %v703 = vunpack.c.l.b16 %v516
        %v704 = vunpack.c.h.b16 %v516
        %v705 = vunpack.c.l.b16 %v517
        %v706 = vunpack.c.h.b16 %v517
        %v707 = vunpack.c.l.b16 %v518
        %v708 = vunpack.c.h.b16 %v518
        %v709 = vunpack.c.l.b16 %v519
        %v710 = vunpack.c.h.b16 %v519
        %v711 = vunpack.c.l.b16 %v520
        %v712 = vunpack.c.h.b16 %v520
        %v713 = vunpack.c.l.b16 %v521
        %v714 = vunpack.c.h.b16 %v521
        %v715 = vunpack.c.l.b16 %v522
        %v716 = vunpack.c.h.b16 %v522
        %v717 = vunpack.c.l.b16 %v523
        %v718 = vunpack.c.h.b16 %v523
        %v719 = vunpack.c.l.b16 %v524
        %v720 = vunpack.c.h.b16 %v524
        %v721 = vunpack.c.l.b16 %v525
        %v722 = vunpack.c.h.b16 %v525
        %v723 = vunpack.c.l.b16 %v526
        %v724 = vunpack.c.h.b16 %v526
        %v725 = vunpack.c.l.b16 %v527
        %v726 = vunpack.c.h.b16 %v527
        %v727 = vunpack.c.l.b16 %v528
        %v728 = vunpack.c.h.b16 %v528
        %v729 = vunpack.c.l.b16 %v529
        %v730 = vunpack.c.h.b16 %v529
        %v731 = vunpack.c.l.b16 %v530
        %v732 = vunpack.c.h.b16 %v530
        %v733 = vunpack.c.l.b16 %v531
        %v734 = vunpack.c.h.b16 %v531
        %v735 = vunpack.c.l.b16 %v532
        %v736 = vunpack.c.h.b16 %v532
        %v737 = vunpack.c.l.b16 %v533
        %v738 = vunpack.c.h.b16 %v533
        %v739 = vunpack.c.l.b16 %v534
        %v740 = vunpack.c.h.b16 %v534
        %v741 = vunpack.c.l.b16 %v535
        %v742 = vunpack.c.h.b16 %v535
        %v743 = vunpack.c.l.b16 %v536
        %v744 = vunpack.c.h.b16 %v536
        %v745 = vunpack.c.l.b16 %v537
        %v746 = vunpack.c.h.b16 %v537
        %v747 = vunpack.c.l.b16 %v538
        %v748 = vunpack.c.h.b16 %v538
        %v749 = vpack.c.b16 %v629, %v621
        %v750 = vpack.c.b16 %v630, %v622
        %v751 = vpack.c.b16 %v631, %v623
        %v752 = vpack.c.b16 %v632, %v624
        %v753 = vpack.c.b16 %v633, %v625
        %v754 = vpack.c.b16 %v634, %v626
        %v755 = vpack.c.b16 %v635, %v627
        %v756 = vpack.c.b16 %v636, %v628
        %v757 = vpack.c.b16 %v645, %v637
        %v758 = vpack.c.b16 %v646, %v638
        %v759 = vpack.c.b16 %v647, %v639
        %v760 = vpack.c.b16 %v648, %v640
        %v761 = vpack.c.b16 %v649, %v641
        %v762 = vpack.c.b16 %v650, %v642
        %v763 = vpack.c.b16 %v651, %v643
        %v764 = vpack.c.b16 %v652, %v644
        %v765 = vpack.c.b16 %v661, %v653
        %v766 = vpack.c.b16 %v662, %v654
        %v767 = vpack.c.b16 %v663, %v655
        %v768 = vpack.c.b16 %v664, %v656
        %v769 = vpack.c.b16 %v665, %v657
        %v770 = vpack.c.b16 %v666, %v658
        %v771 = vpack.c.b16 %v667, %v659
        %v772 = vpack.c.b16 %v668, %v660
        %v773 = vpack.c.b16 %v677, %v669
        %v774 = vpack.c.b16 %v678, %v670
        %v775 = vpack.c.b16 %v679, %v671
        %v776 = vpack.c.b16 %v680, %v672
        %v777 = vpack.c.b16 %v681, %v673
        %v778 = vpack.c.b16 %v682, %v674
        %v779 = vpack.c.b16 %v683, %v675
        %v780 = vpack.c.b16 %v684, %v676
        %v781 = vpack.c.b16 %v693, %v685
        %v782 = vpack.c.b16 %v694, %v686
        %v783 = vpack.c.b16 %v695, %v687
        %v784 = vpack.c.b16 %v696, %v688
        %v785 = vpack.c.b16 %v697, %v689
        %v786 = vpack.c.b16 %v698, %v690
        %v787 = vpack.c.b16 %v699, %v691
        %v788 = vpack.c.b16 %v700, %v692
        %v789 = vpack.c.b16 %v709, %v701
        %v790 = vpack.c.b16 %v710, %v702
        %v791 = vpack.c.b16 %v711, %v703
        %v792 = vpack.c.b16 %v712, %v704
        %v793 = vpack.c.b16 %v713, %v705
        %v794 = vpack.c.b16 %v714, %v706
        %v795 = vpack.c.b16 %v715, %v707
        %v796 = vpack.c.b16 %v716, %v708
        %v797 = vpack.c.b16 %v725, %v717
        %v798 = vpack.c.b16 %v726, %v718
        %v799 = vpack.c.b16 %v727, %v719
        %v800 = vpack.c.b16 %v728, %v720
        %v801 = vpack.c.b16 %v729, %v721
        %v802 = vpack.c.b16 %v730, %v722
        %v803 = vpack.c.b16 %v731, %v723
        %v804 = vpack.c.b16 %v732, %v724
        %v805 = vpack.c.b16 %v741, %v733
        %v806 = vpack.c.b16 %v742, %v734
        %v807 = vpack.c.b16 %v743, %v735
        %v808 = vpack.c.b16 %v744, %v736
        %v809 = vpack.c.b16 %v745, %v737
        %v810 = vpack.c.b16 %v746, %v738
        %v811 = vpack.c.b16 %v747, %v739
        %v812 = vpack.c.b16 %v748, %v740
        %877 = vmatpush.bf16.msra.mxu0 %v805
        %878 = vmatpush.bf16.msra.mxu0 %v797
        %879 = vmatpush.bf16.msra.mxu0 %v789
        %880 = vmatpush.bf16.msra.mxu0 %v781
        %881 = vmatpush.bf16.msra.mxu0 %v773
        %882 = vmatpush.bf16.msra.mxu0 %v765
        %883 = vmatpush.bf16.msra.mxu0 %v757
        %884 = vmatpush.bf16.msra.mxu0 %v749
        %885 = vmatmul.bf16.gmra.mxu0 %v473
        %v886 = vpop.f32.mrf.mxu0
        %v887 = vadd.f32 %v541, %v886
        %v888 = vpop.f32.mrf.mxu0
        %v889 = vadd.f32 %v541, %v888
        %890 = vmatmul.bf16.gmra.mxu0 %v474
        %v891 = vpop.f32.mrf.mxu0
        %v892 = vadd.f32 %v541, %v891
        %v893 = vpop.f32.mrf.mxu0
        %v894 = vadd.f32 %v541, %v893
        %895 = vdwg.mxu0
        %896 = vmatpush.bf16.msra.mxu0 %v806
        %897 = vmatpush.bf16.msra.mxu0 %v798
        %898 = vmatpush.bf16.msra.mxu0 %v790
        %899 = vmatpush.bf16.msra.mxu0 %v782
        %900 = vmatpush.bf16.msra.mxu0 %v774
        %901 = vmatpush.bf16.msra.mxu0 %v766
        %902 = vmatpush.bf16.msra.mxu0 %v758
        %903 = vmatpush.bf16.msra.mxu0 %v750
        %904 = vmatmul.bf16.gmra.mxu0 %v473
        %v905 = vpop.f32.mrf.mxu0
        %v906 = vadd.f32 %v542, %v905
        %v907 = vpop.f32.mrf.mxu0
        %v908 = vadd.f32 %v542, %v907
        %909 = vmatmul.bf16.gmra.mxu0 %v474
        %v910 = vpop.f32.mrf.mxu0
        %v911 = vadd.f32 %v542, %v910
        %v912 = vpop.f32.mrf.mxu0
        %v913 = vadd.f32 %v542, %v912
        %914 = vdwg.mxu0
        %915 = vmatpush.bf16.msra.mxu0 %v807
        %916 = vmatpush.bf16.msra.mxu0 %v799
        %917 = vmatpush.bf16.msra.mxu0 %v791
        %918 = vmatpush.bf16.msra.mxu0 %v783
        %919 = vmatpush.bf16.msra.mxu0 %v775
        %920 = vmatpush.bf16.msra.mxu0 %v767
        %921 = vmatpush.bf16.msra.mxu0 %v759
        %922 = vmatpush.bf16.msra.mxu0 %v751
        %923 = vmatmul.bf16.gmra.mxu0 %v473
        %v924 = vpop.f32.mrf.mxu0
        %v925 = vadd.f32 %v543, %v924
        %v926 = vpop.f32.mrf.mxu0
        %v927 = vadd.f32 %v543, %v926
        %928 = vmatmul.bf16.gmra.mxu0 %v474
        %v929 = vpop.f32.mrf.mxu0
        %v930 = vadd.f32 %v543, %v929
        %v931 = vpop.f32.mrf.mxu0
        %v932 = vadd.f32 %v543, %v931
        %933 = vdwg.mxu0
        %934 = vmatpush.bf16.msra.mxu0 %v808
        %935 = vmatpush.bf16.msra.mxu0 %v800
        %936 = vmatpush.bf16.msra.mxu0 %v792
        %937 = vmatpush.bf16.msra.mxu0 %v784
        %938 = vmatpush.bf16.msra.mxu0 %v776
        %939 = vmatpush.bf16.msra.mxu0 %v768
        %940 = vmatpush.bf16.msra.mxu0 %v760
        %941 = vmatpush.bf16.msra.mxu0 %v752
        %942 = vmatmul.bf16.gmra.mxu0 %v473
        %v943 = vpop.f32.mrf.mxu0
        %v944 = vadd.f32 %v544, %v943
        %v945 = vpop.f32.mrf.mxu0
        %v946 = vadd.f32 %v544, %v945
        %947 = vmatmul.bf16.gmra.mxu0 %v474
        %v948 = vpop.f32.mrf.mxu0
        %v949 = vadd.f32 %v544, %v948
        %v950 = vpop.f32.mrf.mxu0
        %v951 = vadd.f32 %v544, %v950
        %952 = vdwg.mxu0
        %953 = vmatpush.bf16.msra.mxu0 %v809
        %954 = vmatpush.bf16.msra.mxu0 %v801
        %955 = vmatpush.bf16.msra.mxu0 %v793
        %956 = vmatpush.bf16.msra.mxu0 %v785
        %957 = vmatpush.bf16.msra.mxu0 %v777
        %958 = vmatpush.bf16.msra.mxu0 %v769
        %959 = vmatpush.bf16.msra.mxu0 %v761
        %960 = vmatpush.bf16.msra.mxu0 %v753
        %961 = vmatmul.bf16.gmra.mxu0 %v473
        %v962 = vpop.f32.mrf.mxu0
        %v963 = vadd.f32 %v545, %v962
        %v964 = vpop.f32.mrf.mxu0
        %v965 = vadd.f32 %v545, %v964
        %966 = vmatmul.bf16.gmra.mxu0 %v474
        %v967 = vpop.f32.mrf.mxu0
        %v968 = vadd.f32 %v545, %v967
        %v969 = vpop.f32.mrf.mxu0
        %v970 = vadd.f32 %v545, %v969
        %971 = vdwg.mxu0
        %972 = vmatpush.bf16.msra.mxu0 %v810
        %973 = vmatpush.bf16.msra.mxu0 %v802
        %974 = vmatpush.bf16.msra.mxu0 %v794
        %975 = vmatpush.bf16.msra.mxu0 %v786
        %976 = vmatpush.bf16.msra.mxu0 %v778
        %977 = vmatpush.bf16.msra.mxu0 %v770
        %978 = vmatpush.bf16.msra.mxu0 %v762
        %979 = vmatpush.bf16.msra.mxu0 %v754
        %980 = vmatmul.bf16.gmra.mxu0 %v473
        %v981 = vpop.f32.mrf.mxu0
        %v982 = vadd.f32 %v546, %v981
        %v983 = vpop.f32.mrf.mxu0
        %v984 = vadd.f32 %v546, %v983
        %985 = vmatmul.bf16.gmra.mxu0 %v474
        %v986 = vpop.f32.mrf.mxu0
        %v987 = vadd.f32 %v546, %v986
        %v988 = vpop.f32.mrf.mxu0
        %v989 = vadd.f32 %v546, %v988
        %990 = vdwg.mxu0
        %991 = vmatpush.bf16.msra.mxu0 %v811
        %992 = vmatpush.bf16.msra.mxu0 %v803
        %993 = vmatpush.bf16.msra.mxu0 %v795
        %994 = vmatpush.bf16.msra.mxu0 %v787
        %995 = vmatpush.bf16.msra.mxu0 %v779
        %996 = vmatpush.bf16.msra.mxu0 %v771
        %997 = vmatpush.bf16.msra.mxu0 %v763
        %998 = vmatpush.bf16.msra.mxu0 %v755
        %999 = vmatmul.bf16.gmra.mxu0 %v473
        %v1000 = vpop.f32.mrf.mxu0
        %v1001 = vadd.f32 %v547, %v1000
        %v1002 = vpop.f32.mrf.mxu0
        %v1003 = vadd.f32 %v547, %v1002
        %1004 = vmatmul.bf16.gmra.mxu0 %v474
        %v1005 = vpop.f32.mrf.mxu0
        %v1006 = vadd.f32 %v547, %v1005
        %v1007 = vpop.f32.mrf.mxu0
        %v1008 = vadd.f32 %v547, %v1007
        %1009 = vdwg.mxu0
        %1010 = vmatpush.bf16.msra.mxu0 %v812
        %1011 = vmatpush.bf16.msra.mxu0 %v804
        %1012 = vmatpush.bf16.msra.mxu0 %v796
        %1013 = vmatpush.bf16.msra.mxu0 %v788
        %1014 = vmatpush.bf16.msra.mxu0 %v780
        %1015 = vmatpush.bf16.msra.mxu0 %v772
        %1016 = vmatpush.bf16.msra.mxu0 %v764
        %1017 = vmatpush.bf16.msra.mxu0 %v756
        %1018 = vmatmul.bf16.gmra.mxu0 %v473
        %v1019 = vpop.f32.mrf.mxu0
        %v1020 = vadd.f32 %v548, %v1019
        %v1021 = vpop.f32.mrf.mxu0
        %v1022 = vadd.f32 %v548, %v1021
        %1023 = vmatmul.bf16.gmra.mxu0 %v474
        %v1024 = vpop.f32.mrf.mxu0
        %v1025 = vadd.f32 %v548, %v1024
        %v1026 = vpop.f32.mrf.mxu0
        %v1027 = vadd.f32 %v548, %v1026
        %1028 = vdwg.mxu0
        %p1029 = scmp.ne.s32.totalorder %s24, 0
        // Predicated region
        $region57: #{pointnet_iid_forward.4} parent=47 // pred_check
          %p1030 = pneg %p1029
        $region58: #{pointnet_iid_forward.4} parent=47 // pred_check_branch
          %1032 = sbr.rel (%p1030) target = $region60
        $region59: #{pointnet_iid_forward.4} parent=47 // pred_region
          %v1033 = vld [vmem:[#allocation2] sm:$0xff]
          %v1034 = vld [vmem:[#allocation2 + $0x8] sm:$0xff]
          %v1035 = vld [vmem:[#allocation2 + $0x10] sm:$0xff]
          %v1036 = vld [vmem:[#allocation2 + $0x18] sm:$0xff]
          %v1037 = vld [vmem:[#allocation2 + $0x20] sm:$0xff]
          %v1038 = vld [vmem:[#allocation2 + $0x28] sm:$0xff]
          %v1039 = vld [vmem:[#allocation2 + $0x30] sm:$0xff]
          %v1040 = vld [vmem:[#allocation2 + $0x38] sm:$0xff]
          %v1041 = vmax.f32 %v887, %v889
          %v1042 = vmax.f32 %v1041, %v892
          %v1043 = vmax.f32 %v1042, %v894
          %v1044 = vmax.f32 %v906, %v908
          %v1045 = vmax.f32 %v1044, %v911
          %v1046 = vmax.f32 %v1045, %v913
          %v1047 = vmax.f32 %v925, %v927
          %v1048 = vmax.f32 %v1047, %v930
          %v1049 = vmax.f32 %v1048, %v932
          %v1050 = vmax.f32 %v944, %v946
          %v1051 = vmax.f32 %v1050, %v949
          %v1052 = vmax.f32 %v1051, %v951
          %v1053 = vmax.f32 %v963, %v965
          %v1054 = vmax.f32 %v1053, %v968
          %v1055 = vmax.f32 %v1054, %v970
          %v1056 = vmax.f32 %v982, %v984
          %v1057 = vmax.f32 %v1056, %v987
          %v1058 = vmax.f32 %v1057, %v989
          %v1059 = vmax.f32 %v1001, %v1003
          %v1060 = vmax.f32 %v1059, %v1006
          %v1061 = vmax.f32 %v1060, %v1008
          %v1062 = vmax.f32 %v1020, %v1022
          %v1063 = vmax.f32 %v1062, %v1025
          %v1064 = vmax.f32 %v1063, %v1027
          %v1065 = vmax.f32 %v1033, %v1043
          %v1066 = vmax.f32 %v1034, %v1046
          %v1067 = vmax.f32 %v1035, %v1049
          %v1068 = vmax.f32 %v1036, %v1052
          %v1069 = vmax.f32 %v1037, %v1055
          %v1070 = vmax.f32 %v1038, %v1058
          %v1071 = vmax.f32 %v1039, %v1061
          %v1072 = vmax.f32 %v1040, %v1064
          %1073 = vst [vmem:[#allocation2] sm:$0xff] %v1065
          %1074 = vst [vmem:[#allocation2 + $0x8] sm:$0xff] %v1066
          %1075 = vst [vmem:[#allocation2 + $0x10] sm:$0xff] %v1067
          %1076 = vst [vmem:[#allocation2 + $0x18] sm:$0xff] %v1068
          %1077 = vst [vmem:[#allocation2 + $0x20] sm:$0xff] %v1069
          %1078 = vst [vmem:[#allocation2 + $0x28] sm:$0xff] %v1070
          %1079 = vst [vmem:[#allocation2 + $0x30] sm:$0xff] %v1071
          %1080 = vst [vmem:[#allocation2 + $0x38] sm:$0xff] %v1072
        $region60: #{pointnet_iid_forward.4} parent=47 // pred_fallthru
          _
        // Predicated region
        $region61: #{pointnet_iid_forward.4} parent=47 // pred_check
          %p1081 = pneg %p340
        $region62: #{pointnet_iid_forward.4} parent=47 // pred_check_branch
          %1083 = sbr.rel (%p1081) target = $region64
        $region63: #{pointnet_iid_forward.4} parent=47 // pred_region
          %s1084 = smul.u32 %s24, 32
          %v1085 = vlaneseq
          %v1086 = vshrl.u32 %v1085, 7
          %v1087 = vadd.s32 %v1086, 8
          %v1088 = vadd.s32 %v1086, 16
          %v1089 = vadd.s32 %v1086, 24
          %v1090 = vstv %s1084
          %v1091 = vadd.s32 %v1090, %v1086
          %v1092 = vadd.s32 %v1090, %v1087
          %v1093 = vadd.s32 %v1090, %v1088
          %v1094 = vadd.s32 %v1090, %v1089
          %vm1095 = vcmp.lt.s32.totalorder %v1091, 20
          %vm1096 = vcmp.lt.s32.totalorder %v1092, 20
          %vm1097 = vcmp.lt.s32.totalorder %v1093, 20
          %vm1098 = vcmp.lt.s32.totalorder %v1094, 20
          %v1099 = vsel %vm1095, 1, 0
          %v1100 = vsel %vm1096, 1, 0
          %v1101 = vsel %vm1097, 1, 0
          %v1102 = vsel %vm1098, 1, 0
          %vm1103 = vcmp.eq.s32.totalorder %v1099, 1
          %vm1104 = vcmp.eq.s32.totalorder %v1100, 1
          %vm1105 = vcmp.eq.s32.totalorder %v1101, 1
          %vm1106 = vcmp.eq.s32.totalorder %v1102, 1
          %v1107 = vsel %vm1103, %v887, -inf
          %v1108 = vsel %vm1103, %v906, -inf
          %v1109 = vsel %vm1103, %v925, -inf
          %v1110 = vsel %vm1103, %v944, -inf
          %v1111 = vsel %vm1103, %v963, -inf
          %v1112 = vsel %vm1103, %v982, -inf
          %v1113 = vsel %vm1103, %v1001, -inf
          %v1114 = vsel %vm1103, %v1020, -inf
          %v1115 = vsel %vm1104, %v889, -inf
          %v1116 = vsel %vm1104, %v908, -inf
          %v1117 = vsel %vm1104, %v927, -inf
          %v1118 = vsel %vm1104, %v946, -inf
          %v1119 = vsel %vm1104, %v965, -inf
          %v1120 = vsel %vm1104, %v984, -inf
          %v1121 = vsel %vm1104, %v1003, -inf
          %v1122 = vsel %vm1104, %v1022, -inf
          %v1123 = vsel %vm1105, %v892, -inf
          %v1124 = vsel %vm1105, %v911, -inf
          %v1125 = vsel %vm1105, %v930, -inf
          %v1126 = vsel %vm1105, %v949, -inf
          %v1127 = vsel %vm1105, %v968, -inf
          %v1128 = vsel %vm1105, %v987, -inf
          %v1129 = vsel %vm1105, %v1006, -inf
          %v1130 = vsel %vm1105, %v1025, -inf
          %v1131 = vsel %vm1106, %v894, -inf
          %v1132 = vsel %vm1106, %v913, -inf
          %v1133 = vsel %vm1106, %v932, -inf
          %v1134 = vsel %vm1106, %v951, -inf
          %v1135 = vsel %vm1106, %v970, -inf
          %v1136 = vsel %vm1106, %v989, -inf
          %v1137 = vsel %vm1106, %v1008, -inf
          %v1138 = vsel %vm1106, %v1027, -inf
          %v1139 = vld [vmem:[#allocation2] sm:$0xff]
          %v1140 = vld [vmem:[#allocation2 + $0x8] sm:$0xff]
          %v1141 = vld [vmem:[#allocation2 + $0x10] sm:$0xff]
          %v1142 = vld [vmem:[#allocation2 + $0x18] sm:$0xff]
          %v1143 = vld [vmem:[#allocation2 + $0x20] sm:$0xff]
          %v1144 = vld [vmem:[#allocation2 + $0x28] sm:$0xff]
          %v1145 = vld [vmem:[#allocation2 + $0x30] sm:$0xff]
          %v1146 = vld [vmem:[#allocation2 + $0x38] sm:$0xff]
          %v1147 = vmax.f32 %v1107, %v1115
          %v1148 = vmax.f32 %v1147, %v1123
          %v1149 = vmax.f32 %v1148, %v1131
          %v1150 = vmax.f32 %v1108, %v1116
          %v1151 = vmax.f32 %v1150, %v1124
          %v1152 = vmax.f32 %v1151, %v1132
          %v1153 = vmax.f32 %v1109, %v1117
          %v1154 = vmax.f32 %v1153, %v1125
          %v1155 = vmax.f32 %v1154, %v1133
          %v1156 = vmax.f32 %v1110, %v1118
          %v1157 = vmax.f32 %v1156, %v1126
          %v1158 = vmax.f32 %v1157, %v1134
          %v1159 = vmax.f32 %v1111, %v1119
          %v1160 = vmax.f32 %v1159, %v1127
          %v1161 = vmax.f32 %v1160, %v1135
          %v1162 = vmax.f32 %v1112, %v1120
          %v1163 = vmax.f32 %v1162, %v1128
          %v1164 = vmax.f32 %v1163, %v1136
          %v1165 = vmax.f32 %v1113, %v1121
          %v1166 = vmax.f32 %v1165, %v1129
          %v1167 = vmax.f32 %v1166, %v1137
          %v1168 = vmax.f32 %v1114, %v1122
          %v1169 = vmax.f32 %v1168, %v1130
          %v1170 = vmax.f32 %v1169, %v1138
          %v1171 = vmax.f32 %v1139, %v1149
          %v1172 = vmax.f32 %v1140, %v1152
          %v1173 = vmax.f32 %v1141, %v1155
          %v1174 = vmax.f32 %v1142, %v1158
          %v1175 = vmax.f32 %v1143, %v1161
          %v1176 = vmax.f32 %v1144, %v1164
          %v1177 = vmax.f32 %v1145, %v1167
          %v1178 = vmax.f32 %v1146, %v1170
          %1179 = vst [vmem:[#allocation2] sm:$0xff] %v1171
          %1180 = vst [vmem:[#allocation2 + $0x8] sm:$0xff] %v1172
          %1181 = vst [vmem:[#allocation2 + $0x10] sm:$0xff] %v1173
          %1182 = vst [vmem:[#allocation2 + $0x18] sm:$0xff] %v1174
          %1183 = vst [vmem:[#allocation2 + $0x20] sm:$0xff] %v1175
          %1184 = vst [vmem:[#allocation2 + $0x28] sm:$0xff] %v1176
          %1185 = vst [vmem:[#allocation2 + $0x30] sm:$0xff] %v1177
          %1186 = vst [vmem:[#allocation2 + $0x38] sm:$0xff] %v1178
          %v1187 = vld [vmem:[#allocation2] sm:$0xff]
          %v1188 = vld [vmem:[#allocation2 + $0x8] sm:$0xff]
          %v1189 = vld [vmem:[#allocation2 + $0x10] sm:$0xff]
          %v1190 = vld [vmem:[#allocation2 + $0x18] sm:$0xff]
          %v1191 = vld [vmem:[#allocation2 + $0x20] sm:$0xff]
          %v1192 = vld [vmem:[#allocation2 + $0x28] sm:$0xff]
          %v1193 = vld [vmem:[#allocation2 + $0x30] sm:$0xff]
          %v1194 = vld [vmem:[#allocation2 + $0x38] sm:$0xff]
          %v1195 = vrot.slane %v1187, 4
          %v1196 = vmax.f32 %v1187, %v1195
          %v1197 = vrot.slane %v1196, 2
          %v1198 = vmax.f32 %v1196, %v1197
          %v1199 = vrot.slane %v1198, 1
          %v1200 = vmax.f32 %v1198, %v1199
          %v1201 = vrot.slane %v1188, 4
          %v1202 = vmax.f32 %v1188, %v1201
          %v1203 = vrot.slane %v1202, 2
          %v1204 = vmax.f32 %v1202, %v1203
          %v1205 = vrot.slane %v1204, 1
          %v1206 = vmax.f32 %v1204, %v1205
          %v1207 = vrot.slane %v1189, 4
          %v1208 = vmax.f32 %v1189, %v1207
          %v1209 = vrot.slane %v1208, 2
          %v1210 = vmax.f32 %v1208, %v1209
          %v1211 = vrot.slane %v1210, 1
          %v1212 = vmax.f32 %v1210, %v1211
          %v1213 = vrot.slane %v1190, 4
          %v1214 = vmax.f32 %v1190, %v1213
          %v1215 = vrot.slane %v1214, 2
          %v1216 = vmax.f32 %v1214, %v1215
          %v1217 = vrot.slane %v1216, 1
          %v1218 = vmax.f32 %v1216, %v1217
          %v1219 = vrot.slane %v1191, 4
          %v1220 = vmax.f32 %v1191, %v1219
          %v1221 = vrot.slane %v1220, 2
          %v1222 = vmax.f32 %v1220, %v1221
          %v1223 = vrot.slane %v1222, 1
          %v1224 = vmax.f32 %v1222, %v1223
          %v1225 = vrot.slane %v1192, 4
          %v1226 = vmax.f32 %v1192, %v1225
          %v1227 = vrot.slane %v1226, 2
          %v1228 = vmax.f32 %v1226, %v1227
          %v1229 = vrot.slane %v1228, 1
          %v1230 = vmax.f32 %v1228, %v1229
          %v1231 = vrot.slane %v1193, 4
          %v1232 = vmax.f32 %v1193, %v1231
          %v1233 = vrot.slane %v1232, 2
          %v1234 = vmax.f32 %v1232, %v1233
          %v1235 = vrot.slane %v1234, 1
          %v1236 = vmax.f32 %v1234, %v1235
          %v1237 = vrot.slane %v1194, 4
          %v1238 = vmax.f32 %v1194, %v1237
          %v1239 = vrot.slane %v1238, 2
          %v1240 = vmax.f32 %v1238, %v1239
          %v1241 = vrot.slane %v1240, 1
          %v1242 = vmax.f32 %v1240, %v1241
          %v1251 = vrot.slane %v1206, 7
          %v1252 = vrot.slane %v1212, 6
          %v1253 = vrot.slane %v1218, 5
          %v1254 = vrot.slane %v1224, 4
          %v1255 = vrot.slane %v1230, 3
          %v1256 = vrot.slane %v1236, 2
          %v1257 = vrot.slane %v1242, 1
          %vm1258 = vcmask 1040384
          %v1259 = vsel %vm1258, %v1200, %v1251
          %vm1260 = vcmask 1042434
          %v1261 = vsel %vm1260, %v1252, %v1253
          %vm1262 = vcmask 1041408
          %v1263 = vsel %vm1262, %v1259, %v1261
          %vm1264 = vcmask 1044484
          %v1265 = vsel %vm1264, %v1254, %v1255
          %vm1266 = vcmask 1046534
          %v1267 = vsel %vm1266, %v1256, %v1257
          %vm1268 = vcmask 1045508
          %v1269 = vsel %vm1268, %v1265, %v1267
          %vm1270 = vcmask 1043456
          %v1271 = vsel %vm1270, %v1263, %v1269
          %1273 = vst [vmem:[%s338] sm:$0xff] %v1271
        $region64: #{pointnet_iid_forward.4} parent=47 // pred_fallthru
          _
        %p1274 = scmp.lt.s32.totalorder %s23, 1
        %s1275 = scalar_select %p1274, %s23, 1
        %s1276 = smul.addr %s1275, 8
        %s1277 = scalar_lea.vmem %s7, %s1276
        // Predicated region
        $region65: #{pointnet_iid_forward.4} parent=47 // pred_check
          %p1278 = pneg %p208
        $region66: #{pointnet_iid_forward.4} parent=47 // pred_check_branch
          %1280 = sbr.rel (%p1278) target = $region68
        $region67: #{pointnet_iid_forward.4} parent=47 // pred_region
          _
        $region68: #{pointnet_iid_forward.4} parent=47 // pred_fallthru
          _
      $region48: #{pointnet_iid_forward.4} parent=5 // pred_fallthru
        _
      %p1281 = scmp.le.s32.totalorder 2, %s14
      // Predicated region
      $region69: #{pointnet_iid_forward.4} parent=5 // pred_check
        %p1282 = pneg %p1281
      $region70: #{pointnet_iid_forward.4} parent=5 // pred_check_branch
        %1284 = sbr.rel (%p1282) target = $region72
      $region71: #{pointnet_iid_forward.4} parent=5 // pred_region
        %s1285 = ssub.s32 %s14, 2
        // Predicated region
        $region73: #{pointnet_iid_forward.4} parent=71 // pred_check
          %p1286 = pneg %p214
        $region74: #{pointnet_iid_forward.4} parent=71 // pred_check_branch
          %1288 = sbr.rel (%p1286) target = $region76
        $region75: #{pointnet_iid_forward.4} parent=71 // pred_region
          %p1289 = scmp.lt.s32.totalorder %s25, 1
          %s1290 = scalar_select %p1289, %s25, 1
          %s1291 = smul.addr %s1290, 8
          %s1292 = scalar_lea.vmem %s7, %s1291
        $region76: #{pointnet_iid_forward.4} parent=71 // pred_fallthru
          _
      $region72: #{pointnet_iid_forward.4} parent=5 // pred_fallthru
        _
    $region6: #{pointnet_iid_forward.4} parent=1 // loop_footer
      %s18 = sadd.s32 1, %s14
    $region7: #{pointnet_iid_forward.4} parent=1 // loop_footer_branch
      %13 = sbr.rel target = $region3
    $region8: #{pointnet_iid_forward.4} parent=1 // loop_exit
      _
    %1293 = vsyncpa [#allocation4], 1
    %s1294 = scalar_lea.sflag [#allocation4], 1
    %1295 = vsyncpa %s1294, 1

// kernel: pointnet_iid_forward.3
$region0: #{pointnet_iid_forward.3}
  #allocation0 [shape = 'u32[]', space=smem, size = 0x4, offset = 0x4, fixed_abs, tag = 'smem constant byte address 0x4 - core index']
  #allocation1 [shape = 'u32[72,128]{1,0:T(1,128)}', space=vmem, size = 0x9000, scoped, tag = 'internal scratch']
  #allocation2 [shape = 'f32[8,1024]{1,0:T(8,128)}', space=vmem, size = 0x8000, scoped, tag = 'scratch operand']
  %s0 = inlined_call_operand.vmem [shape: bf16[2,32,6], index: 0, kind: input, shape index: {}]
  %s1 = inlined_call_operand.hbm [shape: bf16[1,6,64], index: 1, kind: input, shape index: {}]
  %s2 = inlined_call_operand.hbm [shape: f32[1,1,64], index: 2, kind: input, shape index: {}]
  %s3 = inlined_call_operand.hbm [shape: bf16[1,64,128], index: 3, kind: input, shape index: {}]
  %s4 = inlined_call_operand.hbm [shape: f32[1,1,128], index: 4, kind: input, shape index: {}]
  %s5 = inlined_call_operand.hbm [shape: bf16[1,128,1024], index: 5, kind: input, shape index: {}]
  %s6 = inlined_call_operand.hbm [shape: f32[1,1,1024], index: 6, kind: input, shape index: {}]
  %s7 = inlined_call_operand.vmem [shape: f32[2,1,1024], index: 7, kind: output, shape index: {}]
  %s8 = sld [smem:[#allocation0]]
  $region97: #{pointnet_iid_forward.3} parent=0
    _
  %s10 = ssub.s32 1, %s8
  %s11 = scalar_select 0, %s10, %s8
  $region1: #{pointnet_iid_forward.3} parent=0
    #allocation3 [shape = 'u8[2048]{0}', space=vmem, size = 0x800, scoped, tag = 'input window, operand 1, single buffered']
    #allocation4 [shape = 's32[2]{0}', space=sflag, size = 0x8, scoped, tag = 'scoped memory for pointnet_iid_forward.3']
    #allocation5 [shape = 'u8[512]{0}', space=vmem, size = 0x400, scoped, tag = 'input window, operand 2, single buffered']
    #allocation6 [shape = 's32[1]{0}', space=sflag, size = 0x4, scoped, tag = 'scoped memory for pointnet_iid_forward.3']
    #allocation7 [shape = 'u8[16384]{0}', space=vmem, size = 0x4000, scoped, tag = 'input window, operand 3, single buffered']
    #allocation8 [shape = 'u8[512]{0}', space=vmem, size = 0x400, scoped, tag = 'input window, operand 4, single buffered']
    #allocation9 [shape = 's32[1]{0}', space=sflag, size = 0x4, scoped, tag = 'scoped memory for pointnet_iid_forward.3']
    #allocation10 [shape = 'u8[262144]{0}', space=vmem, size = 0x40000, scoped, tag = 'input window, operand 5, single buffered']
    #allocation11 [shape = 'u8[4096]{0}', space=vmem, size = 0x1000, scoped, tag = 'input window, operand 6, single buffered']
    #allocation12 [shape = 's32[1]{0}', space=sflag, size = 0x4, scoped, tag = 'scoped memory for pointnet_iid_forward.3']
    %12 = vsyncpa [#allocation4], 0
    %13 = vsyncpa [#allocation6], 0
    %14 = vsyncpa [#allocation9], 0
    %15 = vsyncpa [#allocation12], 0
    loop: start=0, step=1, limit=4
    $region2: #{pointnet_iid_forward.3} parent=1 // loop_pre_header
      _
    $region3: #{pointnet_iid_forward.3} parent=1 // loop_header
      %s17 = sphi 0, %s21
      %p18 = scmp.ge.s32.totalorder %s17, 4
      %s24 = sphi 0, %s36
      %s25 = sphi 0, %s32
      %s26 = sphi 0, %s24
      %s27 = sphi 0, %s25
      %s28 = sphi 0, %s26
      %s29 = sphi 0, %s27
      %s41 = sphi 0, %s43
      %s44 = sphi 0, %s41
      %s45 = sphi 0, %s44
      %s61 = sphi 0, %s45
      %s65 = sphi 0, %s65
      %s67 = sphi 0, %s65
      %s68 = sphi 0, %s67
      %s82 = sphi 0, %s68
      %s86 = sphi 0, %s86
      %s88 = sphi 0, %s86
      %s89 = sphi 0, %s88
      %s103 = sphi 0, %s89
      %s107 = sphi 0, %s107
      %s109 = sphi 0, %s107
      %s110 = sphi 0, %s109
      %s124 = sphi 0, %s110
      %s128 = sphi 0, %s128
      %s130 = sphi 0, %s128
      %s131 = sphi 0, %s130
      %s145 = sphi 0, %s131
      %s149 = sphi 0, %s149
      %s151 = sphi 0, %s149
      %s152 = sphi 0, %s151
      %s166 = sphi 0, %s152
      %s170 = sphi 0, %s170
      %s172 = sphi 0, %s170
      %s173 = sphi 0, %s172
      %s187 = sphi 0, %s173
      %s193 = sphi 0, %s195
      %s196 = sphi 0, %s193
      %s197 = sphi 0, %s196
      %s213 = sphi 0, %s197
    $region4: #{pointnet_iid_forward.3} parent=1 // loop_header_branch
      %20 = sbr.rel (%p18) target = $region8
    $region5: #{pointnet_iid_forward.3} parent=1 // loop_body
      %s22 = ssub.s32 %s17, 1
      %s23 = ssub.s32 %s17, 2
      %s30 = sadd.s32 1, %s25
      %p31 = scmp.ge.s32.totalorder %s30, 1
      %s32 = scalar_select %p31, 0, %s30
      %s33 = sadd.s32 1, %s24
      %s34 = scalar_select %p31, %s33, %s24
      %p35 = scmp.ge.s32.totalorder %s34, 2
      %s36 = scalar_select %p35, 0, %s34
      %s37 = ssub.s32 %s24, %s36
      %s38 = ssub.s32 %s25, %s32
      %s39 = sor.u32 %s37, %s38
      %p40 = scmp.eq.s32.totalorder %s39, 0
      %s42 = sadd.s32 %s41, 1
      %s43 = scalar_select %p40, %s41, %s42
      %p46 = pneg %p40
      %p47 = scmp.eq.s32.totalorder %s17, 1
      %p48 = por %p46, %p47
      %p49 = scmp.ne.s32.totalorder %s41, %s44
      %p50 = scmp.eq.s32.totalorder %s17, 0
      %p51 = por %p49, %p50
      %p52 = scmp.ne.s32.totalorder %s41, %s44
      %p53 = scmp.eq.s32.totalorder %s22, 1
      %p54 = por %p52, %p53
      %p55 = scmp.ne.s32.totalorder %s44, %s45
      %p56 = scmp.eq.s32.totalorder %s22, 0
      %p57 = por %p55, %p56
      %p58 = scmp.ne.s32.totalorder %s44, %s45
      %p59 = scmp.eq.s32.totalorder %s23, 1
      %p60 = por %p58, %p59
      %p62 = scmp.ne.s32.totalorder %s45, %s61
      %p63 = scmp.eq.s32.totalorder %s23, 0
      %p64 = por %p62, %p63
      %s66 = sadd.s32 %s65, 1
      %p69 = scmp.eq.s32.totalorder %s17, 1
      %p70 = scmp.ne.s32.totalorder %s65, %s67
      %p71 = scmp.eq.s32.totalorder %s17, 0
      %p72 = por %p70, %p71
      %p73 = scmp.ne.s32.totalorder %s65, %s67
      %p74 = scmp.eq.s32.totalorder %s22, 1
      %p75 = por %p73, %p74
      %p76 = scmp.ne.s32.totalorder %s67, %s68
      %p77 = scmp.eq.s32.totalorder %s22, 0
      %p78 = por %p76, %p77
      %p79 = scmp.ne.s32.totalorder %s67, %s68
      %p80 = scmp.eq.s32.totalorder %s23, 1
      %p81 = por %p79, %p80
      %p83 = scmp.ne.s32.totalorder %s68, %s82
      %p84 = scmp.eq.s32.totalorder %s23, 0
      %p85 = por %p83, %p84
      %s87 = sadd.s32 %s86, 1
      %p90 = scmp.eq.s32.totalorder %s17, 1
      %p91 = scmp.ne.s32.totalorder %s86, %s88
      %p92 = scmp.eq.s32.totalorder %s17, 0
      %p93 = por %p91, %p92
      %p94 = scmp.ne.s32.totalorder %s86, %s88
      %p95 = scmp.eq.s32.totalorder %s22, 1
      %p96 = por %p94, %p95
      %p97 = scmp.ne.s32.totalorder %s88, %s89
      %p98 = scmp.eq.s32.totalorder %s22, 0
      %p99 = por %p97, %p98
      %p100 = scmp.ne.s32.totalorder %s88, %s89
      %p101 = scmp.eq.s32.totalorder %s23, 1
      %p102 = por %p100, %p101
      %p104 = scmp.ne.s32.totalorder %s89, %s103
      %p105 = scmp.eq.s32.totalorder %s23, 0
      %p106 = por %p104, %p105
      %s108 = sadd.s32 %s107, 1
      %p111 = scmp.eq.s32.totalorder %s17, 1
      %p112 = scmp.ne.s32.totalorder %s107, %s109
      %p113 = scmp.eq.s32.totalorder %s17, 0
      %p114 = por %p112, %p113
      %p115 = scmp.ne.s32.totalorder %s107, %s109
      %p116 = scmp.eq.s32.totalorder %s22, 1
      %p117 = por %p115, %p116
      %p118 = scmp.ne.s32.totalorder %s109, %s110
      %p119 = scmp.eq.s32.totalorder %s22, 0
      %p120 = por %p118, %p119
      %p121 = scmp.ne.s32.totalorder %s109, %s110
      %p122 = scmp.eq.s32.totalorder %s23, 1
      %p123 = por %p121, %p122
      %p125 = scmp.ne.s32.totalorder %s110, %s124
      %p126 = scmp.eq.s32.totalorder %s23, 0
      %p127 = por %p125, %p126
      %s129 = sadd.s32 %s128, 1
      %p132 = scmp.eq.s32.totalorder %s17, 1
      %p133 = scmp.ne.s32.totalorder %s128, %s130
      %p134 = scmp.eq.s32.totalorder %s17, 0
      %p135 = por %p133, %p134
      %p136 = scmp.ne.s32.totalorder %s128, %s130
      %p137 = scmp.eq.s32.totalorder %s22, 1
      %p138 = por %p136, %p137
      %p139 = scmp.ne.s32.totalorder %s130, %s131
      %p140 = scmp.eq.s32.totalorder %s22, 0
      %p141 = por %p139, %p140
      %p142 = scmp.ne.s32.totalorder %s130, %s131
      %p143 = scmp.eq.s32.totalorder %s23, 1
      %p144 = por %p142, %p143
      %p146 = scmp.ne.s32.totalorder %s131, %s145
      %p147 = scmp.eq.s32.totalorder %s23, 0
      %p148 = por %p146, %p147
      %s150 = sadd.s32 %s149, 1
      %p153 = scmp.eq.s32.totalorder %s17, 1
      %p154 = scmp.ne.s32.totalorder %s149, %s151
      %p155 = scmp.eq.s32.totalorder %s17, 0
      %p156 = por %p154, %p155
      %p157 = scmp.ne.s32.totalorder %s149, %s151
      %p158 = scmp.eq.s32.totalorder %s22, 1
      %p159 = por %p157, %p158
      %p160 = scmp.ne.s32.totalorder %s151, %s152
      %p161 = scmp.eq.s32.totalorder %s22, 0
      %p162 = por %p160, %p161
      %p163 = scmp.ne.s32.totalorder %s151, %s152
      %p164 = scmp.eq.s32.totalorder %s23, 1
      %p165 = por %p163, %p164
      %p167 = scmp.ne.s32.totalorder %s152, %s166
      %p168 = scmp.eq.s32.totalorder %s23, 0
      %p169 = por %p167, %p168
      %s171 = sadd.s32 %s170, 1
      %p174 = scmp.eq.s32.totalorder %s17, 1
      %p175 = scmp.ne.s32.totalorder %s170, %s172
      %p176 = scmp.eq.s32.totalorder %s17, 0
      %p177 = por %p175, %p176
      %p178 = scmp.ne.s32.totalorder %s170, %s172
      %p179 = scmp.eq.s32.totalorder %s22, 1
      %p180 = por %p178, %p179
      %p181 = scmp.ne.s32.totalorder %s172, %s173
      %p182 = scmp.eq.s32.totalorder %s22, 0
      %p183 = por %p181, %p182
      %p184 = scmp.ne.s32.totalorder %s172, %s173
      %p185 = scmp.eq.s32.totalorder %s23, 1
      %p186 = por %p184, %p185
      %p188 = scmp.ne.s32.totalorder %s173, %s187
      %p189 = scmp.eq.s32.totalorder %s23, 0
      %p190 = por %p188, %p189
      %s191 = ssub.s32 %s24, %s36
      %p192 = scmp.eq.s32.totalorder %s191, 0
      %s194 = sadd.s32 %s193, 1
      %s195 = scalar_select %p192, %s193, %s194
      %p198 = pneg %p192
      %p199 = scmp.eq.s32.totalorder %s17, 1
      %p200 = por %p198, %p199
      %p201 = scmp.ne.s32.totalorder %s193, %s196
      %p202 = scmp.eq.s32.totalorder %s17, 0
      %p203 = por %p201, %p202
      %p204 = scmp.ne.s32.totalorder %s193, %s196
      %p205 = scmp.eq.s32.totalorder %s22, 1
      %p206 = por %p204, %p205
      %p207 = scmp.ne.s32.totalorder %s196, %s197
      %p208 = scmp.eq.s32.totalorder %s22, 0
      %p209 = por %p207, %p208
      %p210 = scmp.ne.s32.totalorder %s196, %s197
      %p211 = scmp.eq.s32.totalorder %s23, 1
      %p212 = por %p210, %p211
      %p214 = scmp.ne.s32.totalorder %s197, %s213
      %p215 = scmp.eq.s32.totalorder %s23, 0
      %p216 = por %p214, %p215
      %p217 = scmp.le.s32.totalorder 1, %s17
      %p218 = scmp.lt.s32.totalorder %s17, 3
      %p219 = pnand %p217, %p218
      %p220 = pneg %p219
      // Predicated region
      $region9: #{pointnet_iid_forward.3} parent=5 // pred_check
        _
      $region10: #{pointnet_iid_forward.3} parent=5 // pred_check_branch
        %222 = sbr.rel (%p219) target = $region12
      $region11: #{pointnet_iid_forward.3} parent=5 // pred_region
        %s223 = ssub.s32 %s17, 1
        // Predicated region
        $region13: #{pointnet_iid_forward.3} parent=11 // pred_check
          %p224 = pneg %p78
        $region14: #{pointnet_iid_forward.3} parent=11 // pred_check_branch
          %226 = sbr.rel (%p224) target = $region16
        $region15: #{pointnet_iid_forward.3} parent=11 // pred_region
          %228 = vsyncadd [#allocation4], 0
          %s230 = sshll.u32 %s1, 4
          %s231 = int_to_ptr.hbm [resolvable:$true] %s230
          %s232 = sshll.u32 [#allocation3], 4
          %s233 = int_to_ptr.vmem [resolvable:$true] %s232
          %235 = dma.hbm_to_vmem [thread:$0]  %s231, 64, %s233, [#allocation4]
        $region16: #{pointnet_iid_forward.3} parent=11 // pred_fallthru
          _
        // Predicated region
        $region17: #{pointnet_iid_forward.3} parent=11 // pred_check
          %p236 = pneg %p99
        $region18: #{pointnet_iid_forward.3} parent=11 // pred_check_branch
          %238 = sbr.rel (%p236) target = $region20
        $region19: #{pointnet_iid_forward.3} parent=11 // pred_region
          %240 = vsyncadd [#allocation6], 0
          %s242 = sshll.u32 %s2, 4
          %s243 = int_to_ptr.hbm [resolvable:$true] %s242
          %s244 = sshll.u32 [#allocation5], 4
          %s245 = int_to_ptr.vmem [resolvable:$true] %s244
          %247 = dma.hbm_to_vmem [thread:$0]  %s243, 16, %s245, [#allocation6]
        $region20: #{pointnet_iid_forward.3} parent=11 // pred_fallthru
          _
        // Predicated region
        $region21: #{pointnet_iid_forward.3} parent=11 // pred_check
          %p248 = pneg %p120
        $region22: #{pointnet_iid_forward.3} parent=11 // pred_check_branch
          %250 = sbr.rel (%p248) target = $region24
        $region23: #{pointnet_iid_forward.3} parent=11 // pred_region
          %252 = vsyncadd [#allocation6], 0
          %s253 = sshll.u32 %s3, 4
          %s254 = int_to_ptr.hbm [resolvable:$true] %s253
          %s255 = sshll.u32 [#allocation7], 4
          %s256 = int_to_ptr.vmem [resolvable:$true] %s255
          %261 = dma.hbm_to_vmem [thread:$0]  %s254, 512, %s256, [#allocation6], 64, 64, 4
        $region24: #{pointnet_iid_forward.3} parent=11 // pred_fallthru
          _
        // Predicated region
        $region25: #{pointnet_iid_forward.3} parent=11 // pred_check
          %p262 = pneg %p141
        $region26: #{pointnet_iid_forward.3} parent=11 // pred_check_branch
          %264 = sbr.rel (%p262) target = $region28
        $region27: #{pointnet_iid_forward.3} parent=11 // pred_region
          %266 = vsyncadd [#allocation9], 0
          %s268 = sshll.u32 %s4, 4
          %s269 = int_to_ptr.hbm [resolvable:$true] %s268
          %s270 = sshll.u32 [#allocation8], 4
          %s271 = int_to_ptr.vmem [resolvable:$true] %s270
          %273 = dma.hbm_to_vmem [thread:$0]  %s269, 16, %s271, [#allocation9]
        $region28: #{pointnet_iid_forward.3} parent=11 // pred_fallthru
          _
        // Predicated region
        $region29: #{pointnet_iid_forward.3} parent=11 // pred_check
          %p274 = pneg %p162
        $region30: #{pointnet_iid_forward.3} parent=11 // pred_check_branch
          %276 = sbr.rel (%p274) target = $region32
        $region31: #{pointnet_iid_forward.3} parent=11 // pred_region
          %278 = vsyncadd [#allocation9], 0
          %s279 = sshll.u32 %s5, 4
          %s280 = int_to_ptr.hbm [resolvable:$true] %s279
          %s281 = sshll.u32 [#allocation10], 4
          %s282 = int_to_ptr.vmem [resolvable:$true] %s281
          %287 = dma.hbm_to_vmem [thread:$0]  %s280, 8192, %s282, [#allocation9], 512, 512, 32
        $region32: #{pointnet_iid_forward.3} parent=11 // pred_fallthru
          _
        // Predicated region
        $region33: #{pointnet_iid_forward.3} parent=11 // pred_check
          %p288 = pneg %p183
        $region34: #{pointnet_iid_forward.3} parent=11 // pred_check_branch
          %290 = sbr.rel (%p288) target = $region36
        $region35: #{pointnet_iid_forward.3} parent=11 // pred_region
          %292 = vsyncadd [#allocation12], 0
          %s294 = sshll.u32 %s6, 4
          %s295 = int_to_ptr.hbm [resolvable:$true] %s294
          %s296 = sshll.u32 [#allocation11], 4
          %s297 = int_to_ptr.vmem [resolvable:$true] %s296
          %299 = dma.hbm_to_vmem [thread:$0]  %s295, 128, %s297, [#allocation12]
        $region36: #{pointnet_iid_forward.3} parent=11 // pred_fallthru
          _
      $region12: #{pointnet_iid_forward.3} parent=5 // pred_fallthru
        _
      %p300 = scmp.lt.s32.totalorder %s17, 2
      // Predicated region
      $region37: #{pointnet_iid_forward.3} parent=5 // pred_check
        %p301 = pneg %p300
      $region38: #{pointnet_iid_forward.3} parent=5 // pred_check_branch
        %303 = sbr.rel (%p301) target = $region40
      $region39: #{pointnet_iid_forward.3} parent=5 // pred_region
        // Predicated region
        $region41: #{pointnet_iid_forward.3} parent=39 // pred_check
          %p304 = pneg %p51
        $region42: #{pointnet_iid_forward.3} parent=39 // pred_check_branch
          %306 = sbr.rel (%p304) target = $region44
        $region43: #{pointnet_iid_forward.3} parent=39 // pred_region
          %s307 = smul.u32 4, %s25
          %p308 = scmp.lt.s32.totalorder %s24, 1
          %s309 = scalar_select %p308, %s24, 1
          %p310 = scmp.lt.s32.totalorder %s307, 3
          %s311 = scalar_select %p310, %s307, 3
          %s312 = smul.addr %s309, 4
          %s313 = sadd.s32 %s311, %s312
          %s314 = smul.addr %s313, 4
          %s315 = scalar_lea.vmem %s0, %s314
          %s316 = smul.u32 4, %s25
        $region44: #{pointnet_iid_forward.3} parent=39 // pred_fallthru
          _
      $region40: #{pointnet_iid_forward.3} parent=5 // pred_fallthru
        _
      %p317 = scmp.le.s32.totalorder 1, %s17
      %p318 = scmp.lt.s32.totalorder %s17, 3
      %p319 = pnand %p317, %p318
      %p320 = pneg %p319
      // Predicated region
      $region45: #{pointnet_iid_forward.3} parent=5 // pred_check
        _
      $region46: #{pointnet_iid_forward.3} parent=5 // pred_check_branch
        %322 = sbr.rel (%p319) target = $region48
      $region47: #{pointnet_iid_forward.3} parent=5 // pred_region
        %s323 = ssub.s32 %s17, 1
        // Predicated region
        $region49: #{pointnet_iid_forward.3} parent=47 // pred_check
          %p324 = pneg %p78
        $region50: #{pointnet_iid_forward.3} parent=47 // pred_check_branch
          %326 = sbr.rel (%p324) target = $region52
        $region51: #{pointnet_iid_forward.3} parent=47 // pred_region
          %328 = dma.done [#allocation4], 64
        $region52: #{pointnet_iid_forward.3} parent=47 // pred_fallthru
          _
        // Predicated region
        $region53: #{pointnet_iid_forward.3} parent=47 // pred_check
          %p329 = pneg %p99
        $region54: #{pointnet_iid_forward.3} parent=47 // pred_check_branch
          %331 = sbr.rel (%p329) target = $region56
        $region55: #{pointnet_iid_forward.3} parent=47 // pred_region
          %333 = dma.done [#allocation6], 16
        $region56: #{pointnet_iid_forward.3} parent=47 // pred_fallthru
          _
        // Predicated region
        $region57: #{pointnet_iid_forward.3} parent=47 // pred_check
          %p334 = pneg %p120
        $region58: #{pointnet_iid_forward.3} parent=47 // pred_check_branch
          %336 = sbr.rel (%p334) target = $region60
        $region59: #{pointnet_iid_forward.3} parent=47 // pred_region
          %338 = dma.done [#allocation6], 512
        $region60: #{pointnet_iid_forward.3} parent=47 // pred_fallthru
          _
        // Predicated region
        $region61: #{pointnet_iid_forward.3} parent=47 // pred_check
          %p339 = pneg %p141
        $region62: #{pointnet_iid_forward.3} parent=47 // pred_check_branch
          %341 = sbr.rel (%p339) target = $region64
        $region63: #{pointnet_iid_forward.3} parent=47 // pred_region
          %343 = dma.done [#allocation9], 16
        $region64: #{pointnet_iid_forward.3} parent=47 // pred_fallthru
          _
        // Predicated region
        $region65: #{pointnet_iid_forward.3} parent=47 // pred_check
          %p344 = pneg %p162
        $region66: #{pointnet_iid_forward.3} parent=47 // pred_check_branch
          %346 = sbr.rel (%p344) target = $region68
        $region67: #{pointnet_iid_forward.3} parent=47 // pred_region
          %348 = dma.done [#allocation9], 8192
        $region68: #{pointnet_iid_forward.3} parent=47 // pred_fallthru
          _
        // Predicated region
        $region69: #{pointnet_iid_forward.3} parent=47 // pred_check
          %p349 = pneg %p183
        $region70: #{pointnet_iid_forward.3} parent=47 // pred_check_branch
          %351 = sbr.rel (%p349) target = $region72
        $region71: #{pointnet_iid_forward.3} parent=47 // pred_region
          %353 = dma.done [#allocation12], 128
        $region72: #{pointnet_iid_forward.3} parent=47 // pred_fallthru
          _
        %s354 = smul.u32 4, %s27
        %p355 = scmp.lt.s32.totalorder %s26, 1
        %s356 = scalar_select %p355, %s26, 1
        %p357 = scmp.lt.s32.totalorder %s354, 3
        %s358 = scalar_select %p357, %s354, 3
        %s359 = smul.addr %s356, 4
        %s360 = sadd.s32 %s358, %s359
        %s361 = smul.addr %s360, 4
        %s362 = scalar_lea.vmem %s0, %s361
        %p363 = pneg %p57
        %p364 = pneg %p54
        %p365 = pneg %p78
        %p366 = pneg %p75
        %p367 = pneg %p99
        %p368 = pneg %p96
        %p369 = pneg %p120
        %p370 = pneg %p117
        %p371 = pneg %p141
        %p372 = pneg %p138
        %p373 = pneg %p162
        %p374 = pneg %p159
        %p375 = pneg %p183
        %p376 = pneg %p180
        %p377 = pneg %p209
        %p378 = pneg %p206
        %p379 = scmp.lt.s32.totalorder %s26, 1
        %s380 = scalar_select %p379, %s26, 1
        %s381 = smul.addr %s380, 8
        %s382 = scalar_lea.vmem %s7, %s381
        %s383 = smul.u32 4, %s27
        %p384 = scmp.lt.s32.totalorder %s26, 1
        %s385 = scalar_select %p384, %s26, 1
        %p386 = scmp.lt.s32.totalorder %s383, 3
        %s387 = scalar_select %p386, %s383, 3
        %s388 = smul.addr %s385, 4
        %s389 = sadd.s32 %s387, %s388
        %s390 = smul.addr %s389, 4
        %s391 = scalar_lea.vmem %s0, %s390
        %s392 = smul.u32 4, %s27
        %p393 = scmp.lt.s32.totalorder %s26, 1
        %s394 = scalar_select %p393, %s26, 1
        %s395 = smul.addr %s394, 8
        %s396 = scalar_lea.vmem %s7, %s395
        %p398 = scmp.eq.s32.totalorder %s27, 0
        // Predicated region
        $region73: #{pointnet_iid_forward.3} parent=47 // pred_check
          %p399 = pneg %p398
        $region74: #{pointnet_iid_forward.3} parent=47 // pred_check_branch
          %401 = sbr.rel (%p399) target = $region76
        $region75: #{pointnet_iid_forward.3} parent=47 // pred_region
          %402 = vst [vmem:[#allocation2] sm:$0xff] -inf
          %403 = vst [vmem:[#allocation2 + $0x8] sm:$0xff] -inf
          %404 = vst [vmem:[#allocation2 + $0x10] sm:$0xff] -inf
          %405 = vst [vmem:[#allocation2 + $0x18] sm:$0xff] -inf
          %406 = vst [vmem:[#allocation2 + $0x20] sm:$0xff] -inf
          %407 = vst [vmem:[#allocation2 + $0x28] sm:$0xff] -inf
          %408 = vst [vmem:[#allocation2 + $0x30] sm:$0xff] -inf
          %409 = vst [vmem:[#allocation2 + $0x38] sm:$0xff] -inf
        $region76: #{pointnet_iid_forward.3} parent=47 // pred_fallthru
          _
        %v410 = vld [vmem:[%s391] sm:$0xf]
        %v411 = vld [vmem:[%s391 + $0x4] sm:$0xf]
        %v412 = vld [vmem:[%s391 + $0x8] sm:$0xf]
        %v413 = vld [vmem:[%s391 + $0xc] sm:$0xf]
        %v414 = vld [vmem:[#allocation3] sm:$0x7]
        %v415 = vld [vmem:[#allocation5] sm:$0x1]
        %v417 = vperm.slane %v415, 0
        %v423 = vunpack.c.l.b16 %v410
        %v424 = vunpack.c.l.b16 %v411
        %v425 = vunpack.c.l.b16 %v412
        %v426 = vunpack.c.l.b16 %v413
        %v427 = vpack.c.b16 %v424, %v423
        %v428 = vpack.c.b16 %v426, %v425
        %vm429 = vcmask 48128
        %v431 = vsel %vm429, %v427, 0
        %v434 = vsel %vm429, %v428, 0
        %vm436 = vcmask 1042432
        %v438 = vsel %vm436, %v414, 0
        %440 = vmatpush.bf16.msra.mxu0 0
        %441 = vmatpush.bf16.msra.mxu0 0
        %442 = vmatpush.bf16.msra.mxu0 0
        %443 = vmatpush.bf16.msra.mxu0 0
        %444 = vmatpush.bf16.msra.mxu0 0
        %445 = vmatpush.bf16.msra.mxu0 0
        %446 = vmatpush.bf16.msra.mxu0 0
        %447 = vmatpush.bf16.msra.mxu0 %v438
        %448 = vmatmul.bf16.gmra.mxu0 %v431
        %v449 = vpop.f32.mrf.mxu0
        %v450 = vadd.f32 %v417, %v449
        %v451 = vpop.f32.mrf.mxu0
        %v452 = vadd.f32 %v417, %v451
        %453 = vmatmul.bf16.gmra.mxu0 %v434
        %v454 = vpop.f32.mrf.mxu0
        %v455 = vadd.f32 %v417, %v454
        %v456 = vpop.f32.mrf.mxu0
        %v457 = vadd.f32 %v417, %v456
        %458 = vdwg.mxu0
        %v459 = vmax.f32 %v450, 0.0
        %v460 = vmax.f32 %v452, 0.0
        %v461 = vmax.f32 %v455, 0.0
        %v462 = vmax.f32 %v457, 0.0
        %v463 = vpack.c.bf16 %v460, %v459
        %v464 = vpack.c.bf16 %v462, %v461
        %v465 = vld [vmem:[#allocation7] sm:$0xf]
        %v466 = vld [vmem:[#allocation7 + $0x4] sm:$0xf]
        %v467 = vld [vmem:[#allocation7 + $0x8] sm:$0xf]
        %v468 = vld [vmem:[#allocation7 + $0xc] sm:$0xf]
        %v469 = vld [vmem:[#allocation7 + $0x10] sm:$0xf]
        %v470 = vld [vmem:[#allocation7 + $0x14] sm:$0xf]
        %v471 = vld [vmem:[#allocation7 + $0x18] sm:$0xf]
        %v472 = vld [vmem:[#allocation7 + $0x1c] sm:$0xf]
        %v473 = vld [vmem:[#allocation8] sm:$0x1]
        %v475 = vperm.slane %v473, 0
        %v485 = vunpack.c.l.b16 %v465
        %v486 = vunpack.c.l.b16 %v466
        %v487 = vunpack.c.l.b16 %v467
        %v488 = vunpack.c.l.b16 %v468
        %v489 = vunpack.c.l.b16 %v469
        %v490 = vunpack.c.l.b16 %v470
        %v491 = vunpack.c.l.b16 %v471
        %v492 = vunpack.c.l.b16 %v472
        %v493 = vpack.c.b16 %v486, %v485
        %v494 = vpack.c.b16 %v488, %v487
        %v495 = vpack.c.b16 %v490, %v489
        %v496 = vpack.c.b16 %v492, %v491
        %vm501 = vcmask 523264
        %v503 = vsel %vm501, %v463, 0
        %v506 = vsel %vm501, %v464, 0
        %508 = vmatpush.bf16.msra.mxu0 0
        %509 = vmatpush.bf16.msra.mxu0 0
        %510 = vmatpush.bf16.msra.mxu0 0
        %511 = vmatpush.bf16.msra.mxu0 0
        %512 = vmatpush.bf16.msra.mxu0 %v496
        %513 = vmatpush.bf16.msra.mxu0 %v495
        %514 = vmatpush.bf16.msra.mxu0 %v494
        %515 = vmatpush.bf16.msra.mxu0 %v493
        %516 = vmatmul.bf16.gmra.mxu0 %v503
        %v517 = vpop.f32.mrf.mxu0
        %v518 = vadd.f32 %v475, %v517
        %v519 = vpop.f32.mrf.mxu0
        %v520 = vadd.f32 %v475, %v519
        %521 = vmatmul.bf16.gmra.mxu0 %v506
        %v522 = vpop.f32.mrf.mxu0
        %v523 = vadd.f32 %v475, %v522
        %v524 = vpop.f32.mrf.mxu0
        %v525 = vadd.f32 %v475, %v524
        %526 = vdwg.mxu0
        %v527 = vmax.f32 %v518, 0.0
        %v528 = vmax.f32 %v520, 0.0
        %v529 = vmax.f32 %v523, 0.0
        %v530 = vmax.f32 %v525, 0.0
        %v531 = vpack.c.bf16 %v528, %v527
        %v532 = vpack.c.bf16 %v530, %v529
        %v533 = vld [vmem:[#allocation10] sm:$0xff]
        %v534 = vld [vmem:[#allocation10 + $0x8] sm:$0xff]
        %v535 = vld [vmem:[#allocation10 + $0x10] sm:$0xff]
        %v536 = vld [vmem:[#allocation10 + $0x18] sm:$0xff]
        %v537 = vld [vmem:[#allocation10 + $0x20] sm:$0xff]
        %v538 = vld [vmem:[#allocation10 + $0x28] sm:$0xff]
        %v539 = vld [vmem:[#allocation10 + $0x30] sm:$0xff]
        %v540 = vld [vmem:[#allocation10 + $0x38] sm:$0xff]
        %v541 = vld [vmem:[#allocation10 + $0x40] sm:$0xff]
        %v542 = vld [vmem:[#allocation10 + $0x48] sm:$0xff]
        %v543 = vld [vmem:[#allocation10 + $0x50] sm:$0xff]
        %v544 = vld [vmem:[#allocation10 + $0x58] sm:$0xff]
        %v545 = vld [vmem:[#allocation10 + $0x60] sm:$0xff]
        %v546 = vld [vmem:[#allocation10 + $0x68] sm:$0xff]
        %v547 = vld [vmem:[#allocation10 + $0x70] sm:$0xff]
        %v548 = vld [vmem:[#allocation10 + $0x78] sm:$0xff]
        %v549 = vld [vmem:[#allocation10 + $0x80] sm:$0xff]
        %v550 = vld [vmem:[#allocation10 + $0x88] sm:$0xff]
        %v551 = vld [vmem:[#allocation10 + $0x90] sm:$0xff]
        %v552 = vld [vmem:[#allocation10 + $0x98] sm:$0xff]
        %v553 = vld [vmem:[#allocation10 + $0xa0] sm:$0xff]
        %v554 = vld [vmem:[#allocation10 + $0xa8] sm:$0xff]
        %v555 = vld [vmem:[#allocation10 + $0xb0] sm:$0xff]
        %v556 = vld [vmem:[#allocation10 + $0xb8] sm:$0xff]
        %v557 = vld [vmem:[#allocation10 + $0xc0] sm:$0xff]
        %v558 = vld [vmem:[#allocation10 + $0xc8] sm:$0xff]
        %v559 = vld [vmem:[#allocation10 + $0xd0] sm:$0xff]
        %v560 = vld [vmem:[#allocation10 + $0xd8] sm:$0xff]
        %v561 = vld [vmem:[#allocation10 + $0xe0] sm:$0xff]
        %v562 = vld [vmem:[#allocation10 + $0xe8] sm:$0xff]
        %v563 = vld [vmem:[#allocation10 + $0xf0] sm:$0xff]
        %v564 = vld [vmem:[#allocation10 + $0xf8] sm:$0xff]
        %v565 = vld [vmem:[#allocation10 + $0x100] sm:$0xff]
        %v566 = vld [vmem:[#allocation10 + $0x108] sm:$0xff]
        %v567 = vld [vmem:[#allocation10 + $0x110] sm:$0xff]
        %v568 = vld [vmem:[#allocation10 + $0x118] sm:$0xff]
        %v569 = vld [vmem:[#allocation10 + $0x120] sm:$0xff]
        %v570 = vld [vmem:[#allocation10 + $0x128] sm:$0xff]
        %v571 = vld [vmem:[#allocation10 + $0x130] sm:$0xff]
        %v572 = vld [vmem:[#allocation10 + $0x138] sm:$0xff]
        %v573 = vld [vmem:[#allocation10 + $0x140] sm:$0xff]
        %v574 = vld [vmem:[#allocation10 + $0x148] sm:$0xff]
        %v575 = vld [vmem:[#allocation10 + $0x150] sm:$0xff]
        %v576 = vld [vmem:[#allocation10 + $0x158] sm:$0xff]
        %v577 = vld [vmem:[#allocation10 + $0x160] sm:$0xff]
        %v578 = vld [vmem:[#allocation10 + $0x168] sm:$0xff]
        %v579 = vld [vmem:[#allocation10 + $0x170] sm:$0xff]
        %v580 = vld [vmem:[#allocation10 + $0x178] sm:$0xff]
        %v581 = vld [vmem:[#allocation10 + $0x180] sm:$0xff]
        %v582 = vld [vmem:[#allocation10 + $0x188] sm:$0xff]
        %v583 = vld [vmem:[#allocation10 + $0x190] sm:$0xff]
        %v584 = vld [vmem:[#allocation10 + $0x198] sm:$0xff]
        %v585 = vld [vmem:[#allocation10 + $0x1a0] sm:$0xff]
        %v586 = vld [vmem:[#allocation10 + $0x1a8] sm:$0xff]
        %v587 = vld [vmem:[#allocation10 + $0x1b0] sm:$0xff]
        %v588 = vld [vmem:[#allocation10 + $0x1b8] sm:$0xff]
        %v589 = vld [vmem:[#allocation10 + $0x1c0] sm:$0xff]
        %v590 = vld [vmem:[#allocation10 + $0x1c8] sm:$0xff]
        %v591 = vld [vmem:[#allocation10 + $0x1d0] sm:$0xff]
        %v592 = vld [vmem:[#allocation10 + $0x1d8] sm:$0xff]
        %v593 = vld [vmem:[#allocation10 + $0x1e0] sm:$0xff]
        %v594 = vld [vmem:[#allocation10 + $0x1e8] sm:$0xff]
        %v595 = vld [vmem:[#allocation10 + $0x1f0] sm:$0xff]
        %v596 = vld [vmem:[#allocation10 + $0x1f8] sm:$0xff]
        %v597 = vld [vmem:[#allocation11] sm:$0xff]
        %v599 = vperm.slane %v597, 0
        %v600 = vperm.slane %v597, 1
        %v601 = vperm.slane %v597, 2
        %v602 = vperm.slane %v597, 3
        %v603 = vperm.slane %v597, 4
        %v604 = vperm.slane %v597, 5
        %v605 = vperm.slane %v597, 6
        %v606 = vperm.slane %v597, 7
        %v679 = vunpack.c.l.b16 %v533
        %v680 = vunpack.c.h.b16 %v533
        %v681 = vunpack.c.l.b16 %v534
        %v682 = vunpack.c.h.b16 %v534
        %v683 = vunpack.c.l.b16 %v535
        %v684 = vunpack.c.h.b16 %v535
        %v685 = vunpack.c.l.b16 %v536
        %v686 = vunpack.c.h.b16 %v536
        %v687 = vunpack.c.l.b16 %v537
        %v688 = vunpack.c.h.b16 %v537
        %v689 = vunpack.c.l.b16 %v538
        %v690 = vunpack.c.h.b16 %v538
        %v691 = vunpack.c.l.b16 %v539
        %v692 = vunpack.c.h.b16 %v539
        %v693 = vunpack.c.l.b16 %v540
        %v694 = vunpack.c.h.b16 %v540
        %v695 = vunpack.c.l.b16 %v541
        %v696 = vunpack.c.h.b16 %v541
        %v697 = vunpack.c.l.b16 %v542
        %v698 = vunpack.c.h.b16 %v542
        %v699 = vunpack.c.l.b16 %v543
        %v700 = vunpack.c.h.b16 %v543
        %v701 = vunpack.c.l.b16 %v544
        %v702 = vunpack.c.h.b16 %v544
        %v703 = vunpack.c.l.b16 %v545
        %v704 = vunpack.c.h.b16 %v545
        %v705 = vunpack.c.l.b16 %v546
        %v706 = vunpack.c.h.b16 %v546
        %v707 = vunpack.c.l.b16 %v547
        %v708 = vunpack.c.h.b16 %v547
        %v709 = vunpack.c.l.b16 %v548
        %v710 = vunpack.c.h.b16 %v548
        %v711 = vunpack.c.l.b16 %v549
        %v712 = vunpack.c.h.b16 %v549
        %v713 = vunpack.c.l.b16 %v550
        %v714 = vunpack.c.h.b16 %v550
        %v715 = vunpack.c.l.b16 %v551
        %v716 = vunpack.c.h.b16 %v551
        %v717 = vunpack.c.l.b16 %v552
        %v718 = vunpack.c.h.b16 %v552
        %v719 = vunpack.c.l.b16 %v553
        %v720 = vunpack.c.h.b16 %v553
        %v721 = vunpack.c.l.b16 %v554
        %v722 = vunpack.c.h.b16 %v554
        %v723 = vunpack.c.l.b16 %v555
        %v724 = vunpack.c.h.b16 %v555
        %v725 = vunpack.c.l.b16 %v556
        %v726 = vunpack.c.h.b16 %v556
        %v727 = vunpack.c.l.b16 %v557
        %v728 = vunpack.c.h.b16 %v557
        %v729 = vunpack.c.l.b16 %v558
        %v730 = vunpack.c.h.b16 %v558
        %v731 = vunpack.c.l.b16 %v559
        %v732 = vunpack.c.h.b16 %v559
        %v733 = vunpack.c.l.b16 %v560
        %v734 = vunpack.c.h.b16 %v560
        %v735 = vunpack.c.l.b16 %v561
        %v736 = vunpack.c.h.b16 %v561
        %v737 = vunpack.c.l.b16 %v562
        %v738 = vunpack.c.h.b16 %v562
        %v739 = vunpack.c.l.b16 %v563
        %v740 = vunpack.c.h.b16 %v563
        %v741 = vunpack.c.l.b16 %v564
        %v742 = vunpack.c.h.b16 %v564
        %v743 = vunpack.c.l.b16 %v565
        %v744 = vunpack.c.h.b16 %v565
        %v745 = vunpack.c.l.b16 %v566
        %v746 = vunpack.c.h.b16 %v566
        %v747 = vunpack.c.l.b16 %v567
        %v748 = vunpack.c.h.b16 %v567
        %v749 = vunpack.c.l.b16 %v568
        %v750 = vunpack.c.h.b16 %v568
        %v751 = vunpack.c.l.b16 %v569
        %v752 = vunpack.c.h.b16 %v569
        %v753 = vunpack.c.l.b16 %v570
        %v754 = vunpack.c.h.b16 %v570
        %v755 = vunpack.c.l.b16 %v571
        %v756 = vunpack.c.h.b16 %v571
        %v757 = vunpack.c.l.b16 %v572
        %v758 = vunpack.c.h.b16 %v572
        %v759 = vunpack.c.l.b16 %v573
        %v760 = vunpack.c.h.b16 %v573
        %v761 = vunpack.c.l.b16 %v574
        %v762 = vunpack.c.h.b16 %v574
        %v763 = vunpack.c.l.b16 %v575
        %v764 = vunpack.c.h.b16 %v575
        %v765 = vunpack.c.l.b16 %v576
        %v766 = vunpack.c.h.b16 %v576
        %v767 = vunpack.c.l.b16 %v577
        %v768 = vunpack.c.h.b16 %v577
        %v769 = vunpack.c.l.b16 %v578
        %v770 = vunpack.c.h.b16 %v578
        %v771 = vunpack.c.l.b16 %v579
        %v772 = vunpack.c.h.b16 %v579
        %v773 = vunpack.c.l.b16 %v580
        %v774 = vunpack.c.h.b16 %v580
        %v775 = vunpack.c.l.b16 %v581
        %v776 = vunpack.c.h.b16 %v581
        %v777 = vunpack.c.l.b16 %v582
        %v778 = vunpack.c.h.b16 %v582
        %v779 = vunpack.c.l.b16 %v583
        %v780 = vunpack.c.h.b16 %v583
        %v781 = vunpack.c.l.b16 %v584
        %v782 = vunpack.c.h.b16 %v584
        %v783 = vunpack.c.l.b16 %v585
        %v784 = vunpack.c.h.b16 %v585
        %v785 = vunpack.c.l.b16 %v586
        %v786 = vunpack.c.h.b16 %v586
        %v787 = vunpack.c.l.b16 %v587
        %v788 = vunpack.c.h.b16 %v587
        %v789 = vunpack.c.l.b16 %v588
        %v790 = vunpack.c.h.b16 %v588
        %v791 = vunpack.c.l.b16 %v589
        %v792 = vunpack.c.h.b16 %v589
        %v793 = vunpack.c.l.b16 %v590
        %v794 = vunpack.c.h.b16 %v590
        %v795 = vunpack.c.l.b16 %v591
        %v796 = vunpack.c.h.b16 %v591
        %v797 = vunpack.c.l.b16 %v592
        %v798 = vunpack.c.h.b16 %v592
        %v799 = vunpack.c.l.b16 %v593
        %v800 = vunpack.c.h.b16 %v593
        %v801 = vunpack.c.l.b16 %v594
        %v802 = vunpack.c.h.b16 %v594
        %v803 = vunpack.c.l.b16 %v595
        %v804 = vunpack.c.h.b16 %v595
        %v805 = vunpack.c.l.b16 %v596
        %v806 = vunpack.c.h.b16 %v596
        %v807 = vpack.c.b16 %v687, %v679
        %v808 = vpack.c.b16 %v688, %v680
        %v809 = vpack.c.b16 %v689, %v681
        %v810 = vpack.c.b16 %v690, %v682
        %v811 = vpack.c.b16 %v691, %v683
        %v812 = vpack.c.b16 %v692, %v684
        %v813 = vpack.c.b16 %v693, %v685
        %v814 = vpack.c.b16 %v694, %v686
        %v815 = vpack.c.b16 %v703, %v695
        %v816 = vpack.c.b16 %v704, %v696
        %v817 = vpack.c.b16 %v705, %v697
        %v818 = vpack.c.b16 %v706, %v698
        %v819 = vpack.c.b16 %v707, %v699
        %v820 = vpack.c.b16 %v708, %v700
        %v821 = vpack.c.b16 %v709, %v701
        %v822 = vpack.c.b16 %v710, %v702
        %v823 = vpack.c.b16 %v719, %v711
        %v824 = vpack.c.b16 %v720, %v712
        %v825 = vpack.c.b16 %v721, %v713
        %v826 = vpack.c.b16 %v722, %v714
        %v827 = vpack.c.b16 %v723, %v715
        %v828 = vpack.c.b16 %v724, %v716
        %v829 = vpack.c.b16 %v725, %v717
        %v830 = vpack.c.b16 %v726, %v718
        %v831 = vpack.c.b16 %v735, %v727
        %v832 = vpack.c.b16 %v736, %v728
        %v833 = vpack.c.b16 %v737, %v729
        %v834 = vpack.c.b16 %v738, %v730
        %v835 = vpack.c.b16 %v739, %v731
        %v836 = vpack.c.b16 %v740, %v732
        %v837 = vpack.c.b16 %v741, %v733
        %v838 = vpack.c.b16 %v742, %v734
        %v839 = vpack.c.b16 %v751, %v743
        %v840 = vpack.c.b16 %v752, %v744
        %v841 = vpack.c.b16 %v753, %v745
        %v842 = vpack.c.b16 %v754, %v746
        %v843 = vpack.c.b16 %v755, %v747
        %v844 = vpack.c.b16 %v756, %v748
        %v845 = vpack.c.b16 %v757, %v749
        %v846 = vpack.c.b16 %v758, %v750
        %v847 = vpack.c.b16 %v767, %v759
        %v848 = vpack.c.b16 %v768, %v760
        %v849 = vpack.c.b16 %v769, %v761
        %v850 = vpack.c.b16 %v770, %v762
        %v851 = vpack.c.b16 %v771, %v763
        %v852 = vpack.c.b16 %v772, %v764
        %v853 = vpack.c.b16 %v773, %v765
        %v854 = vpack.c.b16 %v774, %v766
        %v855 = vpack.c.b16 %v783, %v775
        %v856 = vpack.c.b16 %v784, %v776
        %v857 = vpack.c.b16 %v785, %v777
        %v858 = vpack.c.b16 %v786, %v778
        %v859 = vpack.c.b16 %v787, %v779
        %v860 = vpack.c.b16 %v788, %v780
        %v861 = vpack.c.b16 %v789, %v781
        %v862 = vpack.c.b16 %v790, %v782
        %v863 = vpack.c.b16 %v799, %v791
        %v864 = vpack.c.b16 %v800, %v792
        %v865 = vpack.c.b16 %v801, %v793
        %v866 = vpack.c.b16 %v802, %v794
        %v867 = vpack.c.b16 %v803, %v795
        %v868 = vpack.c.b16 %v804, %v796
        %v869 = vpack.c.b16 %v805, %v797
        %v870 = vpack.c.b16 %v806, %v798
        %935 = vmatpush.bf16.msra.mxu0 %v863
        %936 = vmatpush.bf16.msra.mxu0 %v855
        %937 = vmatpush.bf16.msra.mxu0 %v847
        %938 = vmatpush.bf16.msra.mxu0 %v839
        %939 = vmatpush.bf16.msra.mxu0 %v831
        %940 = vmatpush.bf16.msra.mxu0 %v823
        %941 = vmatpush.bf16.msra.mxu0 %v815
        %942 = vmatpush.bf16.msra.mxu0 %v807
        %943 = vmatmul.bf16.gmra.mxu0 %v531
        %v944 = vpop.f32.mrf.mxu0
        %v945 = vadd.f32 %v599, %v944
        %v946 = vpop.f32.mrf.mxu0
        %v947 = vadd.f32 %v599, %v946
        %948 = vmatmul.bf16.gmra.mxu0 %v532
        %v949 = vpop.f32.mrf.mxu0
        %v950 = vadd.f32 %v599, %v949
        %v951 = vpop.f32.mrf.mxu0
        %v952 = vadd.f32 %v599, %v951
        %953 = vdwg.mxu0
        %954 = vmatpush.bf16.msra.mxu0 %v864
        %955 = vmatpush.bf16.msra.mxu0 %v856
        %956 = vmatpush.bf16.msra.mxu0 %v848
        %957 = vmatpush.bf16.msra.mxu0 %v840
        %958 = vmatpush.bf16.msra.mxu0 %v832
        %959 = vmatpush.bf16.msra.mxu0 %v824
        %960 = vmatpush.bf16.msra.mxu0 %v816
        %961 = vmatpush.bf16.msra.mxu0 %v808
        %962 = vmatmul.bf16.gmra.mxu0 %v531
        %v963 = vpop.f32.mrf.mxu0
        %v964 = vadd.f32 %v600, %v963
        %v965 = vpop.f32.mrf.mxu0
        %v966 = vadd.f32 %v600, %v965
        %967 = vmatmul.bf16.gmra.mxu0 %v532
        %v968 = vpop.f32.mrf.mxu0
        %v969 = vadd.f32 %v600, %v968
        %v970 = vpop.f32.mrf.mxu0
        %v971 = vadd.f32 %v600, %v970
        %972 = vdwg.mxu0
        %973 = vmatpush.bf16.msra.mxu0 %v865
        %974 = vmatpush.bf16.msra.mxu0 %v857
        %975 = vmatpush.bf16.msra.mxu0 %v849
        %976 = vmatpush.bf16.msra.mxu0 %v841
        %977 = vmatpush.bf16.msra.mxu0 %v833
        %978 = vmatpush.bf16.msra.mxu0 %v825
        %979 = vmatpush.bf16.msra.mxu0 %v817
        %980 = vmatpush.bf16.msra.mxu0 %v809
        %981 = vmatmul.bf16.gmra.mxu0 %v531
        %v982 = vpop.f32.mrf.mxu0
        %v983 = vadd.f32 %v601, %v982
        %v984 = vpop.f32.mrf.mxu0
        %v985 = vadd.f32 %v601, %v984
        %986 = vmatmul.bf16.gmra.mxu0 %v532
        %v987 = vpop.f32.mrf.mxu0
        %v988 = vadd.f32 %v601, %v987
        %v989 = vpop.f32.mrf.mxu0
        %v990 = vadd.f32 %v601, %v989
        %991 = vdwg.mxu0
        %992 = vmatpush.bf16.msra.mxu0 %v866
        %993 = vmatpush.bf16.msra.mxu0 %v858
        %994 = vmatpush.bf16.msra.mxu0 %v850
        %995 = vmatpush.bf16.msra.mxu0 %v842
        %996 = vmatpush.bf16.msra.mxu0 %v834
        %997 = vmatpush.bf16.msra.mxu0 %v826
        %998 = vmatpush.bf16.msra.mxu0 %v818
        %999 = vmatpush.bf16.msra.mxu0 %v810
        %1000 = vmatmul.bf16.gmra.mxu0 %v531
        %v1001 = vpop.f32.mrf.mxu0
        %v1002 = vadd.f32 %v602, %v1001
        %v1003 = vpop.f32.mrf.mxu0
        %v1004 = vadd.f32 %v602, %v1003
        %1005 = vmatmul.bf16.gmra.mxu0 %v532
        %v1006 = vpop.f32.mrf.mxu0
        %v1007 = vadd.f32 %v602, %v1006
        %v1008 = vpop.f32.mrf.mxu0
        %v1009 = vadd.f32 %v602, %v1008
        %1010 = vdwg.mxu0
        %1011 = vmatpush.bf16.msra.mxu0 %v867
        %1012 = vmatpush.bf16.msra.mxu0 %v859
        %1013 = vmatpush.bf16.msra.mxu0 %v851
        %1014 = vmatpush.bf16.msra.mxu0 %v843
        %1015 = vmatpush.bf16.msra.mxu0 %v835
        %1016 = vmatpush.bf16.msra.mxu0 %v827
        %1017 = vmatpush.bf16.msra.mxu0 %v819
        %1018 = vmatpush.bf16.msra.mxu0 %v811
        %1019 = vmatmul.bf16.gmra.mxu0 %v531
        %v1020 = vpop.f32.mrf.mxu0
        %v1021 = vadd.f32 %v603, %v1020
        %v1022 = vpop.f32.mrf.mxu0
        %v1023 = vadd.f32 %v603, %v1022
        %1024 = vmatmul.bf16.gmra.mxu0 %v532
        %v1025 = vpop.f32.mrf.mxu0
        %v1026 = vadd.f32 %v603, %v1025
        %v1027 = vpop.f32.mrf.mxu0
        %v1028 = vadd.f32 %v603, %v1027
        %1029 = vdwg.mxu0
        %1030 = vmatpush.bf16.msra.mxu0 %v868
        %1031 = vmatpush.bf16.msra.mxu0 %v860
        %1032 = vmatpush.bf16.msra.mxu0 %v852
        %1033 = vmatpush.bf16.msra.mxu0 %v844
        %1034 = vmatpush.bf16.msra.mxu0 %v836
        %1035 = vmatpush.bf16.msra.mxu0 %v828
        %1036 = vmatpush.bf16.msra.mxu0 %v820
        %1037 = vmatpush.bf16.msra.mxu0 %v812
        %1038 = vmatmul.bf16.gmra.mxu0 %v531
        %v1039 = vpop.f32.mrf.mxu0
        %v1040 = vadd.f32 %v604, %v1039
        %v1041 = vpop.f32.mrf.mxu0
        %v1042 = vadd.f32 %v604, %v1041
        %1043 = vmatmul.bf16.gmra.mxu0 %v532
        %v1044 = vpop.f32.mrf.mxu0
        %v1045 = vadd.f32 %v604, %v1044
        %v1046 = vpop.f32.mrf.mxu0
        %v1047 = vadd.f32 %v604, %v1046
        %1048 = vdwg.mxu0
        %1049 = vmatpush.bf16.msra.mxu0 %v869
        %1050 = vmatpush.bf16.msra.mxu0 %v861
        %1051 = vmatpush.bf16.msra.mxu0 %v853
        %1052 = vmatpush.bf16.msra.mxu0 %v845
        %1053 = vmatpush.bf16.msra.mxu0 %v837
        %1054 = vmatpush.bf16.msra.mxu0 %v829
        %1055 = vmatpush.bf16.msra.mxu0 %v821
        %1056 = vmatpush.bf16.msra.mxu0 %v813
        %1057 = vmatmul.bf16.gmra.mxu0 %v531
        %v1058 = vpop.f32.mrf.mxu0
        %v1059 = vadd.f32 %v605, %v1058
        %v1060 = vpop.f32.mrf.mxu0
        %v1061 = vadd.f32 %v605, %v1060
        %1062 = vmatmul.bf16.gmra.mxu0 %v532
        %v1063 = vpop.f32.mrf.mxu0
        %v1064 = vadd.f32 %v605, %v1063
        %v1065 = vpop.f32.mrf.mxu0
        %v1066 = vadd.f32 %v605, %v1065
        %1067 = vdwg.mxu0
        %1068 = vmatpush.bf16.msra.mxu0 %v870
        %1069 = vmatpush.bf16.msra.mxu0 %v862
        %1070 = vmatpush.bf16.msra.mxu0 %v854
        %1071 = vmatpush.bf16.msra.mxu0 %v846
        %1072 = vmatpush.bf16.msra.mxu0 %v838
        %1073 = vmatpush.bf16.msra.mxu0 %v830
        %1074 = vmatpush.bf16.msra.mxu0 %v822
        %1075 = vmatpush.bf16.msra.mxu0 %v814
        %1076 = vmatmul.bf16.gmra.mxu0 %v531
        %v1077 = vpop.f32.mrf.mxu0
        %v1078 = vadd.f32 %v606, %v1077
        %v1079 = vpop.f32.mrf.mxu0
        %v1080 = vadd.f32 %v606, %v1079
        %1081 = vmatmul.bf16.gmra.mxu0 %v532
        %v1082 = vpop.f32.mrf.mxu0
        %v1083 = vadd.f32 %v606, %v1082
        %v1084 = vpop.f32.mrf.mxu0
        %v1085 = vadd.f32 %v606, %v1084
        %1086 = vdwg.mxu0
        %v1087 = vmax.f32 %v945, 0.0
        %v1088 = vmax.f32 %v964, 0.0
        %v1089 = vmax.f32 %v983, 0.0
        %v1090 = vmax.f32 %v1002, 0.0
        %v1091 = vmax.f32 %v1021, 0.0
        %v1092 = vmax.f32 %v1040, 0.0
        %v1093 = vmax.f32 %v1059, 0.0
        %v1094 = vmax.f32 %v1078, 0.0
        %v1095 = vmax.f32 %v947, 0.0
        %v1096 = vmax.f32 %v966, 0.0
        %v1097 = vmax.f32 %v985, 0.0
        %v1098 = vmax.f32 %v1004, 0.0
        %v1099 = vmax.f32 %v1023, 0.0
        %v1100 = vmax.f32 %v1042, 0.0
        %v1101 = vmax.f32 %v1061, 0.0
        %v1102 = vmax.f32 %v1080, 0.0
        %v1103 = vmax.f32 %v950, 0.0
        %v1104 = vmax.f32 %v969, 0.0
        %v1105 = vmax.f32 %v988, 0.0
        %v1106 = vmax.f32 %v1007, 0.0
        %v1107 = vmax.f32 %v1026, 0.0
        %v1108 = vmax.f32 %v1045, 0.0
        %v1109 = vmax.f32 %v1064, 0.0
        %v1110 = vmax.f32 %v1083, 0.0
        %v1111 = vmax.f32 %v952, 0.0
        %v1112 = vmax.f32 %v971, 0.0
        %v1113 = vmax.f32 %v990, 0.0
        %v1114 = vmax.f32 %v1009, 0.0
        %v1115 = vmax.f32 %v1028, 0.0
        %v1116 = vmax.f32 %v1047, 0.0
        %v1117 = vmax.f32 %v1066, 0.0
        %v1118 = vmax.f32 %v1085, 0.0
        %p1119 = scmp.ne.s32.totalorder %s27, 0
        // Predicated region
        $region77: #{pointnet_iid_forward.3} parent=47 // pred_check
          %p1120 = pneg %p1119
        $region78: #{pointnet_iid_forward.3} parent=47 // pred_check_branch
          %1122 = sbr.rel (%p1120) target = $region80
        $region79: #{pointnet_iid_forward.3} parent=47 // pred_region
          %v1123 = vld [vmem:[#allocation2] sm:$0xff]
          %v1124 = vld [vmem:[#allocation2 + $0x8] sm:$0xff]
          %v1125 = vld [vmem:[#allocation2 + $0x10] sm:$0xff]
          %v1126 = vld [vmem:[#allocation2 + $0x18] sm:$0xff]
          %v1127 = vld [vmem:[#allocation2 + $0x20] sm:$0xff]
          %v1128 = vld [vmem:[#allocation2 + $0x28] sm:$0xff]
          %v1129 = vld [vmem:[#allocation2 + $0x30] sm:$0xff]
          %v1130 = vld [vmem:[#allocation2 + $0x38] sm:$0xff]
          %v1131 = vmax.f32 %v1087, %v1095
          %v1132 = vmax.f32 %v1131, %v1103
          %v1133 = vmax.f32 %v1132, %v1111
          %v1134 = vmax.f32 %v1088, %v1096
          %v1135 = vmax.f32 %v1134, %v1104
          %v1136 = vmax.f32 %v1135, %v1112
          %v1137 = vmax.f32 %v1089, %v1097
          %v1138 = vmax.f32 %v1137, %v1105
          %v1139 = vmax.f32 %v1138, %v1113
          %v1140 = vmax.f32 %v1090, %v1098
          %v1141 = vmax.f32 %v1140, %v1106
          %v1142 = vmax.f32 %v1141, %v1114
          %v1143 = vmax.f32 %v1091, %v1099
          %v1144 = vmax.f32 %v1143, %v1107
          %v1145 = vmax.f32 %v1144, %v1115
          %v1146 = vmax.f32 %v1092, %v1100
          %v1147 = vmax.f32 %v1146, %v1108
          %v1148 = vmax.f32 %v1147, %v1116
          %v1149 = vmax.f32 %v1093, %v1101
          %v1150 = vmax.f32 %v1149, %v1109
          %v1151 = vmax.f32 %v1150, %v1117
          %v1152 = vmax.f32 %v1094, %v1102
          %v1153 = vmax.f32 %v1152, %v1110
          %v1154 = vmax.f32 %v1153, %v1118
          %v1155 = vmax.f32 %v1123, %v1133
          %v1156 = vmax.f32 %v1124, %v1136
          %v1157 = vmax.f32 %v1125, %v1139
          %v1158 = vmax.f32 %v1126, %v1142
          %v1159 = vmax.f32 %v1127, %v1145
          %v1160 = vmax.f32 %v1128, %v1148
          %v1161 = vmax.f32 %v1129, %v1151
          %v1162 = vmax.f32 %v1130, %v1154
          %1163 = vst [vmem:[#allocation2] sm:$0xff] %v1155
          %1164 = vst [vmem:[#allocation2 + $0x8] sm:$0xff] %v1156
          %1165 = vst [vmem:[#allocation2 + $0x10] sm:$0xff] %v1157
          %1166 = vst [vmem:[#allocation2 + $0x18] sm:$0xff] %v1158
          %1167 = vst [vmem:[#allocation2 + $0x20] sm:$0xff] %v1159
          %1168 = vst [vmem:[#allocation2 + $0x28] sm:$0xff] %v1160
          %1169 = vst [vmem:[#allocation2 + $0x30] sm:$0xff] %v1161
          %1170 = vst [vmem:[#allocation2 + $0x38] sm:$0xff] %v1162
        $region80: #{pointnet_iid_forward.3} parent=47 // pred_fallthru
          _
        // Predicated region
        $region81: #{pointnet_iid_forward.3} parent=47 // pred_check
          %p1171 = pneg %p398
        $region82: #{pointnet_iid_forward.3} parent=47 // pred_check_branch
          %1173 = sbr.rel (%p1171) target = $region84
        $region83: #{pointnet_iid_forward.3} parent=47 // pred_region
          %s1174 = smul.u32 %s27, 32
          %v1175 = vlaneseq
          %v1176 = vshrl.u32 %v1175, 7
          %v1177 = vadd.s32 %v1176, 8
          %v1178 = vadd.s32 %v1176, 16
          %v1179 = vadd.s32 %v1176, 24
          %v1180 = vstv %s1174
          %v1181 = vadd.s32 %v1180, %v1176
          %v1182 = vadd.s32 %v1180, %v1177
          %v1183 = vadd.s32 %v1180, %v1178
          %v1184 = vadd.s32 %v1180, %v1179
          %vm1185 = vcmp.lt.s32.totalorder %v1181, 20
          %vm1186 = vcmp.lt.s32.totalorder %v1182, 20
          %vm1187 = vcmp.lt.s32.totalorder %v1183, 20
          %vm1188 = vcmp.lt.s32.totalorder %v1184, 20
          %v1189 = vsel %vm1185, 1, 0
          %v1190 = vsel %vm1186, 1, 0
          %v1191 = vsel %vm1187, 1, 0
          %v1192 = vsel %vm1188, 1, 0
          %vm1193 = vcmp.eq.s32.totalorder %v1189, 1
          %vm1194 = vcmp.eq.s32.totalorder %v1190, 1
          %vm1195 = vcmp.eq.s32.totalorder %v1191, 1
          %vm1196 = vcmp.eq.s32.totalorder %v1192, 1
          %v1197 = vsel %vm1193, %v1087, -inf
          %v1198 = vsel %vm1193, %v1088, -inf
          %v1199 = vsel %vm1193, %v1089, -inf
          %v1200 = vsel %vm1193, %v1090, -inf
          %v1201 = vsel %vm1193, %v1091, -inf
          %v1202 = vsel %vm1193, %v1092, -inf
          %v1203 = vsel %vm1193, %v1093, -inf
          %v1204 = vsel %vm1193, %v1094, -inf
          %v1205 = vsel %vm1194, %v1095, -inf
          %v1206 = vsel %vm1194, %v1096, -inf
          %v1207 = vsel %vm1194, %v1097, -inf
          %v1208 = vsel %vm1194, %v1098, -inf
          %v1209 = vsel %vm1194, %v1099, -inf
          %v1210 = vsel %vm1194, %v1100, -inf
          %v1211 = vsel %vm1194, %v1101, -inf
          %v1212 = vsel %vm1194, %v1102, -inf
          %v1213 = vsel %vm1195, %v1103, -inf
          %v1214 = vsel %vm1195, %v1104, -inf
          %v1215 = vsel %vm1195, %v1105, -inf
          %v1216 = vsel %vm1195, %v1106, -inf
          %v1217 = vsel %vm1195, %v1107, -inf
          %v1218 = vsel %vm1195, %v1108, -inf
          %v1219 = vsel %vm1195, %v1109, -inf
          %v1220 = vsel %vm1195, %v1110, -inf
          %v1221 = vsel %vm1196, %v1111, -inf
          %v1222 = vsel %vm1196, %v1112, -inf
          %v1223 = vsel %vm1196, %v1113, -inf
          %v1224 = vsel %vm1196, %v1114, -inf
          %v1225 = vsel %vm1196, %v1115, -inf
          %v1226 = vsel %vm1196, %v1116, -inf
          %v1227 = vsel %vm1196, %v1117, -inf
          %v1228 = vsel %vm1196, %v1118, -inf
          %v1229 = vld [vmem:[#allocation2] sm:$0xff]
          %v1230 = vld [vmem:[#allocation2 + $0x8] sm:$0xff]
          %v1231 = vld [vmem:[#allocation2 + $0x10] sm:$0xff]
          %v1232 = vld [vmem:[#allocation2 + $0x18] sm:$0xff]
          %v1233 = vld [vmem:[#allocation2 + $0x20] sm:$0xff]
          %v1234 = vld [vmem:[#allocation2 + $0x28] sm:$0xff]
          %v1235 = vld [vmem:[#allocation2 + $0x30] sm:$0xff]
          %v1236 = vld [vmem:[#allocation2 + $0x38] sm:$0xff]
          %v1237 = vmax.f32 %v1197, %v1205
          %v1238 = vmax.f32 %v1237, %v1213
          %v1239 = vmax.f32 %v1238, %v1221
          %v1240 = vmax.f32 %v1198, %v1206
          %v1241 = vmax.f32 %v1240, %v1214
          %v1242 = vmax.f32 %v1241, %v1222
          %v1243 = vmax.f32 %v1199, %v1207
          %v1244 = vmax.f32 %v1243, %v1215
          %v1245 = vmax.f32 %v1244, %v1223
          %v1246 = vmax.f32 %v1200, %v1208
          %v1247 = vmax.f32 %v1246, %v1216
          %v1248 = vmax.f32 %v1247, %v1224
          %v1249 = vmax.f32 %v1201, %v1209
          %v1250 = vmax.f32 %v1249, %v1217
          %v1251 = vmax.f32 %v1250, %v1225
          %v1252 = vmax.f32 %v1202, %v1210
          %v1253 = vmax.f32 %v1252, %v1218
          %v1254 = vmax.f32 %v1253, %v1226
          %v1255 = vmax.f32 %v1203, %v1211
          %v1256 = vmax.f32 %v1255, %v1219
          %v1257 = vmax.f32 %v1256, %v1227
          %v1258 = vmax.f32 %v1204, %v1212
          %v1259 = vmax.f32 %v1258, %v1220
          %v1260 = vmax.f32 %v1259, %v1228
          %v1261 = vmax.f32 %v1229, %v1239
          %v1262 = vmax.f32 %v1230, %v1242
          %v1263 = vmax.f32 %v1231, %v1245
          %v1264 = vmax.f32 %v1232, %v1248
          %v1265 = vmax.f32 %v1233, %v1251
          %v1266 = vmax.f32 %v1234, %v1254
          %v1267 = vmax.f32 %v1235, %v1257
          %v1268 = vmax.f32 %v1236, %v1260
          %1269 = vst [vmem:[#allocation2] sm:$0xff] %v1261
          %1270 = vst [vmem:[#allocation2 + $0x8] sm:$0xff] %v1262
          %1271 = vst [vmem:[#allocation2 + $0x10] sm:$0xff] %v1263
          %1272 = vst [vmem:[#allocation2 + $0x18] sm:$0xff] %v1264
          %1273 = vst [vmem:[#allocation2 + $0x20] sm:$0xff] %v1265
          %1274 = vst [vmem:[#allocation2 + $0x28] sm:$0xff] %v1266
          %1275 = vst [vmem:[#allocation2 + $0x30] sm:$0xff] %v1267
          %1276 = vst [vmem:[#allocation2 + $0x38] sm:$0xff] %v1268
          %v1277 = vld [vmem:[#allocation2] sm:$0xff]
          %v1278 = vld [vmem:[#allocation2 + $0x8] sm:$0xff]
          %v1279 = vld [vmem:[#allocation2 + $0x10] sm:$0xff]
          %v1280 = vld [vmem:[#allocation2 + $0x18] sm:$0xff]
          %v1281 = vld [vmem:[#allocation2 + $0x20] sm:$0xff]
          %v1282 = vld [vmem:[#allocation2 + $0x28] sm:$0xff]
          %v1283 = vld [vmem:[#allocation2 + $0x30] sm:$0xff]
          %v1284 = vld [vmem:[#allocation2 + $0x38] sm:$0xff]
          %v1285 = vrot.slane %v1277, 4
          %v1286 = vmax.f32 %v1277, %v1285
          %v1287 = vrot.slane %v1286, 2
          %v1288 = vmax.f32 %v1286, %v1287
          %v1289 = vrot.slane %v1288, 1
          %v1290 = vmax.f32 %v1288, %v1289
          %v1291 = vrot.slane %v1278, 4
          %v1292 = vmax.f32 %v1278, %v1291
          %v1293 = vrot.slane %v1292, 2
          %v1294 = vmax.f32 %v1292, %v1293
          %v1295 = vrot.slane %v1294, 1
          %v1296 = vmax.f32 %v1294, %v1295
          %v1297 = vrot.slane %v1279, 4
          %v1298 = vmax.f32 %v1279, %v1297
          %v1299 = vrot.slane %v1298, 2
          %v1300 = vmax.f32 %v1298, %v1299
          %v1301 = vrot.slane %v1300, 1
          %v1302 = vmax.f32 %v1300, %v1301
          %v1303 = vrot.slane %v1280, 4
          %v1304 = vmax.f32 %v1280, %v1303
          %v1305 = vrot.slane %v1304, 2
          %v1306 = vmax.f32 %v1304, %v1305
          %v1307 = vrot.slane %v1306, 1
          %v1308 = vmax.f32 %v1306, %v1307
          %v1309 = vrot.slane %v1281, 4
          %v1310 = vmax.f32 %v1281, %v1309
          %v1311 = vrot.slane %v1310, 2
          %v1312 = vmax.f32 %v1310, %v1311
          %v1313 = vrot.slane %v1312, 1
          %v1314 = vmax.f32 %v1312, %v1313
          %v1315 = vrot.slane %v1282, 4
          %v1316 = vmax.f32 %v1282, %v1315
          %v1317 = vrot.slane %v1316, 2
          %v1318 = vmax.f32 %v1316, %v1317
          %v1319 = vrot.slane %v1318, 1
          %v1320 = vmax.f32 %v1318, %v1319
          %v1321 = vrot.slane %v1283, 4
          %v1322 = vmax.f32 %v1283, %v1321
          %v1323 = vrot.slane %v1322, 2
          %v1324 = vmax.f32 %v1322, %v1323
          %v1325 = vrot.slane %v1324, 1
          %v1326 = vmax.f32 %v1324, %v1325
          %v1327 = vrot.slane %v1284, 4
          %v1328 = vmax.f32 %v1284, %v1327
          %v1329 = vrot.slane %v1328, 2
          %v1330 = vmax.f32 %v1328, %v1329
          %v1331 = vrot.slane %v1330, 1
          %v1332 = vmax.f32 %v1330, %v1331
          %v1341 = vrot.slane %v1296, 7
          %v1342 = vrot.slane %v1302, 6
          %v1343 = vrot.slane %v1308, 5
          %v1344 = vrot.slane %v1314, 4
          %v1345 = vrot.slane %v1320, 3
          %v1346 = vrot.slane %v1326, 2
          %v1347 = vrot.slane %v1332, 1
          %vm1348 = vcmask 1040384
          %v1349 = vsel %vm1348, %v1290, %v1341
          %vm1350 = vcmask 1042434
          %v1351 = vsel %vm1350, %v1342, %v1343
          %vm1352 = vcmask 1041408
          %v1353 = vsel %vm1352, %v1349, %v1351
          %vm1354 = vcmask 1044484
          %v1355 = vsel %vm1354, %v1344, %v1345
          %vm1356 = vcmask 1046534
          %v1357 = vsel %vm1356, %v1346, %v1347
          %vm1358 = vcmask 1045508
          %v1359 = vsel %vm1358, %v1355, %v1357
          %vm1360 = vcmask 1043456
          %v1361 = vsel %vm1360, %v1353, %v1359
          %1363 = vst [vmem:[%s396] sm:$0xff] %v1361
        $region84: #{pointnet_iid_forward.3} parent=47 // pred_fallthru
          _
        %p1364 = scmp.lt.s32.totalorder %s26, 1
        %s1365 = scalar_select %p1364, %s26, 1
        %s1366 = smul.addr %s1365, 8
        %s1367 = scalar_lea.vmem %s7, %s1366
        // Predicated region
        $region85: #{pointnet_iid_forward.3} parent=47 // pred_check
          %p1368 = pneg %p206
        $region86: #{pointnet_iid_forward.3} parent=47 // pred_check_branch
          %1370 = sbr.rel (%p1368) target = $region88
        $region87: #{pointnet_iid_forward.3} parent=47 // pred_region
          _
        $region88: #{pointnet_iid_forward.3} parent=47 // pred_fallthru
          _
      $region48: #{pointnet_iid_forward.3} parent=5 // pred_fallthru
        _
      %p1371 = scmp.le.s32.totalorder 2, %s17
      // Predicated region
      $region89: #{pointnet_iid_forward.3} parent=5 // pred_check
        %p1372 = pneg %p1371
      $region90: #{pointnet_iid_forward.3} parent=5 // pred_check_branch
        %1374 = sbr.rel (%p1372) target = $region92
      $region91: #{pointnet_iid_forward.3} parent=5 // pred_region
        %s1375 = ssub.s32 %s17, 2
        // Predicated region
        $region93: #{pointnet_iid_forward.3} parent=91 // pred_check
          %p1376 = pneg %p212
        $region94: #{pointnet_iid_forward.3} parent=91 // pred_check_branch
          %1378 = sbr.rel (%p1376) target = $region96
        $region95: #{pointnet_iid_forward.3} parent=91 // pred_region
          %p1379 = scmp.lt.s32.totalorder %s28, 1
          %s1380 = scalar_select %p1379, %s28, 1
          %s1381 = smul.addr %s1380, 8
          %s1382 = scalar_lea.vmem %s7, %s1381
        $region96: #{pointnet_iid_forward.3} parent=91 // pred_fallthru
          _
      $region92: #{pointnet_iid_forward.3} parent=5 // pred_fallthru
        _
    $region6: #{pointnet_iid_forward.3} parent=1 // loop_footer
      %s21 = sadd.s32 1, %s17
    $region7: #{pointnet_iid_forward.3} parent=1 // loop_footer_branch
      %16 = sbr.rel target = $region3
    $region8: #{pointnet_iid_forward.3} parent=1 // loop_exit
      _
    %1383 = vsyncpa [#allocation4], 1
    %s1384 = scalar_lea.sflag [#allocation4], 1
    %1385 = vsyncpa %s1384, 1
    %1386 = vsyncpa [#allocation6], 1
    %1387 = vsyncpa [#allocation9], 1
    %1388 = vsyncpa [#allocation12], 1

// kernel: pointnet_iid_forward.5
$region0: #{pointnet_iid_forward.5}
  #allocation0 [shape = 'u32[]', space=smem, size = 0x4, offset = 0x4, fixed_abs, tag = 'smem constant byte address 0x4 - core index']
  #allocation1 [shape = 'u32[72,128]{1,0:T(1,128)}', space=vmem, size = 0x9000, scoped, tag = 'internal scratch']
  %s0 = inlined_call_operand.vmem [shape: bf16[2,32,6], index: 0, kind: input, shape index: {}]
  %s1 = inlined_call_operand.vmem [shape: bf16[2,6,64], index: 1, kind: input, shape index: {}]
  %s2 = inlined_call_operand.vmem [shape: f32[1,1,64], index: 2, kind: input, shape index: {}]
  %s3 = inlined_call_operand.vmem [shape: bf16[1,64,512], index: 3, kind: input, shape index: {}]
  %s4 = inlined_call_operand.vmem [shape: f32[2,1,512], index: 4, kind: input, shape index: {}]
  %s5 = inlined_call_operand.vmem [shape: bf16[1,512,256], index: 5, kind: input, shape index: {}]
  %s6 = inlined_call_operand.vmem [shape: f32[1,1,256], index: 6, kind: input, shape index: {}]
  %s7 = inlined_call_operand.vmem [shape: bf16[1,256,128], index: 7, kind: input, shape index: {}]
  %s8 = inlined_call_operand.vmem [shape: f32[1,1,128], index: 8, kind: input, shape index: {}]
  %s9 = inlined_call_operand.vmem [shape: bf16[1,2,128], index: 9, kind: input, shape index: {}]
  %s10 = inlined_call_operand.vmem [shape: f32[1,2,1], index: 10, kind: input, shape index: {}]
  %s11 = inlined_call_operand.hbm [shape: f32[2,2,32], index: 11, kind: output, shape index: {}]
  %s12 = sld [smem:[#allocation0]]
  $region77: #{pointnet_iid_forward.5} parent=0
    _
  %s14 = ssub.s32 1, %s12
  %s15 = scalar_select 0, %s14, %s12
  $region1: #{pointnet_iid_forward.5} parent=0
    #allocation2 [shape = 'u8[2048]{0}', space=vmem, size = 0x800, scoped, tag = 'output window, operand 0']
    #allocation3 [shape = 's32[2]{0}', space=sflag, size = 0x8, scoped, tag = 'scoped memory for pointnet_iid_forward.5']
    %16 = vsyncpa [#allocation3], 0
    %s17 = scalar_lea.sflag [#allocation3], 1
    %18 = vsyncpa %s17, 0
    loop: start=0, step=1, limit=4
    $region2: #{pointnet_iid_forward.5} parent=1 // loop_pre_header
      _
    $region3: #{pointnet_iid_forward.5} parent=1 // loop_header
      %s20 = sphi 0, %s24
      %p21 = scmp.ge.s32.totalorder %s20, 4
      %s27 = sphi 0, %s39
      %s28 = sphi 0, %s35
      %s29 = sphi 0, %s27
      %s30 = sphi 0, %s28
      %s31 = sphi 0, %s29
      %s32 = sphi 0, %s30
      %s44 = sphi 0, %s46
      %s47 = sphi 0, %s44
      %s48 = sphi 0, %s47
      %s64 = sphi 0, %s48
      %s70 = sphi 0, %s72
      %s73 = sphi 0, %s70
      %s74 = sphi 0, %s73
      %s90 = sphi 0, %s74
      %s94 = sphi 0, %s94
      %s96 = sphi 0, %s94
      %s97 = sphi 0, %s96
      %s111 = sphi 0, %s97
      %s115 = sphi 0, %s115
      %s117 = sphi 0, %s115
      %s118 = sphi 0, %s117
      %s132 = sphi 0, %s118
      %s138 = sphi 0, %s140
      %s141 = sphi 0, %s138
      %s142 = sphi 0, %s141
      %s158 = sphi 0, %s142
      %s162 = sphi 0, %s162
      %s164 = sphi 0, %s162
      %s165 = sphi 0, %s164
      %s179 = sphi 0, %s165
      %s183 = sphi 0, %s183
      %s185 = sphi 0, %s183
      %s186 = sphi 0, %s185
      %s200 = sphi 0, %s186
      %s204 = sphi 0, %s204
      %s206 = sphi 0, %s204
      %s207 = sphi 0, %s206
      %s221 = sphi 0, %s207
      %s225 = sphi 0, %s225
      %s227 = sphi 0, %s225
      %s228 = sphi 0, %s227
      %s242 = sphi 0, %s228
      %s246 = sphi 0, %s246
      %s248 = sphi 0, %s246
      %s249 = sphi 0, %s248
      %s263 = sphi 0, %s249
      %s267 = sphi 0, %s267
      %s269 = sphi 0, %s267
      %s270 = sphi 0, %s269
      %s284 = sphi 0, %s270
      %s292 = sphi 0, %s294
      %s295 = sphi 0, %s292
      %s296 = sphi 0, %s295
      %s312 = sphi 0, %s296
    $region4: #{pointnet_iid_forward.5} parent=1 // loop_header_branch
      %23 = sbr.rel (%p21) target = $region8
    $region5: #{pointnet_iid_forward.5} parent=1 // loop_body
      %s25 = ssub.s32 %s20, 1
      %s26 = ssub.s32 %s20, 2
      %s33 = sadd.s32 1, %s28
      %p34 = scmp.ge.s32.totalorder %s33, 1
      %s35 = scalar_select %p34, 0, %s33
      %s36 = sadd.s32 1, %s27
      %s37 = scalar_select %p34, %s36, %s27
      %p38 = scmp.ge.s32.totalorder %s37, 2
      %s39 = scalar_select %p38, 0, %s37
      %s40 = ssub.s32 %s27, %s39
      %s41 = ssub.s32 %s28, %s35
      %s42 = sor.u32 %s40, %s41
      %p43 = scmp.eq.s32.totalorder %s42, 0
      %s45 = sadd.s32 %s44, 1
      %s46 = scalar_select %p43, %s44, %s45
      %p49 = pneg %p43
      %p50 = scmp.eq.s32.totalorder %s20, 1
      %p51 = por %p49, %p50
      %p52 = scmp.ne.s32.totalorder %s44, %s47
      %p53 = scmp.eq.s32.totalorder %s20, 0
      %p54 = por %p52, %p53
      %p55 = scmp.ne.s32.totalorder %s44, %s47
      %p56 = scmp.eq.s32.totalorder %s25, 1
      %p57 = por %p55, %p56
      %p58 = scmp.ne.s32.totalorder %s47, %s48
      %p59 = scmp.eq.s32.totalorder %s25, 0
      %p60 = por %p58, %p59
      %p61 = scmp.ne.s32.totalorder %s47, %s48
      %p62 = scmp.eq.s32.totalorder %s26, 1
      %p63 = por %p61, %p62
      %p65 = scmp.ne.s32.totalorder %s48, %s64
      %p66 = scmp.eq.s32.totalorder %s26, 0
      %p67 = por %p65, %p66
      %s68 = ssub.s32 %s27, %s39
      %p69 = scmp.eq.s32.totalorder %s68, 0
      %s71 = sadd.s32 %s70, 1
      %s72 = scalar_select %p69, %s70, %s71
      %p75 = pneg %p69
      %p76 = scmp.eq.s32.totalorder %s20, 1
      %p77 = por %p75, %p76
      %p78 = scmp.ne.s32.totalorder %s70, %s73
      %p79 = scmp.eq.s32.totalorder %s20, 0
      %p80 = por %p78, %p79
      %p81 = scmp.ne.s32.totalorder %s70, %s73
      %p82 = scmp.eq.s32.totalorder %s25, 1
      %p83 = por %p81, %p82
      %p84 = scmp.ne.s32.totalorder %s73, %s74
      %p85 = scmp.eq.s32.totalorder %s25, 0
      %p86 = por %p84, %p85
      %p87 = scmp.ne.s32.totalorder %s73, %s74
      %p88 = scmp.eq.s32.totalorder %s26, 1
      %p89 = por %p87, %p88
      %p91 = scmp.ne.s32.totalorder %s74, %s90
      %p92 = scmp.eq.s32.totalorder %s26, 0
      %p93 = por %p91, %p92
      %s95 = sadd.s32 %s94, 1
      %p98 = scmp.eq.s32.totalorder %s20, 1
      %p99 = scmp.ne.s32.totalorder %s94, %s96
      %p100 = scmp.eq.s32.totalorder %s20, 0
      %p101 = por %p99, %p100
      %p102 = scmp.ne.s32.totalorder %s94, %s96
      %p103 = scmp.eq.s32.totalorder %s25, 1
      %p104 = por %p102, %p103
      %p105 = scmp.ne.s32.totalorder %s96, %s97
      %p106 = scmp.eq.s32.totalorder %s25, 0
      %p107 = por %p105, %p106
      %p108 = scmp.ne.s32.totalorder %s96, %s97
      %p109 = scmp.eq.s32.totalorder %s26, 1
      %p110 = por %p108, %p109
      %p112 = scmp.ne.s32.totalorder %s97, %s111
      %p113 = scmp.eq.s32.totalorder %s26, 0
      %p114 = por %p112, %p113
      %s116 = sadd.s32 %s115, 1
      %p119 = scmp.eq.s32.totalorder %s20, 1
      %p120 = scmp.ne.s32.totalorder %s115, %s117
      %p121 = scmp.eq.s32.totalorder %s20, 0
      %p122 = por %p120, %p121
      %p123 = scmp.ne.s32.totalorder %s115, %s117
      %p124 = scmp.eq.s32.totalorder %s25, 1
      %p125 = por %p123, %p124
      %p126 = scmp.ne.s32.totalorder %s117, %s118
      %p127 = scmp.eq.s32.totalorder %s25, 0
      %p128 = por %p126, %p127
      %p129 = scmp.ne.s32.totalorder %s117, %s118
      %p130 = scmp.eq.s32.totalorder %s26, 1
      %p131 = por %p129, %p130
      %p133 = scmp.ne.s32.totalorder %s118, %s132
      %p134 = scmp.eq.s32.totalorder %s26, 0
      %p135 = por %p133, %p134
      %s136 = ssub.s32 %s27, %s39
      %p137 = scmp.eq.s32.totalorder %s136, 0
      %s139 = sadd.s32 %s138, 1
      %s140 = scalar_select %p137, %s138, %s139
      %p143 = pneg %p137
      %p144 = scmp.eq.s32.totalorder %s20, 1
      %p145 = por %p143, %p144
      %p146 = scmp.ne.s32.totalorder %s138, %s141
      %p147 = scmp.eq.s32.totalorder %s20, 0
      %p148 = por %p146, %p147
      %p149 = scmp.ne.s32.totalorder %s138, %s141
      %p150 = scmp.eq.s32.totalorder %s25, 1
      %p151 = por %p149, %p150
      %p152 = scmp.ne.s32.totalorder %s141, %s142
      %p153 = scmp.eq.s32.totalorder %s25, 0
      %p154 = por %p152, %p153
      %p155 = scmp.ne.s32.totalorder %s141, %s142
      %p156 = scmp.eq.s32.totalorder %s26, 1
      %p157 = por %p155, %p156
      %p159 = scmp.ne.s32.totalorder %s142, %s158
      %p160 = scmp.eq.s32.totalorder %s26, 0
      %p161 = por %p159, %p160
      %s163 = sadd.s32 %s162, 1
      %p166 = scmp.eq.s32.totalorder %s20, 1
      %p167 = scmp.ne.s32.totalorder %s162, %s164
      %p168 = scmp.eq.s32.totalorder %s20, 0
      %p169 = por %p167, %p168
      %p170 = scmp.ne.s32.totalorder %s162, %s164
      %p171 = scmp.eq.s32.totalorder %s25, 1
      %p172 = por %p170, %p171
      %p173 = scmp.ne.s32.totalorder %s164, %s165
      %p174 = scmp.eq.s32.totalorder %s25, 0
      %p175 = por %p173, %p174
      %p176 = scmp.ne.s32.totalorder %s164, %s165
      %p177 = scmp.eq.s32.totalorder %s26, 1
      %p178 = por %p176, %p177
      %p180 = scmp.ne.s32.totalorder %s165, %s179
      %p181 = scmp.eq.s32.totalorder %s26, 0
      %p182 = por %p180, %p181
      %s184 = sadd.s32 %s183, 1
      %p187 = scmp.eq.s32.totalorder %s20, 1
      %p188 = scmp.ne.s32.totalorder %s183, %s185
      %p189 = scmp.eq.s32.totalorder %s20, 0
      %p190 = por %p188, %p189
      %p191 = scmp.ne.s32.totalorder %s183, %s185
      %p192 = scmp.eq.s32.totalorder %s25, 1
      %p193 = por %p191, %p192
      %p194 = scmp.ne.s32.totalorder %s185, %s186
      %p195 = scmp.eq.s32.totalorder %s25, 0
      %p196 = por %p194, %p195
      %p197 = scmp.ne.s32.totalorder %s185, %s186
      %p198 = scmp.eq.s32.totalorder %s26, 1
      %p199 = por %p197, %p198
      %p201 = scmp.ne.s32.totalorder %s186, %s200
      %p202 = scmp.eq.s32.totalorder %s26, 0
      %p203 = por %p201, %p202
      %s205 = sadd.s32 %s204, 1
      %p208 = scmp.eq.s32.totalorder %s20, 1
      %p209 = scmp.ne.s32.totalorder %s204, %s206
      %p210 = scmp.eq.s32.totalorder %s20, 0
      %p211 = por %p209, %p210
      %p212 = scmp.ne.s32.totalorder %s204, %s206
      %p213 = scmp.eq.s32.totalorder %s25, 1
      %p214 = por %p212, %p213
      %p215 = scmp.ne.s32.totalorder %s206, %s207
      %p216 = scmp.eq.s32.totalorder %s25, 0
      %p217 = por %p215, %p216
      %p218 = scmp.ne.s32.totalorder %s206, %s207
      %p219 = scmp.eq.s32.totalorder %s26, 1
      %p220 = por %p218, %p219
      %p222 = scmp.ne.s32.totalorder %s207, %s221
      %p223 = scmp.eq.s32.totalorder %s26, 0
      %p224 = por %p222, %p223
      %s226 = sadd.s32 %s225, 1
      %p229 = scmp.eq.s32.totalorder %s20, 1
      %p230 = scmp.ne.s32.totalorder %s225, %s227
      %p231 = scmp.eq.s32.totalorder %s20, 0
      %p232 = por %p230, %p231
      %p233 = scmp.ne.s32.totalorder %s225, %s227
      %p234 = scmp.eq.s32.totalorder %s25, 1
      %p235 = por %p233, %p234
      %p236 = scmp.ne.s32.totalorder %s227, %s228
      %p237 = scmp.eq.s32.totalorder %s25, 0
      %p238 = por %p236, %p237
      %p239 = scmp.ne.s32.totalorder %s227, %s228
      %p240 = scmp.eq.s32.totalorder %s26, 1
      %p241 = por %p239, %p240
      %p243 = scmp.ne.s32.totalorder %s228, %s242
      %p244 = scmp.eq.s32.totalorder %s26, 0
      %p245 = por %p243, %p244
      %s247 = sadd.s32 %s246, 1
      %p250 = scmp.eq.s32.totalorder %s20, 1
      %p251 = scmp.ne.s32.totalorder %s246, %s248
      %p252 = scmp.eq.s32.totalorder %s20, 0
      %p253 = por %p251, %p252
      %p254 = scmp.ne.s32.totalorder %s246, %s248
      %p255 = scmp.eq.s32.totalorder %s25, 1
      %p256 = por %p254, %p255
      %p257 = scmp.ne.s32.totalorder %s248, %s249
      %p258 = scmp.eq.s32.totalorder %s25, 0
      %p259 = por %p257, %p258
      %p260 = scmp.ne.s32.totalorder %s248, %s249
      %p261 = scmp.eq.s32.totalorder %s26, 1
      %p262 = por %p260, %p261
      %p264 = scmp.ne.s32.totalorder %s249, %s263
      %p265 = scmp.eq.s32.totalorder %s26, 0
      %p266 = por %p264, %p265
      %s268 = sadd.s32 %s267, 1
      %p271 = scmp.eq.s32.totalorder %s20, 1
      %p272 = scmp.ne.s32.totalorder %s267, %s269
      %p273 = scmp.eq.s32.totalorder %s20, 0
      %p274 = por %p272, %p273
      %p275 = scmp.ne.s32.totalorder %s267, %s269
      %p276 = scmp.eq.s32.totalorder %s25, 1
      %p277 = por %p275, %p276
      %p278 = scmp.ne.s32.totalorder %s269, %s270
      %p279 = scmp.eq.s32.totalorder %s25, 0
      %p280 = por %p278, %p279
      %p281 = scmp.ne.s32.totalorder %s269, %s270
      %p282 = scmp.eq.s32.totalorder %s26, 1
      %p283 = por %p281, %p282
      %p285 = scmp.ne.s32.totalorder %s270, %s284
      %p286 = scmp.eq.s32.totalorder %s26, 0
      %p287 = por %p285, %p286
      %s288 = ssub.s32 %s27, %s39
      %s289 = ssub.s32 %s28, %s35
      %s290 = sor.u32 %s288, %s289
      %p291 = scmp.eq.s32.totalorder %s290, 0
      %s293 = sadd.s32 %s292, 1
      %s294 = scalar_select %p291, %s292, %s293
      %p297 = pneg %p291
      %p298 = scmp.eq.s32.totalorder %s20, 1
      %p299 = por %p297, %p298
      %p300 = scmp.ne.s32.totalorder %s292, %s295
      %p301 = scmp.eq.s32.totalorder %s20, 0
      %p302 = por %p300, %p301
      %p303 = scmp.ne.s32.totalorder %s292, %s295
      %p304 = scmp.eq.s32.totalorder %s25, 1
      %p305 = por %p303, %p304
      %p306 = scmp.ne.s32.totalorder %s295, %s296
      %p307 = scmp.eq.s32.totalorder %s25, 0
      %p308 = por %p306, %p307
      %p309 = scmp.ne.s32.totalorder %s295, %s296
      %p310 = scmp.eq.s32.totalorder %s26, 1
      %p311 = por %p309, %p310
      %p313 = scmp.ne.s32.totalorder %s296, %s312
      %p314 = scmp.eq.s32.totalorder %s26, 0
      %p315 = por %p313, %p314
      %p316 = scmp.le.s32.totalorder 1, %s20
      %p317 = scmp.lt.s32.totalorder %s20, 3
      %p318 = pnand %p316, %p317
      %p319 = pneg %p318
      // Predicated region
      $region9: #{pointnet_iid_forward.5} parent=5 // pred_check
        _
      $region10: #{pointnet_iid_forward.5} parent=5 // pred_check_branch
        %321 = sbr.rel (%p318) target = $region12
      $region11: #{pointnet_iid_forward.5} parent=5 // pred_region
        %s322 = ssub.s32 %s20, 1
        // Predicated region
        $region13: #{pointnet_iid_forward.5} parent=11 // pred_check
          %p323 = pneg %p107
        $region14: #{pointnet_iid_forward.5} parent=11 // pred_check_branch
          %325 = sbr.rel (%p323) target = $region16
        $region15: #{pointnet_iid_forward.5} parent=11 // pred_region
          _
        $region16: #{pointnet_iid_forward.5} parent=11 // pred_fallthru
          _
        // Predicated region
        $region17: #{pointnet_iid_forward.5} parent=11 // pred_check
          %p326 = pneg %p128
        $region18: #{pointnet_iid_forward.5} parent=11 // pred_check_branch
          %328 = sbr.rel (%p326) target = $region20
        $region19: #{pointnet_iid_forward.5} parent=11 // pred_region
          _
        $region20: #{pointnet_iid_forward.5} parent=11 // pred_fallthru
          _
        // Predicated region
        $region21: #{pointnet_iid_forward.5} parent=11 // pred_check
          %p329 = pneg %p175
        $region22: #{pointnet_iid_forward.5} parent=11 // pred_check_branch
          %331 = sbr.rel (%p329) target = $region24
        $region23: #{pointnet_iid_forward.5} parent=11 // pred_region
          _
        $region24: #{pointnet_iid_forward.5} parent=11 // pred_fallthru
          _
        // Predicated region
        $region25: #{pointnet_iid_forward.5} parent=11 // pred_check
          %p332 = pneg %p196
        $region26: #{pointnet_iid_forward.5} parent=11 // pred_check_branch
          %334 = sbr.rel (%p332) target = $region28
        $region27: #{pointnet_iid_forward.5} parent=11 // pred_region
          _
        $region28: #{pointnet_iid_forward.5} parent=11 // pred_fallthru
          _
        // Predicated region
        $region29: #{pointnet_iid_forward.5} parent=11 // pred_check
          %p335 = pneg %p217
        $region30: #{pointnet_iid_forward.5} parent=11 // pred_check_branch
          %337 = sbr.rel (%p335) target = $region32
        $region31: #{pointnet_iid_forward.5} parent=11 // pred_region
          _
        $region32: #{pointnet_iid_forward.5} parent=11 // pred_fallthru
          _
        // Predicated region
        $region33: #{pointnet_iid_forward.5} parent=11 // pred_check
          %p338 = pneg %p238
        $region34: #{pointnet_iid_forward.5} parent=11 // pred_check_branch
          %340 = sbr.rel (%p338) target = $region36
        $region35: #{pointnet_iid_forward.5} parent=11 // pred_region
          _
        $region36: #{pointnet_iid_forward.5} parent=11 // pred_fallthru
          _
        // Predicated region
        $region37: #{pointnet_iid_forward.5} parent=11 // pred_check
          %p341 = pneg %p259
        $region38: #{pointnet_iid_forward.5} parent=11 // pred_check_branch
          %343 = sbr.rel (%p341) target = $region40
        $region39: #{pointnet_iid_forward.5} parent=11 // pred_region
          _
        $region40: #{pointnet_iid_forward.5} parent=11 // pred_fallthru
          _
        // Predicated region
        $region41: #{pointnet_iid_forward.5} parent=11 // pred_check
          %p344 = pneg %p280
        $region42: #{pointnet_iid_forward.5} parent=11 // pred_check_branch
          %346 = sbr.rel (%p344) target = $region44
        $region43: #{pointnet_iid_forward.5} parent=11 // pred_region
          _
        $region44: #{pointnet_iid_forward.5} parent=11 // pred_fallthru
          _
      $region12: #{pointnet_iid_forward.5} parent=5 // pred_fallthru
        _
      %p347 = scmp.lt.s32.totalorder %s20, 2
      // Predicated region
      $region45: #{pointnet_iid_forward.5} parent=5 // pred_check
        %p348 = pneg %p347
      $region46: #{pointnet_iid_forward.5} parent=5 // pred_check_branch
        %350 = sbr.rel (%p348) target = $region48
      $region47: #{pointnet_iid_forward.5} parent=5 // pred_region
        // Predicated region
        $region49: #{pointnet_iid_forward.5} parent=47 // pred_check
          %p351 = pneg %p54
        $region50: #{pointnet_iid_forward.5} parent=47 // pred_check_branch
          %353 = sbr.rel (%p351) target = $region52
        $region51: #{pointnet_iid_forward.5} parent=47 // pred_region
          %s354 = smul.u32 4, %s28
          %p355 = scmp.lt.s32.totalorder %s27, 1
          %s356 = scalar_select %p355, %s27, 1
          %p357 = scmp.lt.s32.totalorder %s354, 3
          %s358 = scalar_select %p357, %s354, 3
          %s359 = smul.addr %s356, 4
          %s360 = sadd.s32 %s358, %s359
          %s361 = smul.addr %s360, 4
          %s362 = scalar_lea.vmem %s0, %s361
          %s363 = smul.u32 4, %s28
        $region52: #{pointnet_iid_forward.5} parent=47 // pred_fallthru
          _
        // Predicated region
        $region53: #{pointnet_iid_forward.5} parent=47 // pred_check
          %p364 = pneg %p80
        $region54: #{pointnet_iid_forward.5} parent=47 // pred_check_branch
          %366 = sbr.rel (%p364) target = $region56
        $region55: #{pointnet_iid_forward.5} parent=47 // pred_region
          %p367 = scmp.lt.s32.totalorder %s27, 1
          %s368 = scalar_select %p367, %s27, 1
          %s369 = smul.addr %s368, 4
          %s370 = scalar_lea.vmem %s1, %s369
        $region56: #{pointnet_iid_forward.5} parent=47 // pred_fallthru
          _
        // Predicated region
        $region57: #{pointnet_iid_forward.5} parent=47 // pred_check
          %p371 = pneg %p148
        $region58: #{pointnet_iid_forward.5} parent=47 // pred_check_branch
          %373 = sbr.rel (%p371) target = $region60
        $region59: #{pointnet_iid_forward.5} parent=47 // pred_region
          %p374 = scmp.lt.s32.totalorder %s27, 1
          %s375 = scalar_select %p374, %s27, 1
          %s376 = smul.addr %s375, 4
          %s377 = scalar_lea.vmem %s4, %s376
        $region60: #{pointnet_iid_forward.5} parent=47 // pred_fallthru
          _
      $region48: #{pointnet_iid_forward.5} parent=5 // pred_fallthru
        _
      %p378 = scmp.le.s32.totalorder 1, %s20
      %p379 = scmp.lt.s32.totalorder %s20, 3
      %p380 = pnand %p378, %p379
      %p381 = pneg %p380
      // Predicated region
      $region61: #{pointnet_iid_forward.5} parent=5 // pred_check
        _
      $region62: #{pointnet_iid_forward.5} parent=5 // pred_check_branch
        %383 = sbr.rel (%p380) target = $region64
      $region63: #{pointnet_iid_forward.5} parent=5 // pred_region
        %s384 = ssub.s32 %s20, 1
        %s385 = smul.u32 4, %s30
        %p386 = scmp.lt.s32.totalorder %s29, 1
        %s387 = scalar_select %p386, %s29, 1
        %p388 = scmp.lt.s32.totalorder %s385, 3
        %s389 = scalar_select %p388, %s385, 3
        %s390 = smul.addr %s387, 4
        %s391 = sadd.s32 %s389, %s390
        %s392 = smul.addr %s391, 4
        %s393 = scalar_lea.vmem %s0, %s392
        %p394 = pneg %p60
        %p395 = pneg %p57
        %p396 = scmp.lt.s32.totalorder %s29, 1
        %s397 = scalar_select %p396, %s29, 1
        %s398 = smul.addr %s397, 4
        %s399 = scalar_lea.vmem %s1, %s398
        %p400 = pneg %p86
        %p401 = pneg %p83
        %p402 = pneg %p107
        %p403 = pneg %p104
        %p404 = pneg %p128
        %p405 = pneg %p125
        %p406 = scmp.lt.s32.totalorder %s29, 1
        %s407 = scalar_select %p406, %s29, 1
        %s408 = smul.addr %s407, 4
        %s409 = scalar_lea.vmem %s4, %s408
        %p410 = pneg %p154
        %p411 = pneg %p151
        %p412 = pneg %p175
        %p413 = pneg %p172
        %p414 = pneg %p196
        %p415 = pneg %p193
        %p416 = pneg %p217
        %p417 = pneg %p214
        %p418 = pneg %p238
        %p419 = pneg %p235
        %p420 = pneg %p259
        %p421 = pneg %p256
        %p422 = pneg %p280
        %p423 = pneg %p277
        %p424 = pneg %p308
        %p425 = pneg %p305
        %s426 = sand.u32 %s295, 1
        %s427 = scalar_lea.sflag [#allocation3], %s426
        %s428 = sand.u32 %s295, 1
        %s429 = smul.addr %s428, 2
        %s430 = scalar_lea.vmem [#allocation2], %s429
        %s431 = smul.u32 4, %s30
        %p432 = scmp.lt.s32.totalorder %s29, 1
        %s433 = scalar_select %p432, %s29, 1
        %p434 = scmp.lt.s32.totalorder %s431, 3
        %s435 = scalar_select %p434, %s431, 3
        %s436 = smul.addr %s433, 4
        %s437 = sadd.s32 %s435, %s436
        %s438 = smul.addr %s437, 4
        %s439 = scalar_lea.vmem %s0, %s438
        %s440 = smul.u32 4, %s30
        %p441 = scmp.lt.s32.totalorder %s29, 1
        %s442 = scalar_select %p441, %s29, 1
        %s443 = smul.addr %s442, 4
        %s444 = scalar_lea.vmem %s1, %s443
        %p445 = scmp.lt.s32.totalorder %s29, 1
        %s446 = scalar_select %p445, %s29, 1
        %s447 = smul.addr %s446, 4
        %s448 = scalar_lea.vmem %s4, %s447
        %v450 = vld [vmem:[%s439] sm:$0xf]
        %v451 = vld [vmem:[%s439 + $0x4] sm:$0xf]
        %v452 = vld [vmem:[%s439 + $0x8] sm:$0xf]
        %v453 = vld [vmem:[%s439 + $0xc] sm:$0xf]
        %v454 = vld [vmem:[%s444] sm:$0x7]
        %v455 = vld [vmem:[%s2] sm:$0x1]
        %v457 = vperm.slane %v455, 0
        %v463 = vunpack.c.l.b16 %v450
        %v464 = vunpack.c.l.b16 %v451
        %v465 = vunpack.c.l.b16 %v452
        %v466 = vunpack.c.l.b16 %v453
        %v467 = vpack.c.b16 %v464, %v463
        %v468 = vpack.c.b16 %v466, %v465
        %vm469 = vcmask 48128
        %v471 = vsel %vm469, %v467, 0
        %v474 = vsel %vm469, %v468, 0
        %vm476 = vcmask 1042432
        %v478 = vsel %vm476, %v454, 0
        %480 = vmatpush.bf16.msra.mxu0 0
        %481 = vmatpush.bf16.msra.mxu0 0
        %482 = vmatpush.bf16.msra.mxu0 0
        %483 = vmatpush.bf16.msra.mxu0 0
        %484 = vmatpush.bf16.msra.mxu0 0
        %485 = vmatpush.bf16.msra.mxu0 0
        %486 = vmatpush.bf16.msra.mxu0 0
        %487 = vmatpush.bf16.msra.mxu0 %v478
        %488 = vmatmul.bf16.gmra.mxu0 %v471
        %v489 = vpop.f32.mrf.mxu0
        %v490 = vadd.f32 %v457, %v489
        %v491 = vpop.f32.mrf.mxu0
        %v492 = vadd.f32 %v457, %v491
        %493 = vmatmul.bf16.gmra.mxu0 %v474
        %v494 = vpop.f32.mrf.mxu0
        %v495 = vadd.f32 %v457, %v494
        %v496 = vpop.f32.mrf.mxu0
        %v497 = vadd.f32 %v457, %v496
        %498 = vdwg.mxu0
        %v499 = vmax.f32 %v490, 0.0
        %v500 = vmax.f32 %v492, 0.0
        %v501 = vmax.f32 %v495, 0.0
        %v502 = vmax.f32 %v497, 0.0
        %v503 = vpack.c.bf16 %v500, %v499
        %v504 = vpack.c.bf16 %v502, %v501
        %v505 = vld [vmem:[%s3] sm:$0xff]
        %v506 = vld [vmem:[%s3 + $0x8] sm:$0xff]
        %v507 = vld [vmem:[%s3 + $0x10] sm:$0xff]
        %v508 = vld [vmem:[%s3 + $0x18] sm:$0xff]
        %v509 = vld [vmem:[%s3 + $0x20] sm:$0xff]
        %v510 = vld [vmem:[%s3 + $0x28] sm:$0xff]
        %v511 = vld [vmem:[%s3 + $0x30] sm:$0xff]
        %v512 = vld [vmem:[%s3 + $0x38] sm:$0xff]
        %v513 = vld [vmem:[%s3 + $0x40] sm:$0xff]
        %v514 = vld [vmem:[%s3 + $0x48] sm:$0xff]
        %v515 = vld [vmem:[%s3 + $0x50] sm:$0xff]
        %v516 = vld [vmem:[%s3 + $0x58] sm:$0xff]
        %v517 = vld [vmem:[%s3 + $0x60] sm:$0xff]
        %v518 = vld [vmem:[%s3 + $0x68] sm:$0xff]
        %v519 = vld [vmem:[%s3 + $0x70] sm:$0xff]
        %v520 = vld [vmem:[%s3 + $0x78] sm:$0xff]
        %v521 = vld [vmem:[%s448] sm:$0xf]
        %v523 = vperm.slane %v521, 0
        %v524 = vperm.slane %v521, 1
        %v525 = vperm.slane %v521, 2
        %v526 = vperm.slane %v521, 3
        %v547 = vunpack.c.l.b16 %v505
        %v548 = vunpack.c.h.b16 %v505
        %v549 = vunpack.c.l.b16 %v506
        %v550 = vunpack.c.h.b16 %v506
        %v551 = vunpack.c.l.b16 %v507
        %v552 = vunpack.c.h.b16 %v507
        %v553 = vunpack.c.l.b16 %v508
        %v554 = vunpack.c.h.b16 %v508
        %v555 = vunpack.c.l.b16 %v509
        %v556 = vunpack.c.h.b16 %v509
        %v557 = vunpack.c.l.b16 %v510
        %v558 = vunpack.c.h.b16 %v510
        %v559 = vunpack.c.l.b16 %v511
        %v560 = vunpack.c.h.b16 %v511
        %v561 = vunpack.c.l.b16 %v512
        %v562 = vunpack.c.h.b16 %v512
        %v563 = vunpack.c.l.b16 %v513
        %v564 = vunpack.c.h.b16 %v513
        %v565 = vunpack.c.l.b16 %v514
        %v566 = vunpack.c.h.b16 %v514
        %v567 = vunpack.c.l.b16 %v515
        %v568 = vunpack.c.h.b16 %v515
        %v569 = vunpack.c.l.b16 %v516
        %v570 = vunpack.c.h.b16 %v516
        %v571 = vunpack.c.l.b16 %v517
        %v572 = vunpack.c.h.b16 %v517
        %v573 = vunpack.c.l.b16 %v518
        %v574 = vunpack.c.h.b16 %v518
        %v575 = vunpack.c.l.b16 %v519
        %v576 = vunpack.c.h.b16 %v519
        %v577 = vunpack.c.l.b16 %v520
        %v578 = vunpack.c.h.b16 %v520
        %v579 = vpack.c.b16 %v551, %v547
        %v580 = vpack.c.b16 %v552, %v548
        %v581 = vpack.c.b16 %v553, %v549
        %v582 = vpack.c.b16 %v554, %v550
        %v583 = vpack.c.b16 %v559, %v555
        %v584 = vpack.c.b16 %v560, %v556
        %v585 = vpack.c.b16 %v561, %v557
        %v586 = vpack.c.b16 %v562, %v558
        %v587 = vpack.c.b16 %v567, %v563
        %v588 = vpack.c.b16 %v568, %v564
        %v589 = vpack.c.b16 %v569, %v565
        %v590 = vpack.c.b16 %v570, %v566
        %v591 = vpack.c.b16 %v575, %v571
        %v592 = vpack.c.b16 %v576, %v572
        %v593 = vpack.c.b16 %v577, %v573
        %v594 = vpack.c.b16 %v578, %v574
        %vm611 = vcmask 523264
        %v613 = vsel %vm611, %v503, 0
        %v616 = vsel %vm611, %v504, 0
        %618 = vmatpush.bf16.msra.mxu0 0
        %619 = vmatpush.bf16.msra.mxu0 0
        %620 = vmatpush.bf16.msra.mxu0 0
        %621 = vmatpush.bf16.msra.mxu0 0
        %622 = vmatpush.bf16.msra.mxu0 %v591
        %623 = vmatpush.bf16.msra.mxu0 %v587
        %624 = vmatpush.bf16.msra.mxu0 %v583
        %625 = vmatpush.bf16.msra.mxu0 %v579
        %626 = vmatmul.bf16.gmra.mxu0 %v613
        %v627 = vpop.f32.mrf.mxu0
        %v628 = vadd.f32 %v523, %v627
        %v629 = vpop.f32.mrf.mxu0
        %v630 = vadd.f32 %v523, %v629
        %631 = vmatmul.bf16.gmra.mxu0 %v616
        %v632 = vpop.f32.mrf.mxu0
        %v633 = vadd.f32 %v523, %v632
        %v634 = vpop.f32.mrf.mxu0
        %v635 = vadd.f32 %v523, %v634
        %636 = vdwg.mxu0
        %637 = vmatpush.bf16.msra.mxu0 0
        %638 = vmatpush.bf16.msra.mxu0 0
        %639 = vmatpush.bf16.msra.mxu0 0
        %640 = vmatpush.bf16.msra.mxu0 0
        %641 = vmatpush.bf16.msra.mxu0 %v592
        %642 = vmatpush.bf16.msra.mxu0 %v588
        %643 = vmatpush.bf16.msra.mxu0 %v584
        %644 = vmatpush.bf16.msra.mxu0 %v580
        %645 = vmatmul.bf16.gmra.mxu0 %v613
        %v646 = vpop.f32.mrf.mxu0
        %v647 = vadd.f32 %v524, %v646
        %v648 = vpop.f32.mrf.mxu0
        %v649 = vadd.f32 %v524, %v648
        %650 = vmatmul.bf16.gmra.mxu0 %v616
        %v651 = vpop.f32.mrf.mxu0
        %v652 = vadd.f32 %v524, %v651
        %v653 = vpop.f32.mrf.mxu0
        %v654 = vadd.f32 %v524, %v653
        %655 = vdwg.mxu0
        %656 = vmatpush.bf16.msra.mxu0 0
        %657 = vmatpush.bf16.msra.mxu0 0
        %658 = vmatpush.bf16.msra.mxu0 0
        %659 = vmatpush.bf16.msra.mxu0 0
        %660 = vmatpush.bf16.msra.mxu0 %v593
        %661 = vmatpush.bf16.msra.mxu0 %v589
        %662 = vmatpush.bf16.msra.mxu0 %v585
        %663 = vmatpush.bf16.msra.mxu0 %v581
        %664 = vmatmul.bf16.gmra.mxu0 %v613
        %v665 = vpop.f32.mrf.mxu0
        %v666 = vadd.f32 %v525, %v665
        %v667 = vpop.f32.mrf.mxu0
        %v668 = vadd.f32 %v525, %v667
        %669 = vmatmul.bf16.gmra.mxu0 %v616
        %v670 = vpop.f32.mrf.mxu0
        %v671 = vadd.f32 %v525, %v670
        %v672 = vpop.f32.mrf.mxu0
        %v673 = vadd.f32 %v525, %v672
        %674 = vdwg.mxu0
        %675 = vmatpush.bf16.msra.mxu0 0
        %676 = vmatpush.bf16.msra.mxu0 0
        %677 = vmatpush.bf16.msra.mxu0 0
        %678 = vmatpush.bf16.msra.mxu0 0
        %679 = vmatpush.bf16.msra.mxu0 %v594
        %680 = vmatpush.bf16.msra.mxu0 %v590
        %681 = vmatpush.bf16.msra.mxu0 %v586
        %682 = vmatpush.bf16.msra.mxu0 %v582
        %683 = vmatmul.bf16.gmra.mxu0 %v613
        %v684 = vpop.f32.mrf.mxu0
        %v685 = vadd.f32 %v526, %v684
        %v686 = vpop.f32.mrf.mxu0
        %v687 = vadd.f32 %v526, %v686
        %688 = vmatmul.bf16.gmra.mxu0 %v616
        %v689 = vpop.f32.mrf.mxu0
        %v690 = vadd.f32 %v526, %v689
        %v691 = vpop.f32.mrf.mxu0
        %v692 = vadd.f32 %v526, %v691
        %693 = vdwg.mxu0
        %v694 = vmax.f32 %v628, 0.0
        %v695 = vmax.f32 %v647, 0.0
        %v696 = vmax.f32 %v666, 0.0
        %v697 = vmax.f32 %v685, 0.0
        %v698 = vmax.f32 %v630, 0.0
        %v699 = vmax.f32 %v649, 0.0
        %v700 = vmax.f32 %v668, 0.0
        %v701 = vmax.f32 %v687, 0.0
        %v702 = vmax.f32 %v633, 0.0
        %v703 = vmax.f32 %v652, 0.0
        %v704 = vmax.f32 %v671, 0.0
        %v705 = vmax.f32 %v690, 0.0
        %v706 = vmax.f32 %v635, 0.0
        %v707 = vmax.f32 %v654, 0.0
        %v708 = vmax.f32 %v673, 0.0
        %v709 = vmax.f32 %v692, 0.0
        %v710 = vpack.c.bf16 %v698, %v694
        %v711 = vpack.c.bf16 %v699, %v695
        %v712 = vpack.c.bf16 %v700, %v696
        %v713 = vpack.c.bf16 %v701, %v697
        %v714 = vpack.c.bf16 %v706, %v702
        %v715 = vpack.c.bf16 %v707, %v703
        %v716 = vpack.c.bf16 %v708, %v704
        %v717 = vpack.c.bf16 %v709, %v705
        %v718 = vld [vmem:[%s5] sm:$0xff]
        %v719 = vld [vmem:[%s5 + $0x8] sm:$0xff]
        %v720 = vld [vmem:[%s5 + $0x10] sm:$0xff]
        %v721 = vld [vmem:[%s5 + $0x18] sm:$0xff]
        %v722 = vld [vmem:[%s5 + $0x20] sm:$0xff]
        %v723 = vld [vmem:[%s5 + $0x28] sm:$0xff]
        %v724 = vld [vmem:[%s5 + $0x30] sm:$0xff]
        %v725 = vld [vmem:[%s5 + $0x38] sm:$0xff]
        %v726 = vld [vmem:[%s5 + $0x40] sm:$0xff]
        %v727 = vld [vmem:[%s5 + $0x48] sm:$0xff]
        %v728 = vld [vmem:[%s5 + $0x50] sm:$0xff]
        %v729 = vld [vmem:[%s5 + $0x58] sm:$0xff]
        %v730 = vld [vmem:[%s5 + $0x60] sm:$0xff]
        %v731 = vld [vmem:[%s5 + $0x68] sm:$0xff]
        %v732 = vld [vmem:[%s5 + $0x70] sm:$0xff]
        %v733 = vld [vmem:[%s5 + $0x78] sm:$0xff]
        %v734 = vld [vmem:[%s5 + $0x80] sm:$0xff]
        %v735 = vld [vmem:[%s5 + $0x88] sm:$0xff]
        %v736 = vld [vmem:[%s5 + $0x90] sm:$0xff]
        %v737 = vld [vmem:[%s5 + $0x98] sm:$0xff]
        %v738 = vld [vmem:[%s5 + $0xa0] sm:$0xff]
        %v739 = vld [vmem:[%s5 + $0xa8] sm:$0xff]
        %v740 = vld [vmem:[%s5 + $0xb0] sm:$0xff]
        %v741 = vld [vmem:[%s5 + $0xb8] sm:$0xff]
        %v742 = vld [vmem:[%s5 + $0xc0] sm:$0xff]
        %v743 = vld [vmem:[%s5 + $0xc8] sm:$0xff]
        %v744 = vld [vmem:[%s5 + $0xd0] sm:$0xff]
        %v745 = vld [vmem:[%s5 + $0xd8] sm:$0xff]
        %v746 = vld [vmem:[%s5 + $0xe0] sm:$0xff]
        %v747 = vld [vmem:[%s5 + $0xe8] sm:$0xff]
        %v748 = vld [vmem:[%s5 + $0xf0] sm:$0xff]
        %v749 = vld [vmem:[%s5 + $0xf8] sm:$0xff]
        %v750 = vld [vmem:[%s5 + $0x100] sm:$0xff]
        %v751 = vld [vmem:[%s5 + $0x108] sm:$0xff]
        %v752 = vld [vmem:[%s5 + $0x110] sm:$0xff]
        %v753 = vld [vmem:[%s5 + $0x118] sm:$0xff]
        %v754 = vld [vmem:[%s5 + $0x120] sm:$0xff]
        %v755 = vld [vmem:[%s5 + $0x128] sm:$0xff]
        %v756 = vld [vmem:[%s5 + $0x130] sm:$0xff]
        %v757 = vld [vmem:[%s5 + $0x138] sm:$0xff]
        %v758 = vld [vmem:[%s5 + $0x140] sm:$0xff]
        %v759 = vld [vmem:[%s5 + $0x148] sm:$0xff]
        %v760 = vld [vmem:[%s5 + $0x150] sm:$0xff]
        %v761 = vld [vmem:[%s5 + $0x158] sm:$0xff]
        %v762 = vld [vmem:[%s5 + $0x160] sm:$0xff]
        %v763 = vld [vmem:[%s5 + $0x168] sm:$0xff]
        %v764 = vld [vmem:[%s5 + $0x170] sm:$0xff]
        %v765 = vld [vmem:[%s5 + $0x178] sm:$0xff]
        %v766 = vld [vmem:[%s5 + $0x180] sm:$0xff]
        %v767 = vld [vmem:[%s5 + $0x188] sm:$0xff]
        %v768 = vld [vmem:[%s5 + $0x190] sm:$0xff]
        %v769 = vld [vmem:[%s5 + $0x198] sm:$0xff]
        %v770 = vld [vmem:[%s5 + $0x1a0] sm:$0xff]
        %v771 = vld [vmem:[%s5 + $0x1a8] sm:$0xff]
        %v772 = vld [vmem:[%s5 + $0x1b0] sm:$0xff]
        %v773 = vld [vmem:[%s5 + $0x1b8] sm:$0xff]
        %v774 = vld [vmem:[%s5 + $0x1c0] sm:$0xff]
        %v775 = vld [vmem:[%s5 + $0x1c8] sm:$0xff]
        %v776 = vld [vmem:[%s5 + $0x1d0] sm:$0xff]
        %v777 = vld [vmem:[%s5 + $0x1d8] sm:$0xff]
        %v778 = vld [vmem:[%s5 + $0x1e0] sm:$0xff]
        %v779 = vld [vmem:[%s5 + $0x1e8] sm:$0xff]
        %v780 = vld [vmem:[%s5 + $0x1f0] sm:$0xff]
        %v781 = vld [vmem:[%s5 + $0x1f8] sm:$0xff]
        %v782 = vld [vmem:[%s6] sm:$0x3]
        %v784 = vperm.slane %v782, 0
        %v785 = vperm.slane %v782, 1
        %v852 = vunpack.c.l.b16 %v718
        %v853 = vunpack.c.h.b16 %v718
        %v854 = vunpack.c.l.b16 %v719
        %v855 = vunpack.c.h.b16 %v719
        %v856 = vunpack.c.l.b16 %v720
        %v857 = vunpack.c.h.b16 %v720
        %v858 = vunpack.c.l.b16 %v721
        %v859 = vunpack.c.h.b16 %v721
        %v860 = vunpack.c.l.b16 %v722
        %v861 = vunpack.c.h.b16 %v722
        %v862 = vunpack.c.l.b16 %v723
        %v863 = vunpack.c.h.b16 %v723
        %v864 = vunpack.c.l.b16 %v724
        %v865 = vunpack.c.h.b16 %v724
        %v866 = vunpack.c.l.b16 %v725
        %v867 = vunpack.c.h.b16 %v725
        %v868 = vunpack.c.l.b16 %v726
        %v869 = vunpack.c.h.b16 %v726
        %v870 = vunpack.c.l.b16 %v727
        %v871 = vunpack.c.h.b16 %v727
        %v872 = vunpack.c.l.b16 %v728
        %v873 = vunpack.c.h.b16 %v728
        %v874 = vunpack.c.l.b16 %v729
        %v875 = vunpack.c.h.b16 %v729
        %v876 = vunpack.c.l.b16 %v730
        %v877 = vunpack.c.h.b16 %v730
        %v878 = vunpack.c.l.b16 %v731
        %v879 = vunpack.c.h.b16 %v731
        %v880 = vunpack.c.l.b16 %v732
        %v881 = vunpack.c.h.b16 %v732
        %v882 = vunpack.c.l.b16 %v733
        %v883 = vunpack.c.h.b16 %v733
        %v884 = vunpack.c.l.b16 %v734
        %v885 = vunpack.c.h.b16 %v734
        %v886 = vunpack.c.l.b16 %v735
        %v887 = vunpack.c.h.b16 %v735
        %v888 = vunpack.c.l.b16 %v736
        %v889 = vunpack.c.h.b16 %v736
        %v890 = vunpack.c.l.b16 %v737
        %v891 = vunpack.c.h.b16 %v737
        %v892 = vunpack.c.l.b16 %v738
        %v893 = vunpack.c.h.b16 %v738
        %v894 = vunpack.c.l.b16 %v739
        %v895 = vunpack.c.h.b16 %v739
        %v896 = vunpack.c.l.b16 %v740
        %v897 = vunpack.c.h.b16 %v740
        %v898 = vunpack.c.l.b16 %v741
        %v899 = vunpack.c.h.b16 %v741
        %v900 = vunpack.c.l.b16 %v742
        %v901 = vunpack.c.h.b16 %v742
        %v902 = vunpack.c.l.b16 %v743
        %v903 = vunpack.c.h.b16 %v743
        %v904 = vunpack.c.l.b16 %v744
        %v905 = vunpack.c.h.b16 %v744
        %v906 = vunpack.c.l.b16 %v745
        %v907 = vunpack.c.h.b16 %v745
        %v908 = vunpack.c.l.b16 %v746
        %v909 = vunpack.c.h.b16 %v746
        %v910 = vunpack.c.l.b16 %v747
        %v911 = vunpack.c.h.b16 %v747
        %v912 = vunpack.c.l.b16 %v748
        %v913 = vunpack.c.h.b16 %v748
        %v914 = vunpack.c.l.b16 %v749
        %v915 = vunpack.c.h.b16 %v749
        %v916 = vunpack.c.l.b16 %v750
        %v917 = vunpack.c.h.b16 %v750
        %v918 = vunpack.c.l.b16 %v751
        %v919 = vunpack.c.h.b16 %v751
        %v920 = vunpack.c.l.b16 %v752
        %v921 = vunpack.c.h.b16 %v752
        %v922 = vunpack.c.l.b16 %v753
        %v923 = vunpack.c.h.b16 %v753
        %v924 = vunpack.c.l.b16 %v754
        %v925 = vunpack.c.h.b16 %v754
        %v926 = vunpack.c.l.b16 %v755
        %v927 = vunpack.c.h.b16 %v755
        %v928 = vunpack.c.l.b16 %v756
        %v929 = vunpack.c.h.b16 %v756
        %v930 = vunpack.c.l.b16 %v757
        %v931 = vunpack.c.h.b16 %v757
        %v932 = vunpack.c.l.b16 %v758
        %v933 = vunpack.c.h.b16 %v758
        %v934 = vunpack.c.l.b16 %v759
        %v935 = vunpack.c.h.b16 %v759
        %v936 = vunpack.c.l.b16 %v760
        %v937 = vunpack.c.h.b16 %v760
        %v938 = vunpack.c.l.b16 %v761
        %v939 = vunpack.c.h.b16 %v761
        %v940 = vunpack.c.l.b16 %v762
        %v941 = vunpack.c.h.b16 %v762
        %v942 = vunpack.c.l.b16 %v763
        %v943 = vunpack.c.h.b16 %v763
        %v944 = vunpack.c.l.b16 %v764
        %v945 = vunpack.c.h.b16 %v764
        %v946 = vunpack.c.l.b16 %v765
        %v947 = vunpack.c.h.b16 %v765
        %v948 = vunpack.c.l.b16 %v766
        %v949 = vunpack.c.h.b16 %v766
        %v950 = vunpack.c.l.b16 %v767
        %v951 = vunpack.c.h.b16 %v767
        %v952 = vunpack.c.l.b16 %v768
        %v953 = vunpack.c.h.b16 %v768
        %v954 = vunpack.c.l.b16 %v769
        %v955 = vunpack.c.h.b16 %v769
        %v956 = vunpack.c.l.b16 %v770
        %v957 = vunpack.c.h.b16 %v770
        %v958 = vunpack.c.l.b16 %v771
        %v959 = vunpack.c.h.b16 %v771
        %v960 = vunpack.c.l.b16 %v772
        %v961 = vunpack.c.h.b16 %v772
        %v962 = vunpack.c.l.b16 %v773
        %v963 = vunpack.c.h.b16 %v773
        %v964 = vunpack.c.l.b16 %v774
        %v965 = vunpack.c.h.b16 %v774
        %v966 = vunpack.c.l.b16 %v775
        %v967 = vunpack.c.h.b16 %v775
        %v968 = vunpack.c.l.b16 %v776
        %v969 = vunpack.c.h.b16 %v776
        %v970 = vunpack.c.l.b16 %v777
        %v971 = vunpack.c.h.b16 %v777
        %v972 = vunpack.c.l.b16 %v778
        %v973 = vunpack.c.h.b16 %v778
        %v974 = vunpack.c.l.b16 %v779
        %v975 = vunpack.c.h.b16 %v779
        %v976 = vunpack.c.l.b16 %v780
        %v977 = vunpack.c.h.b16 %v780
        %v978 = vunpack.c.l.b16 %v781
        %v979 = vunpack.c.h.b16 %v781
        %v980 = vpack.c.b16 %v854, %v852
        %v981 = vpack.c.b16 %v855, %v853
        %v982 = vpack.c.b16 %v858, %v856
        %v983 = vpack.c.b16 %v859, %v857
        %v984 = vpack.c.b16 %v862, %v860
        %v985 = vpack.c.b16 %v863, %v861
        %v986 = vpack.c.b16 %v866, %v864
        %v987 = vpack.c.b16 %v867, %v865
        %v988 = vpack.c.b16 %v870, %v868
        %v989 = vpack.c.b16 %v871, %v869
        %v990 = vpack.c.b16 %v874, %v872
        %v991 = vpack.c.b16 %v875, %v873
        %v992 = vpack.c.b16 %v878, %v876
        %v993 = vpack.c.b16 %v879, %v877
        %v994 = vpack.c.b16 %v882, %v880
        %v995 = vpack.c.b16 %v883, %v881
        %v996 = vpack.c.b16 %v886, %v884
        %v997 = vpack.c.b16 %v887, %v885
        %v998 = vpack.c.b16 %v890, %v888
        %v999 = vpack.c.b16 %v891, %v889
        %v1000 = vpack.c.b16 %v894, %v892
        %v1001 = vpack.c.b16 %v895, %v893
        %v1002 = vpack.c.b16 %v898, %v896
        %v1003 = vpack.c.b16 %v899, %v897
        %v1004 = vpack.c.b16 %v902, %v900
        %v1005 = vpack.c.b16 %v903, %v901
        %v1006 = vpack.c.b16 %v906, %v904
        %v1007 = vpack.c.b16 %v907, %v905
        %v1008 = vpack.c.b16 %v910, %v908
        %v1009 = vpack.c.b16 %v911, %v909
        %v1010 = vpack.c.b16 %v914, %v912
        %v1011 = vpack.c.b16 %v915, %v913
        %v1012 = vpack.c.b16 %v918, %v916
        %v1013 = vpack.c.b16 %v919, %v917
        %v1014 = vpack.c.b16 %v922, %v920
        %v1015 = vpack.c.b16 %v923, %v921
        %v1016 = vpack.c.b16 %v926, %v924
        %v1017 = vpack.c.b16 %v927, %v925
        %v1018 = vpack.c.b16 %v930, %v928
        %v1019 = vpack.c.b16 %v931, %v929
        %v1020 = vpack.c.b16 %v934, %v932
        %v1021 = vpack.c.b16 %v935, %v933
        %v1022 = vpack.c.b16 %v938, %v936
        %v1023 = vpack.c.b16 %v939, %v937
        %v1024 = vpack.c.b16 %v942, %v940
        %v1025 = vpack.c.b16 %v943, %v941
        %v1026 = vpack.c.b16 %v946, %v944
        %v1027 = vpack.c.b16 %v947, %v945
        %v1028 = vpack.c.b16 %v950, %v948
        %v1029 = vpack.c.b16 %v951, %v949
        %v1030 = vpack.c.b16 %v954, %v952
        %v1031 = vpack.c.b16 %v955, %v953
        %v1032 = vpack.c.b16 %v958, %v956
        %v1033 = vpack.c.b16 %v959, %v957
        %v1034 = vpack.c.b16 %v962, %v960
        %v1035 = vpack.c.b16 %v963, %v961
        %v1036 = vpack.c.b16 %v966, %v964
        %v1037 = vpack.c.b16 %v967, %v965
        %v1038 = vpack.c.b16 %v970, %v968
        %v1039 = vpack.c.b16 %v971, %v969
        %v1040 = vpack.c.b16 %v974, %v972
        %v1041 = vpack.c.b16 %v975, %v973
        %v1042 = vpack.c.b16 %v978, %v976
        %v1043 = vpack.c.b16 %v979, %v977
        %1108 = vmatpush.bf16.msra.mxu0 %v994
        %1109 = vmatpush.bf16.msra.mxu0 %v992
        %1110 = vmatpush.bf16.msra.mxu0 %v990
        %1111 = vmatpush.bf16.msra.mxu0 %v988
        %1112 = vmatpush.bf16.msra.mxu0 %v986
        %1113 = vmatpush.bf16.msra.mxu0 %v984
        %1114 = vmatpush.bf16.msra.mxu0 %v982
        %1115 = vmatpush.bf16.msra.mxu0 %v980
        %1116 = vmatmul.bf16.gmra.mxu0 %v710
        %v1117 = vpop.f32.mrf.mxu0
        %v1118 = vadd.f32 %v784, %v1117
        %v1119 = vpop.f32.mrf.mxu0
        %v1120 = vadd.f32 %v784, %v1119
        %1121 = vmatmul.bf16.gmra.mxu0 %v714
        %v1122 = vpop.f32.mrf.mxu0
        %v1123 = vadd.f32 %v784, %v1122
        %v1124 = vpop.f32.mrf.mxu0
        %v1125 = vadd.f32 %v784, %v1124
        %1126 = vdwg.mxu0
        %1127 = vmatpush.bf16.msra.mxu0 %v1010
        %1128 = vmatpush.bf16.msra.mxu0 %v1008
        %1129 = vmatpush.bf16.msra.mxu0 %v1006
        %1130 = vmatpush.bf16.msra.mxu0 %v1004
        %1131 = vmatpush.bf16.msra.mxu0 %v1002
        %1132 = vmatpush.bf16.msra.mxu0 %v1000
        %1133 = vmatpush.bf16.msra.mxu0 %v998
        %1134 = vmatpush.bf16.msra.mxu0 %v996
        %1135 = vmatmul.bf16.gmra.mxu0 %v711
        %v1136 = vpop.f32.mrf.mxu0
        %v1137 = vadd.f32 %v1118, %v1136
        %v1138 = vpop.f32.mrf.mxu0
        %v1139 = vadd.f32 %v1120, %v1138
        %1140 = vmatmul.bf16.gmra.mxu0 %v715
        %v1141 = vpop.f32.mrf.mxu0
        %v1142 = vadd.f32 %v1123, %v1141
        %v1143 = vpop.f32.mrf.mxu0
        %v1144 = vadd.f32 %v1125, %v1143
        %1145 = vdwg.mxu0
        %1146 = vmatpush.bf16.msra.mxu0 %v1026
        %1147 = vmatpush.bf16.msra.mxu0 %v1024
        %1148 = vmatpush.bf16.msra.mxu0 %v1022
        %1149 = vmatpush.bf16.msra.mxu0 %v1020
        %1150 = vmatpush.bf16.msra.mxu0 %v1018
        %1151 = vmatpush.bf16.msra.mxu0 %v1016
        %1152 = vmatpush.bf16.msra.mxu0 %v1014
        %1153 = vmatpush.bf16.msra.mxu0 %v1012
        %1154 = vmatmul.bf16.gmra.mxu0 %v712
        %v1155 = vpop.f32.mrf.mxu0
        %v1156 = vadd.f32 %v1137, %v1155
        %v1157 = vpop.f32.mrf.mxu0
        %v1158 = vadd.f32 %v1139, %v1157
        %1159 = vmatmul.bf16.gmra.mxu0 %v716
        %v1160 = vpop.f32.mrf.mxu0
        %v1161 = vadd.f32 %v1142, %v1160
        %v1162 = vpop.f32.mrf.mxu0
        %v1163 = vadd.f32 %v1144, %v1162
        %1164 = vdwg.mxu0
        %1165 = vmatpush.bf16.msra.mxu0 %v1042
        %1166 = vmatpush.bf16.msra.mxu0 %v1040
        %1167 = vmatpush.bf16.msra.mxu0 %v1038
        %1168 = vmatpush.bf16.msra.mxu0 %v1036
        %1169 = vmatpush.bf16.msra.mxu0 %v1034
        %1170 = vmatpush.bf16.msra.mxu0 %v1032
        %1171 = vmatpush.bf16.msra.mxu0 %v1030
        %1172 = vmatpush.bf16.msra.mxu0 %v1028
        %1173 = vmatmul.bf16.gmra.mxu0 %v713
        %v1174 = vpop.f32.mrf.mxu0
        %v1175 = vadd.f32 %v1156, %v1174
        %v1176 = vpop.f32.mrf.mxu0
        %v1177 = vadd.f32 %v1158, %v1176
        %1178 = vmatmul.bf16.gmra.mxu0 %v717
        %v1179 = vpop.f32.mrf.mxu0
        %v1180 = vadd.f32 %v1161, %v1179
        %v1181 = vpop.f32.mrf.mxu0
        %v1182 = vadd.f32 %v1163, %v1181
        %1183 = vdwg.mxu0
        %1184 = vmatpush.bf16.msra.mxu0 %v995
        %1185 = vmatpush.bf16.msra.mxu0 %v993
        %1186 = vmatpush.bf16.msra.mxu0 %v991
        %1187 = vmatpush.bf16.msra.mxu0 %v989
        %1188 = vmatpush.bf16.msra.mxu0 %v987
        %1189 = vmatpush.bf16.msra.mxu0 %v985
        %1190 = vmatpush.bf16.msra.mxu0 %v983
        %1191 = vmatpush.bf16.msra.mxu0 %v981
        %1192 = vmatmul.bf16.gmra.mxu0 %v710
        %v1193 = vpop.f32.mrf.mxu0
        %v1194 = vadd.f32 %v785, %v1193
        %v1195 = vpop.f32.mrf.mxu0
        %v1196 = vadd.f32 %v785, %v1195
        %1197 = vmatmul.bf16.gmra.mxu0 %v714
        %v1198 = vpop.f32.mrf.mxu0
        %v1199 = vadd.f32 %v785, %v1198
        %v1200 = vpop.f32.mrf.mxu0
        %v1201 = vadd.f32 %v785, %v1200
        %1202 = vdwg.mxu0
        %1203 = vmatpush.bf16.msra.mxu0 %v1011
        %1204 = vmatpush.bf16.msra.mxu0 %v1009
        %1205 = vmatpush.bf16.msra.mxu0 %v1007
        %1206 = vmatpush.bf16.msra.mxu0 %v1005
        %1207 = vmatpush.bf16.msra.mxu0 %v1003
        %1208 = vmatpush.bf16.msra.mxu0 %v1001
        %1209 = vmatpush.bf16.msra.mxu0 %v999
        %1210 = vmatpush.bf16.msra.mxu0 %v997
        %1211 = vmatmul.bf16.gmra.mxu0 %v711
        %v1212 = vpop.f32.mrf.mxu0
        %v1213 = vadd.f32 %v1194, %v1212
        %v1214 = vpop.f32.mrf.mxu0
        %v1215 = vadd.f32 %v1196, %v1214
        %1216 = vmatmul.bf16.gmra.mxu0 %v715
        %v1217 = vpop.f32.mrf.mxu0
        %v1218 = vadd.f32 %v1199, %v1217
        %v1219 = vpop.f32.mrf.mxu0
        %v1220 = vadd.f32 %v1201, %v1219
        %1221 = vdwg.mxu0
        %1222 = vmatpush.bf16.msra.mxu0 %v1027
        %1223 = vmatpush.bf16.msra.mxu0 %v1025
        %1224 = vmatpush.bf16.msra.mxu0 %v1023
        %1225 = vmatpush.bf16.msra.mxu0 %v1021
        %1226 = vmatpush.bf16.msra.mxu0 %v1019
        %1227 = vmatpush.bf16.msra.mxu0 %v1017
        %1228 = vmatpush.bf16.msra.mxu0 %v1015
        %1229 = vmatpush.bf16.msra.mxu0 %v1013
        %1230 = vmatmul.bf16.gmra.mxu0 %v712
        %v1231 = vpop.f32.mrf.mxu0
        %v1232 = vadd.f32 %v1213, %v1231
        %v1233 = vpop.f32.mrf.mxu0
        %v1234 = vadd.f32 %v1215, %v1233
        %1235 = vmatmul.bf16.gmra.mxu0 %v716
        %v1236 = vpop.f32.mrf.mxu0
        %v1237 = vadd.f32 %v1218, %v1236
        %v1238 = vpop.f32.mrf.mxu0
        %v1239 = vadd.f32 %v1220, %v1238
        %1240 = vdwg.mxu0
        %1241 = vmatpush.bf16.msra.mxu0 %v1043
        %1242 = vmatpush.bf16.msra.mxu0 %v1041
        %1243 = vmatpush.bf16.msra.mxu0 %v1039
        %1244 = vmatpush.bf16.msra.mxu0 %v1037
        %1245 = vmatpush.bf16.msra.mxu0 %v1035
        %1246 = vmatpush.bf16.msra.mxu0 %v1033
        %1247 = vmatpush.bf16.msra.mxu0 %v1031
        %1248 = vmatpush.bf16.msra.mxu0 %v1029
        %1249 = vmatmul.bf16.gmra.mxu0 %v713
        %v1250 = vpop.f32.mrf.mxu0
        %v1251 = vadd.f32 %v1232, %v1250
        %v1252 = vpop.f32.mrf.mxu0
        %v1253 = vadd.f32 %v1234, %v1252
        %1254 = vmatmul.bf16.gmra.mxu0 %v717
        %v1255 = vpop.f32.mrf.mxu0
        %v1256 = vadd.f32 %v1237, %v1255
        %v1257 = vpop.f32.mrf.mxu0
        %v1258 = vadd.f32 %v1239, %v1257
        %1259 = vdwg.mxu0
        %v1260 = vmax.f32 %v1175, 0.0
        %v1261 = vmax.f32 %v1251, 0.0
        %v1262 = vmax.f32 %v1177, 0.0
        %v1263 = vmax.f32 %v1253, 0.0
        %v1264 = vmax.f32 %v1180, 0.0
        %v1265 = vmax.f32 %v1256, 0.0
        %v1266 = vmax.f32 %v1182, 0.0
        %v1267 = vmax.f32 %v1258, 0.0
        %v1268 = vpack.c.bf16 %v1262, %v1260
        %v1269 = vpack.c.bf16 %v1263, %v1261
        %v1270 = vpack.c.bf16 %v1266, %v1264
        %v1271 = vpack.c.bf16 %v1267, %v1265
        %v1272 = vld [vmem:[%s7] sm:$0xf]
        %v1273 = vld [vmem:[%s7 + $0x4] sm:$0xf]
        %v1274 = vld [vmem:[%s7 + $0x8] sm:$0xf]
        %v1275 = vld [vmem:[%s7 + $0xc] sm:$0xf]
        %v1276 = vld [vmem:[%s7 + $0x10] sm:$0xf]
        %v1277 = vld [vmem:[%s7 + $0x14] sm:$0xf]
        %v1278 = vld [vmem:[%s7 + $0x18] sm:$0xf]
        %v1279 = vld [vmem:[%s7 + $0x1c] sm:$0xf]
        %v1280 = vld [vmem:[%s7 + $0x20] sm:$0xf]
        %v1281 = vld [vmem:[%s7 + $0x24] sm:$0xf]
        %v1282 = vld [vmem:[%s7 + $0x28] sm:$0xf]
        %v1283 = vld [vmem:[%s7 + $0x2c] sm:$0xf]
        %v1284 = vld [vmem:[%s7 + $0x30] sm:$0xf]
        %v1285 = vld [vmem:[%s7 + $0x34] sm:$0xf]
        %v1286 = vld [vmem:[%s7 + $0x38] sm:$0xf]
        %v1287 = vld [vmem:[%s7 + $0x3c] sm:$0xf]
        %v1288 = vld [vmem:[%s7 + $0x40] sm:$0xf]
        %v1289 = vld [vmem:[%s7 + $0x44] sm:$0xf]
        %v1290 = vld [vmem:[%s7 + $0x48] sm:$0xf]
        %v1291 = vld [vmem:[%s7 + $0x4c] sm:$0xf]
        %v1292 = vld [vmem:[%s7 + $0x50] sm:$0xf]
        %v1293 = vld [vmem:[%s7 + $0x54] sm:$0xf]
        %v1294 = vld [vmem:[%s7 + $0x58] sm:$0xf]
        %v1295 = vld [vmem:[%s7 + $0x5c] sm:$0xf]
        %v1296 = vld [vmem:[%s7 + $0x60] sm:$0xf]
        %v1297 = vld [vmem:[%s7 + $0x64] sm:$0xf]
        %v1298 = vld [vmem:[%s7 + $0x68] sm:$0xf]
        %v1299 = vld [vmem:[%s7 + $0x6c] sm:$0xf]
        %v1300 = vld [vmem:[%s7 + $0x70] sm:$0xf]
        %v1301 = vld [vmem:[%s7 + $0x74] sm:$0xf]
        %v1302 = vld [vmem:[%s7 + $0x78] sm:$0xf]
        %v1303 = vld [vmem:[%s7 + $0x7c] sm:$0xf]
        %v1304 = vld [vmem:[%s8] sm:$0x1]
        %v1306 = vperm.slane %v1304, 0
        %v1340 = vunpack.c.l.b16 %v1272
        %v1341 = vunpack.c.l.b16 %v1273
        %v1342 = vunpack.c.l.b16 %v1274
        %v1343 = vunpack.c.l.b16 %v1275
        %v1344 = vunpack.c.l.b16 %v1276
        %v1345 = vunpack.c.l.b16 %v1277
        %v1346 = vunpack.c.l.b16 %v1278
        %v1347 = vunpack.c.l.b16 %v1279
        %v1348 = vunpack.c.l.b16 %v1280
        %v1349 = vunpack.c.l.b16 %v1281
        %v1350 = vunpack.c.l.b16 %v1282
        %v1351 = vunpack.c.l.b16 %v1283
        %v1352 = vunpack.c.l.b16 %v1284
        %v1353 = vunpack.c.l.b16 %v1285
        %v1354 = vunpack.c.l.b16 %v1286
        %v1355 = vunpack.c.l.b16 %v1287
        %v1356 = vunpack.c.l.b16 %v1288
        %v1357 = vunpack.c.l.b16 %v1289
        %v1358 = vunpack.c.l.b16 %v1290
        %v1359 = vunpack.c.l.b16 %v1291
        %v1360 = vunpack.c.l.b16 %v1292
        %v1361 = vunpack.c.l.b16 %v1293
        %v1362 = vunpack.c.l.b16 %v1294
        %v1363 = vunpack.c.l.b16 %v1295
        %v1364 = vunpack.c.l.b16 %v1296
        %v1365 = vunpack.c.l.b16 %v1297
        %v1366 = vunpack.c.l.b16 %v1298
        %v1367 = vunpack.c.l.b16 %v1299
        %v1368 = vunpack.c.l.b16 %v1300
        %v1369 = vunpack.c.l.b16 %v1301
        %v1370 = vunpack.c.l.b16 %v1302
        %v1371 = vunpack.c.l.b16 %v1303
        %v1372 = vpack.c.b16 %v1341, %v1340
        %v1373 = vpack.c.b16 %v1343, %v1342
        %v1374 = vpack.c.b16 %v1345, %v1344
        %v1375 = vpack.c.b16 %v1347, %v1346
        %v1376 = vpack.c.b16 %v1349, %v1348
        %v1377 = vpack.c.b16 %v1351, %v1350
        %v1378 = vpack.c.b16 %v1353, %v1352
        %v1379 = vpack.c.b16 %v1355, %v1354
        %v1380 = vpack.c.b16 %v1357, %v1356
        %v1381 = vpack.c.b16 %v1359, %v1358
        %v1382 = vpack.c.b16 %v1361, %v1360
        %v1383 = vpack.c.b16 %v1363, %v1362
        %v1384 = vpack.c.b16 %v1365, %v1364
        %v1385 = vpack.c.b16 %v1367, %v1366
        %v1386 = vpack.c.b16 %v1369, %v1368
        %v1387 = vpack.c.b16 %v1371, %v1370
        %1404 = vmatpush.bf16.msra.mxu0 %v1379
        %1405 = vmatpush.bf16.msra.mxu0 %v1378
        %1406 = vmatpush.bf16.msra.mxu0 %v1377
        %1407 = vmatpush.bf16.msra.mxu0 %v1376
        %1408 = vmatpush.bf16.msra.mxu0 %v1375
        %1409 = vmatpush.bf16.msra.mxu0 %v1374
        %1410 = vmatpush.bf16.msra.mxu0 %v1373
        %1411 = vmatpush.bf16.msra.mxu0 %v1372
        %1412 = vmatmul.bf16.gmra.mxu0 %v1268
        %v1413 = vpop.f32.mrf.mxu0
        %v1414 = vadd.f32 %v1306, %v1413
        %v1415 = vpop.f32.mrf.mxu0
        %v1416 = vadd.f32 %v1306, %v1415
        %1417 = vmatmul.bf16.gmra.mxu0 %v1270
        %v1418 = vpop.f32.mrf.mxu0
        %v1419 = vadd.f32 %v1306, %v1418
        %v1420 = vpop.f32.mrf.mxu0
        %v1421 = vadd.f32 %v1306, %v1420
        %1422 = vdwg.mxu0
        %1423 = vmatpush.bf16.msra.mxu0 %v1387
        %1424 = vmatpush.bf16.msra.mxu0 %v1386
        %1425 = vmatpush.bf16.msra.mxu0 %v1385
        %1426 = vmatpush.bf16.msra.mxu0 %v1384
        %1427 = vmatpush.bf16.msra.mxu0 %v1383
        %1428 = vmatpush.bf16.msra.mxu0 %v1382
        %1429 = vmatpush.bf16.msra.mxu0 %v1381
        %1430 = vmatpush.bf16.msra.mxu0 %v1380
        %1431 = vmatmul.bf16.gmra.mxu0 %v1269
        %v1432 = vpop.f32.mrf.mxu0
        %v1433 = vadd.f32 %v1414, %v1432
        %v1434 = vpop.f32.mrf.mxu0
        %v1435 = vadd.f32 %v1416, %v1434
        %1436 = vmatmul.bf16.gmra.mxu0 %v1271
        %v1437 = vpop.f32.mrf.mxu0
        %v1438 = vadd.f32 %v1419, %v1437
        %v1439 = vpop.f32.mrf.mxu0
        %v1440 = vadd.f32 %v1421, %v1439
        %1441 = vdwg.mxu0
        %v1442 = vmax.f32 %v1433, 0.0
        %v1443 = vmax.f32 %v1435, 0.0
        %v1444 = vmax.f32 %v1438, 0.0
        %v1445 = vmax.f32 %v1440, 0.0
        %v1446 = vpack.c.bf16 %v1443, %v1442
        %v1447 = vpack.c.bf16 %v1445, %v1444
        %v1448 = vld [vmem:[%s9] sm:$0x1]
        %v1449 = vld [vmem:[%s10] sm:$0x3]
        %1451 = vset.pattern.permute.xlu0 0
        %1452 = vperm.xlu0 %1451, %v1449
        %v1453 = vpop.permute.xlu0 %1452
        %1455 = vmatpush.bf16.xpose.msra.mxu0 0
        %1456 = vmatpush.bf16.xpose.msra.mxu0 0
        %1457 = vmatpush.bf16.xpose.msra.mxu0 0
        %1458 = vmatpush.bf16.xpose.msra.mxu0 0
        %1459 = vmatpush.bf16.xpose.msra.mxu0 0
        %1460 = vmatpush.bf16.xpose.msra.mxu0 0
        %1461 = vmatpush.bf16.xpose.msra.mxu0 %v1447
        %1462 = vmatpush.bf16.xpose.msra.mxu0 %v1446
        %1463 = vmatmul.bf16.gmra.mxu0 %v1448
        %v1464 = vpop.f32.mrf.mxu0
        %v1465 = vadd.f32 %v1453, %v1464
        %v1466 = vpop.f32.mrf.mxu0
        %1467 = vdwg.mxu0
        %v1468 = vmax.f32 %v1465, 0.0
        %vm1469 = vcmask 254976
        %1470 = vst.msk [vmem:[%s430] sm:$0x3] %vm1469, %v1468
        %s1471 = sand.u32 %s295, 1
        %s1472 = scalar_lea.sflag [#allocation3], %s1471
        %s1473 = sand.u32 %s295, 1
        %s1474 = smul.addr %s1473, 2
        %s1475 = scalar_lea.vmem [#allocation2], %s1474
        // Predicated region
        $region65: #{pointnet_iid_forward.5} parent=63 // pred_check
          %p1476 = pneg %p305
        $region66: #{pointnet_iid_forward.5} parent=63 // pred_check_branch
          %1478 = sbr.rel (%p1476) target = $region68
        $region67: #{pointnet_iid_forward.5} parent=63 // pred_region
          %1480 = vsyncadd %s1472, 0
          %s1481 = sadd.s32 %s30, %s29
          %s1482 = smul.addr %s1481, 2
          %s1483 = scalar_lea.hbm %s11, %s1482
          %s1485 = sshll.u32 %s1475, 4
          %s1486 = int_to_ptr.vmem [resolvable:$true] %s1485
          %s1487 = sshll.u32 %s1483, 4
          %s1488 = int_to_ptr.hbm [resolvable:$true] %s1487
          %1490 = dma.vmem_to_hbm [thread:$0]  %s1486, 32, %s1488, %s1472
        $region68: #{pointnet_iid_forward.5} parent=63 // pred_fallthru
          _
      $region64: #{pointnet_iid_forward.5} parent=5 // pred_fallthru
        _
      %p1491 = scmp.le.s32.totalorder 2, %s20
      // Predicated region
      $region69: #{pointnet_iid_forward.5} parent=5 // pred_check
        %p1492 = pneg %p1491
      $region70: #{pointnet_iid_forward.5} parent=5 // pred_check_branch
        %1494 = sbr.rel (%p1492) target = $region72
      $region71: #{pointnet_iid_forward.5} parent=5 // pred_region
        %s1495 = ssub.s32 %s20, 2
        // Predicated region
        $region73: #{pointnet_iid_forward.5} parent=71 // pred_check
          %p1496 = pneg %p311
        $region74: #{pointnet_iid_forward.5} parent=71 // pred_check_branch
          %1498 = sbr.rel (%p1496) target = $region76
        $region75: #{pointnet_iid_forward.5} parent=71 // pred_region
          %s1499 = sand.u32 %s296, 1
          %s1500 = scalar_lea.sflag [#allocation3], %s1499
          %s1501 = sand.u32 %s296, 1
          %s1502 = smul.addr %s1501, 2
          %s1503 = scalar_lea.vmem [#allocation2], %s1502
          %1505 = dma.done %s1500, 32
        $region76: #{pointnet_iid_forward.5} parent=71 // pred_fallthru
          _
      $region72: #{pointnet_iid_forward.5} parent=5 // pred_fallthru
        _
    $region6: #{pointnet_iid_forward.5} parent=1 // loop_footer
      %s24 = sadd.s32 1, %s20
    $region7: #{pointnet_iid_forward.5} parent=1 // loop_footer_branch
      %19 = sbr.rel target = $region3
    $region8: #{pointnet_iid_forward.5} parent=1 // loop_exit
      _
    %1506 = vsyncpa [#allocation3], 1
    %s1507 = scalar_lea.sflag [#allocation3], 1
    %1508 = vsyncpa %s1507, 1

</llo_original>
